<compile_context>
chip_gen: v7x
topology: tpu7x:2x2x1
jax: 0.10.0
libtpu: 0.0.40
codegen_flags: <defaults>
</compile_context>

<pallas_src>
import math

import jax
import jax.numpy as jnp
from jax.experimental import pallas as pl
from jax.experimental.pallas import tpu as pltpu

_CONV1_K, _CONV1_STRIDE, _CONV1_PAD = 64, 16, 24


# ------------------------------ fused Pallas kernel -------------------------------


def _wdcnn_fused_kernel(x_ref,
                        w1_ref, b1_ref,
                        w2_ref, b2_ref,
                        w3_ref, b3_ref,
                        w4_ref, b4_ref,
                        w5_ref, b5_ref,
                        wf1_ref, bf1_ref,
                        wf2_ref, bf2_ref,
                        o_ref):
    f32 = jnp.float32

    def mm(a, b):
        return jnp.dot(a, b, preferred_element_type=f32)

    def iota2(shape, dim):
        return jax.lax.broadcasted_iota(jnp.int32, shape, dim)

    def shift_mat(n, off):
        # M[r, c] = 1  iff  c == r + off   =>   (M @ x)[r] = x[r + off]  (0 if out of range)
        return (iota2((n, n), 1) == iota2((n, n), 0) + off).astype(f32)

    def relu_maxpool(y, t_half):
        # Fused MaxPool1d(2, 2) + ReLU epilogue: rows 2m / 2m+1 are picked via exact 0/1
        # selection matmuls (avoids strided slices / reshapes in-kernel), then max & clamp.
        t_in = y.shape[0]
        r = iota2((t_half, t_in), 0)
        c = iota2((t_half, t_in), 1)
        even = mm((c == 2 * r).astype(f32), y)
        odd = mm((c == 2 * r + 1).astype(f32), y)
        return jnp.maximum(jnp.maximum(even, odd), 0.0)

    # ---- layer 1: Conv1d(C_in -> 16, K=64, stride=16, pad=24) + ReLU + pool ----------
    # x_ref[0] is the zero-padded input re-blocked to (A, 16*C) where row a, lane c*16+q
    # holds x_pad[c, 16*a + q].  stride 16 => out[t] = sum_j rowblock[t + j] @ W1[j].
    n_phase = w1_ref.shape[0]                       # K // stride == 4
    t1 = x_ref.shape[1] - (n_phase - 1)             # conv1 output length (== 128)
    y = b1_ref[...]
    for j in range(n_phase):
        y = y + mm(x_ref[0, j:j + t1, :], w1_ref[j])
    act = relu_maxpool(y, t1 // 2)                  # (64, 16)

    # ---- layers 2..4: Conv1d(K=3, stride=1, pad=1) + ReLU + pool ----------------------
    for w_ref, b_ref in ((w2_ref, b2_ref), (w3_ref, b3_ref), (w4_ref, b4_ref)):
        t = act.shape[0]
        x_prev = mm(shift_mat(t, -1), act)          # x[t-1]  (zero row at t = 0)
        x_next = mm(shift_mat(t, +1), act)          # x[t+1]  (zero row at t = T-1)
        y = (b_ref[...] + mm(x_prev, w_ref[0]) + mm(act, w_ref[1])
             + mm(x_next, w_ref[2]))
        act = relu_maxpool(y, t // 2)

    # ---- layer 5: Conv1d(K=3, stride=1, pad=0) + ReLU + pool --------------------------
    t = act.shape[0]                                # 8
    x_p1 = mm(shift_mat(t, +1), act)
    x_p2 = mm(shift_mat(t, +2), act)
    y = (b5_ref[...] + mm(act, w5_ref[0]) + mm(x_p1, w5_ref[1]) + mm(x_p2, w5_ref[2]))
    # only rows 0 .. t-3 are valid conv outputs; the pooling selectors touch exactly
    # those rows, so the trailing (invalid) rows never contribute.
    act = relu_maxpool(y, (t - 2) // 2)             # (3, 64)

    # ---- fc1 (Delinear) + ReLU: torch's channel-major flatten is folded into wf1 ------
    h = bf1_ref[...]
    for t_idx in range(act.shape[0]):
        h = h + mm(act[t_idx:t_idx + 1, :], wf1_ref[t_idx])
    h = jnp.maximum(h, 0.0)                         # (1, 18)

    # ---- fc2 (Delinear) ----------------------------------------------------------------
    o_ref[0] = mm(h, wf2_ref[...]) + bf2_ref[...]   # (1, n_classes)


def _tpu_compiler_params():
    cls = getattr(pltpu, "CompilerParams", None) or getattr(pltpu, "TPUCompilerParams", None)
    if cls is None:
        return None
    try:
        return cls(dimension_semantics=("parallel",))
    except TypeError:
        return None


def wdcnn_deconv_forward(kp, x):
    """Eval-mode forward of WDCNN_deconv.  x: (N, C_in, L) f32, kp = fold_wdcnn_params()."""
    N, C, L = x.shape
    lpad = L + 2 * _CONV1_PAD
    assert lpad % _CONV1_STRIDE == 0, "input length must satisfy (L + 48) % 16 == 0"
    a_rows = lpad // _CONV1_STRIDE                       # 131 stride-16 row blocks
    t = (lpad - _CONV1_K) // _CONV1_STRIDE + 1           # conv1 output length
    t //= 2                                              # pool1
    for _ in range(3):                                   # layers 2-4 keep T, pools halve it
        t //= 2
    t_final = (t - 2) // 2                               # layer 5 (pad=0) + pool5
    assert t_final == kp["wf1"].shape[0], "flattened feature count mismatch with fc1"

    # One-time input re-blocking for the stride-16 first conv (only XLA glue in the path):
    # (N, C, L) -> pad -> (N, a_rows, C*16) with lane index c*16+q == x_pad[c, 16*a + q].
    x_pad = jnp.pad(x, ((0, 0), (0, 0), (_CONV1_PAD, _CONV1_PAD)))
    x_r = jnp.transpose(
        x_pad.reshape(N, C, a_rows, _CONV1_STRIDE), (0, 2, 1, 3)
    ).reshape(N, a_rows, C * _CONV1_STRIDE)

    n_classes = kp["wf2"].shape[1]

    def _batch_map(i):
        return (i, 0, 0)

    def _c3(i):
        return (0, 0, 0)

    def _c2(i):
        return (0, 0)

    in_specs = [
        pl.BlockSpec((1, a_rows, C * _CONV1_STRIDE), _batch_map),
        pl.BlockSpec(kp["w1"].shape, _c3), pl.BlockSpec(kp["b1"].shape, _c2),
        pl.BlockSpec(kp["w2"].shape, _c3), pl.BlockSpec(kp["b2"].shape, _c2),
        pl.BlockSpec(kp["w3"].shape, _c3), pl.BlockSpec(kp["b3"].shape, _c2),
        pl.BlockSpec(kp["w4"].shape, _c3), pl.BlockSpec(kp["b4"].shape, _c2),
        pl.BlockSpec(kp["w5"].shape, _c3), pl.BlockSpec(kp["b5"].shape, _c2),
        pl.BlockSpec(kp["wf1"].shape, _c3), pl.BlockSpec(kp["bf1"].shape, _c2),
        pl.BlockSpec(kp["wf2"].shape, _c2), pl.BlockSpec(kp["bf2"].shape, _c2),
    ]

    out = pl.pallas_call(
        _wdcnn_fused_kernel,
        out_shape=jax.ShapeDtypeStruct((N, 1, n_classes), jnp.float32),
        grid=(N,),
        in_specs=in_specs,
        out_specs=pl.BlockSpec((1, 1, n_classes), _batch_map),
        compiler_params=_tpu_compiler_params(),
    )(x_r, kp["w1"], kp["b1"], kp["w2"], kp["b2"], kp["w3"], kp["b3"],
      kp["w4"], kp["b4"], kp["w5"], kp["b5"], kp["wf1"], kp["bf1"],
      kp["wf2"], kp["bf2"])
    return out.reshape(N, n_classes)


# --------------------- eval-mode parameter folding (outside jit) --------------------


def _fold_fastdeconv(layer):
    """Eval-mode FastDeconv (groups=1): fold running stats into effective (w, b)."""
    weight, bias = layer["weight"], layer["bias"]
    O, C, K = weight.shape
    B = int(layer["block"])
    nf = K * B
    w = weight.reshape(-1, nf, C // B)
    w = jnp.transpose(w, (0, 2, 1)).reshape(-1, nf)
    w = w @ layer["running_deconv"]
    b = bias - (w @ layer["running_mean"][:, None]).reshape(O, -1).sum(1)
    w = jnp.transpose(w.reshape(-1, C // B, nf), (0, 2, 1)).reshape(O, C, K)
    return w, b


def _fold_delinear(layer):
    """Eval-mode Delinear: fold running stats into effective (w, b)."""
    weight, bias = layer["weight"], layer["bias"]
    out_f, in_f = weight.shape
    w = weight.reshape(-1, int(layer["block"])) @ layer["running_deconv"]
    b = bias - (w @ layer["running_mean"][:, None]).reshape(out_f, -1).sum(1)
    return w.reshape(out_f, in_f), b


def fold_wdcnn_params(params):
    """One-time, eager packing of eval-mode effective weights into kernel layouts."""
    kp = {}

    # layer 1: (O, C, 64) -> (4, C*16, O) phase-matmul weights for the stride-16 conv.
    w1, b1 = _fold_fastdeconv(params["cn1"])
    O1, C1, K1 = w1.shape
    n_phase = K1 // _CONV1_STRIDE
    kp["w1"] = jnp.transpose(
        w1.reshape(O1, C1, n_phase, _CONV1_STRIDE), (2, 1, 3, 0)
    ).reshape(n_phase, C1 * _CONV1_STRIDE, O1)
    kp["b1"] = b1.reshape(1, O1)

    # layers 2..5: (O, C, 3) -> (3, C, O) so each tap k is a (C, O) matmul operand.
    for i, name in ((2, "cn2"), (3, "cn3"), (4, "cn4"), (5, "cn5")):
        w, b = _fold_fastdeconv(params[name])
        kp[f"w{i}"] = jnp.transpose(w, (2, 1, 0))
        kp[f"b{i}"] = b.reshape(1, -1)

    # fc1: fold torch's channel-major (C, T) flatten into the weight -> (T, C, out).
    wf1, bf1 = _fold_delinear(params["fc1"])
    out_f, in_f = wf1.shape
    c_last = params["cn5"]["weight"].shape[0]          # channels out of conv5 (64)
    t_last = in_f // c_last                            # spatial positions (3)
    kp["wf1"] = jnp.transpose(wf1.reshape(out_f, c_last, t_last), (2, 1, 0))
    kp["bf1"] = bf1.reshape(1, out_f)

    # fc2
    wf2, bf2 = _fold_delinear(params["fc2"])
    kp["wf2"] = wf2.T
    kp["bf2"] = bf2.reshape(1, -1)
    return kp


# ---------------------------------- init --------------------------------------------


def _sym(a):
    return 0.5 * (a + a.T)


def _fastdeconv_block(in_channels, block=64):
    if block > in_channels:
        return in_channels
    if in_channels % block != 0:
        return math.gcd(block, in_channels)
    return block


def _delinear_block(in_features, block=512):
    if block > in_features:
        return in_features
    if in_features % block != 0:
        return math.gcd(block, in_features)
    return block


def _init_fastdeconv(key, in_ch, out_ch, ksize):
    block = _fastdeconv_block(in_ch)
    nf = ksize * block
    k1, k2, k3, k4 = jax.random.split(key, 4)
    bound = 1.0 / math.sqrt(in_ch * ksize)
    return dict(
        weight=jax.random.uniform(k1, (out_ch, in_ch, ksize), jnp.float32, -bound, bound),
        bias=jax.random.uniform(k2, (out_ch,), jnp.float32, -bound, bound),
        running_mean=0.1 * jax.random.normal(k3, (nf,), jnp.float32),
        running_deconv=jnp.eye(nf, dtype=jnp.float32)
        + 0.05 * _sym(jax.random.normal(k4, (nf, nf), jnp.float32)),
        block=block,
    )


def _init_delinear(key, in_f, out_f):
    block = _delinear_block(in_f)
    k1, k2, k3, k4 = jax.random.split(key, 4)
    bound = 1.0 / math.sqrt(in_f)
    return dict(
        weight=jax.random.uniform(k1, (out_f, in_f), jnp.float32, -bound, bound),
        bias=jax.random.uniform(k2, (out_f,), jnp.float32, -bound, bound),
        running_mean=0.1 * jax.random.normal(k3, (block,), jnp.float32),
        running_deconv=jnp.eye(block, dtype=jnp.float32)
        + 0.05 * _sym(jax.random.normal(k4, (block, block), jnp.float32)),
        block=block,
    )


def init_wdcnn_deconv_params(key, in_channels=1, n_classes=10):
    ks = jax.random.split(key, 7)
    return dict(
        cn1=_init_fastdeconv(ks[0], in_channels, 16, 64),
        cn2=_init_fastdeconv(ks[1], 16, 32, 3),
        cn3=_init_fastdeconv(ks[2], 32, 64, 3),
        cn4=_init_fastdeconv(ks[3], 64, 64, 3),
        cn5=_init_fastdeconv(ks[4], 64, 64, 3),
        fc1=_init_delinear(ks[5], 64 * 3, 18),
        fc2=_init_delinear(ks[6], 18, n_classes),
    )


# --------------------- pure-JAX reference (for the self-check) ----------------------


def _ref_conv1d(x, w, b, stride, padding):
    N, C, L = x.shape
    O, _, K = w.shape
    xp = jnp.pad(x, ((0, 0), (0, 0), (padding, padding)))
    T = (L + 2 * padding - K) // stride + 1
    idx = jnp.arange(T)[:, None] * stride + jnp.arange(K)[None, :]
    patches = xp[:, :, idx]                                    # (N, C, T, K)
    return jnp.einsum("nctk,ock->not", patches, w) + b[None, :, None]


def reference_forward(params, x):
    cfg = [("cn1", 16, 24), ("cn2", 1, 1), ("cn3", 1, 1), ("cn4", 1, 1), ("cn5", 1, 0)]
    out = x
    for name, stride, padding in cfg:
        w, b = _fold_fastdeconv(params[name])
        out = _ref_conv1d(out, w, b, stride, padding)
        out = jnp.maximum(out, 0.0)
        n, c, t = out.shape
        out = out[:, :, : 2 * (t // 2)].reshape(n, c, t // 2, 2).max(axis=-1)
    out = out.reshape(out.shape[0], -1)                        # channel-major flatten
    w1, b1 = _fold_delinear(params["fc1"])
    out = jnp.maximum(out @ w1.T + b1, 0.0)
    w2, b2 = _fold_delinear(params["fc2"])
    return out @ w2.T + b2


# ---------------------------------- main --------------------------------------------

if __name__ == "__main__":
    # 2048 is the smallest input length compatible with fc1 (64*3 flattened features).
    N, C_IN, L = 2, 1, 2048
    N_CLASSES = 10

    key = jax.random.PRNGKey(0)
    k_params, k_x = jax.random.split(key)
    params = init_wdcnn_deconv_params(k_params, in_channels=C_IN, n_classes=N_CLASSES)
    x = jax.random.normal(k_x, (N, C_IN, L), jnp.float32)

    # one-time eval-mode weight folding, done eagerly outside jit
    kp = fold_wdcnn_params(params)

    fwd = jax.jit(wdcnn_deconv_forward)
    out = fwd(kp, x)
    out = jax.block_until_ready(out)

    assert out.shape == (N, N_CLASSES), out.shape
    assert out.dtype == jnp.float32

    ref = reference_forward(params, x)
    err = float(jnp.max(jnp.abs(out - ref)))
    assert err < 2e-2, f"kernel/reference mismatch: max abs err = {err}"

    print("KERNEL_OK")
</pallas_src>

<mosaic_0001>
module attributes {stable_mosaic.version = 11 : i64} {
  func.func @_wdcnn_fused_kernel(%arg0: i32, %arg1: memref<1x131x16xf32, #tpu.memory_space<vmem>>, %arg2: memref<4x16x16xf32, #tpu.memory_space<vmem>>, %arg3: memref<1x16xf32, #tpu.memory_space<vmem>>, %arg4: memref<3x16x32xf32, #tpu.memory_space<vmem>>, %arg5: memref<1x32xf32, #tpu.memory_space<vmem>>, %arg6: memref<3x32x64xf32, #tpu.memory_space<vmem>>, %arg7: memref<1x64xf32, #tpu.memory_space<vmem>>, %arg8: memref<3x64x64xf32, #tpu.memory_space<vmem>>, %arg9: memref<1x64xf32, #tpu.memory_space<vmem>>, %arg10: memref<3x64x64xf32, #tpu.memory_space<vmem>>, %arg11: memref<1x64xf32, #tpu.memory_space<vmem>>, %arg12: memref<3x64x18xf32, #tpu.memory_space<vmem>>, %arg13: memref<1x18xf32, #tpu.memory_space<vmem>>, %arg14: memref<18x10xf32, #tpu.memory_space<vmem>>, %arg15: memref<1x10xf32, #tpu.memory_space<vmem>>, %arg16: memref<1x1x10xf32, #tpu.memory_space<vmem>>) attributes {dimension_semantics = [#tpu.dimension_semantics<parallel>], iteration_bounds = array<i64: 2>, scalar_prefetch = 0 : i64, scratch_operands = 0 : i64, tpu.core_type = #tpu.core_type<tc>, window_params = [{transform_indices = @transform_0, window_bounds = array<i64: 1, 131, 16>}, {pipeline_mode = #tpu.pipeline_mode<synchronous>, transform_indices = @transform_1, window_bounds = array<i64: 4, 16, 16>}, {pipeline_mode = #tpu.pipeline_mode<synchronous>, transform_indices = @transform_2, window_bounds = array<i64: 1, 16>}, {pipeline_mode = #tpu.pipeline_mode<synchronous>, transform_indices = @transform_3, window_bounds = array<i64: 3, 16, 32>}, {pipeline_mode = #tpu.pipeline_mode<synchronous>, transform_indices = @transform_4, window_bounds = array<i64: 1, 32>}, {pipeline_mode = #tpu.pipeline_mode<synchronous>, transform_indices = @transform_5, window_bounds = array<i64: 3, 32, 64>}, {pipeline_mode = #tpu.pipeline_mode<synchronous>, transform_indices = @transform_6, window_bounds = array<i64: 1, 64>}, {pipeline_mode = #tpu.pipeline_mode<synchronous>, transform_indices = @transform_7, window_bounds = array<i64: 3, 64, 64>}, {pipeline_mode = #tpu.pipeline_mode<synchronous>, transform_indices = @transform_8, window_bounds = array<i64: 1, 64>}, {pipeline_mode = #tpu.pipeline_mode<synchronous>, transform_indices = @transform_9, window_bounds = array<i64: 3, 64, 64>}, {pipeline_mode = #tpu.pipeline_mode<synchronous>, transform_indices = @transform_10, window_bounds = array<i64: 1, 64>}, {pipeline_mode = #tpu.pipeline_mode<synchronous>, transform_indices = @transform_11, window_bounds = array<i64: 3, 64, 18>}, {pipeline_mode = #tpu.pipeline_mode<synchronous>, transform_indices = @transform_12, window_bounds = array<i64: 1, 18>}, {pipeline_mode = #tpu.pipeline_mode<synchronous>, transform_indices = @transform_13, window_bounds = array<i64: 18, 10>}, {pipeline_mode = #tpu.pipeline_mode<synchronous>, transform_indices = @transform_14, window_bounds = array<i64: 1, 10>}, {transform_indices = @transform_15, window_bounds = array<i64: 1, 1, 10>}]} {
    %c0 = arith.constant 0 : index
    %c0_0 = arith.constant 0 : index
    %0 = vector.load %arg3[%c0, %c0_0] : memref<1x16xf32, #tpu.memory_space<vmem>>, vector<1x16xf32>
    %c0_1 = arith.constant 0 : index
    %c0_2 = arith.constant 0 : index
    %c0_3 = arith.constant 0 : index
    %1 = vector.load %arg1[%c0_1, %c0_2, %c0_3] : memref<1x131x16xf32, #tpu.memory_space<vmem>>, vector<1x128x16xf32>
    %2 = vector.shape_cast %1 : vector<1x128x16xf32> to vector<128x16xf32>
    %c0_4 = arith.constant 0 : index
    %c0_5 = arith.constant 0 : index
    %c0_6 = arith.constant 0 : index
    %3 = vector.load %arg2[%c0_4, %c0_5, %c0_6] : memref<4x16x16xf32, #tpu.memory_space<vmem>>, vector<1x16x16xf32>
    %4 = vector.shape_cast %3 : vector<1x16x16xf32> to vector<16x16xf32>
    %cst = arith.constant dense<0.000000e+00> : vector<128x16xf32>
    %5 = tpu.matmul %2, %4, %cst {dimension_numbers = #tpu.dot_dimension_numbers<[1], [0], [0], [1], [0, 0, 1, 1], [], []>} : vector<128x16xf32>, vector<16x16xf32>, vector<128x16xf32> -> vector<128x16xf32>
    %6 = vector.broadcast %0 : vector<1x16xf32> to vector<128x16xf32>
    %7 = arith.addf %6, %5 : vector<128x16xf32>
    %c0_7 = arith.constant 0 : index
    %c1 = arith.constant 1 : index
    %c0_8 = arith.constant 0 : index
    %8 = vector.load %arg1[%c0_7, %c1, %c0_8] : memref<1x131x16xf32, #tpu.memory_space<vmem>>, vector<1x128x16xf32>
    %9 = vector.shape_cast %8 : vector<1x128x16xf32> to vector<128x16xf32>
    %c1_9 = arith.constant 1 : index
    %c0_10 = arith.constant 0 : index
    %c0_11 = arith.constant 0 : index
    %10 = vector.load %arg2[%c1_9, %c0_10, %c0_11] : memref<4x16x16xf32, #tpu.memory_space<vmem>>, vector<1x16x16xf32>
    %11 = vector.shape_cast %10 : vector<1x16x16xf32> to vector<16x16xf32>
    %cst_12 = arith.constant dense<0.000000e+00> : vector<128x16xf32>
    %12 = tpu.matmul %9, %11, %cst_12 {dimension_numbers = #tpu.dot_dimension_numbers<[1], [0], [0], [1], [0, 0, 1, 1], [], []>} : vector<128x16xf32>, vector<16x16xf32>, vector<128x16xf32> -> vector<128x16xf32>
    %13 = arith.addf %7, %12 : vector<128x16xf32>
    %c0_13 = arith.constant 0 : index
    %c2 = arith.constant 2 : index
    %c0_14 = arith.constant 0 : index
    %14 = vector.load %arg1[%c0_13, %c2, %c0_14] : memref<1x131x16xf32, #tpu.memory_space<vmem>>, vector<1x128x16xf32>
    %15 = vector.shape_cast %14 : vector<1x128x16xf32> to vector<128x16xf32>
    %c2_15 = arith.constant 2 : index
    %c0_16 = arith.constant 0 : index
    %c0_17 = arith.constant 0 : index
    %16 = vector.load %arg2[%c2_15, %c0_16, %c0_17] : memref<4x16x16xf32, #tpu.memory_space<vmem>>, vector<1x16x16xf32>
    %17 = vector.shape_cast %16 : vector<1x16x16xf32> to vector<16x16xf32>
    %cst_18 = arith.constant dense<0.000000e+00> : vector<128x16xf32>
    %18 = tpu.matmul %15, %17, %cst_18 {dimension_numbers = #tpu.dot_dimension_numbers<[1], [0], [0], [1], [0, 0, 1, 1], [], []>} : vector<128x16xf32>, vector<16x16xf32>, vector<128x16xf32> -> vector<128x16xf32>
    %19 = arith.addf %13, %18 : vector<128x16xf32>
    %c0_19 = arith.constant 0 : index
    %c3 = arith.constant 3 : index
    %c0_20 = arith.constant 0 : index
    %20 = vector.load %arg1[%c0_19, %c3, %c0_20] : memref<1x131x16xf32, #tpu.memory_space<vmem>>, vector<1x128x16xf32>
    %21 = vector.shape_cast %20 : vector<1x128x16xf32> to vector<128x16xf32>
    %c3_21 = arith.constant 3 : index
    %c0_22 = arith.constant 0 : index
    %c0_23 = arith.constant 0 : index
    %22 = vector.load %arg2[%c3_21, %c0_22, %c0_23] : memref<4x16x16xf32, #tpu.memory_space<vmem>>, vector<1x16x16xf32>
    %23 = vector.shape_cast %22 : vector<1x16x16xf32> to vector<16x16xf32>
    %cst_24 = arith.constant dense<0.000000e+00> : vector<128x16xf32>
    %24 = tpu.matmul %21, %23, %cst_24 {dimension_numbers = #tpu.dot_dimension_numbers<[1], [0], [0], [1], [0, 0, 1, 1], [], []>} : vector<128x16xf32>, vector<16x16xf32>, vector<128x16xf32> -> vector<128x16xf32>
    %25 = arith.addf %19, %24 : vector<128x16xf32>
    %26 = tpu.iota {dimensions = array<i32: 0>} : vector<64x128xi32>
    %27 = tpu.iota {dimensions = array<i32: 1>} : vector<64x128xi32>
    %c2_i32 = arith.constant 2 : i32
    %28 = vector.broadcast %c2_i32 : i32 to vector<64x128xi32>
    %29 = arith.muli %28, %26 : vector<64x128xi32>
    %30 = arith.cmpi eq, %27, %29 : vector<64x128xi32>
    %31 = arith.extui %30 : vector<64x128xi1> to vector<64x128xi32>
    %32 = arith.sitofp %31 : vector<64x128xi32> to vector<64x128xf32>
    %cst_25 = arith.constant dense<0.000000e+00> : vector<64x16xf32>
    %33 = tpu.matmul %32, %25, %cst_25 {dimension_numbers = #tpu.dot_dimension_numbers<[1], [0], [0], [1], [0, 0, 1, 1], [], []>} : vector<64x128xf32>, vector<128x16xf32>, vector<64x16xf32> -> vector<64x16xf32>
    %c2_i32_26 = arith.constant 2 : i32
    %34 = vector.broadcast %c2_i32_26 : i32 to vector<64x128xi32>
    %35 = arith.muli %34, %26 : vector<64x128xi32>
    %c1_i32 = arith.constant 1 : i32
    %36 = vector.broadcast %c1_i32 : i32 to vector<64x128xi32>
    %37 = arith.addi %35, %36 : vector<64x128xi32>
    %38 = arith.cmpi eq, %27, %37 : vector<64x128xi32>
    %39 = arith.extui %38 : vector<64x128xi1> to vector<64x128xi32>
    %40 = arith.sitofp %39 : vector<64x128xi32> to vector<64x128xf32>
    %cst_27 = arith.constant dense<0.000000e+00> : vector<64x16xf32>
    %41 = tpu.matmul %40, %25, %cst_27 {dimension_numbers = #tpu.dot_dimension_numbers<[1], [0], [0], [1], [0, 0, 1, 1], [], []>} : vector<64x128xf32>, vector<128x16xf32>, vector<64x16xf32> -> vector<64x16xf32>
    %42 = arith.maximumf %33, %41 : vector<64x16xf32>
    %cst_28 = arith.constant 0.000000e+00 : f32
    %43 = vector.broadcast %cst_28 : f32 to vector<64x16xf32>
    %44 = arith.maximumf %42, %43 : vector<64x16xf32>
    %45 = tpu.iota {dimensions = array<i32: 1>} : vector<64x64xi32>
    %46 = tpu.iota {dimensions = array<i32: 0>} : vector<64x64xi32>
    %c-1_i32 = arith.constant -1 : i32
    %47 = vector.broadcast %c-1_i32 : i32 to vector<64x64xi32>
    %48 = arith.addi %46, %47 : vector<64x64xi32>
    %49 = arith.cmpi eq, %45, %48 : vector<64x64xi32>
    %50 = arith.extui %49 : vector<64x64xi1> to vector<64x64xi32>
    %51 = arith.sitofp %50 : vector<64x64xi32> to vector<64x64xf32>
    %cst_29 = arith.constant dense<0.000000e+00> : vector<64x16xf32>
    %52 = tpu.matmul %51, %44, %cst_29 {dimension_numbers = #tpu.dot_dimension_numbers<[1], [0], [0], [1], [0, 0, 1, 1], [], []>} : vector<64x64xf32>, vector<64x16xf32>, vector<64x16xf32> -> vector<64x16xf32>
    %53 = tpu.iota {dimensions = array<i32: 1>} : vector<64x64xi32>
    %54 = tpu.iota {dimensions = array<i32: 0>} : vector<64x64xi32>
    %c1_i32_30 = arith.constant 1 : i32
    %55 = vector.broadcast %c1_i32_30 : i32 to vector<64x64xi32>
    %56 = arith.addi %54, %55 : vector<64x64xi32>
    %57 = arith.cmpi eq, %53, %56 : vector<64x64xi32>
    %58 = arith.extui %57 : vector<64x64xi1> to vector<64x64xi32>
    %59 = arith.sitofp %58 : vector<64x64xi32> to vector<64x64xf32>
    %cst_31 = arith.constant dense<0.000000e+00> : vector<64x16xf32>
    %60 = tpu.matmul %59, %44, %cst_31 {dimension_numbers = #tpu.dot_dimension_numbers<[1], [0], [0], [1], [0, 0, 1, 1], [], []>} : vector<64x64xf32>, vector<64x16xf32>, vector<64x16xf32> -> vector<64x16xf32>
    %c0_32 = arith.constant 0 : index
    %c0_33 = arith.constant 0 : index
    %61 = vector.load %arg5[%c0_32, %c0_33] : memref<1x32xf32, #tpu.memory_space<vmem>>, vector<1x32xf32>
    %c0_34 = arith.constant 0 : index
    %c0_35 = arith.constant 0 : index
    %c0_36 = arith.constant 0 : index
    %62 = vector.load %arg4[%c0_34, %c0_35, %c0_36] : memref<3x16x32xf32, #tpu.memory_space<vmem>>, vector<1x16x32xf32>
    %63 = vector.shape_cast %62 : vector<1x16x32xf32> to vector<16x32xf32>
    %cst_37 = arith.constant dense<0.000000e+00> : vector<64x32xf32>
    %64 = tpu.matmul %52, %63, %cst_37 {dimension_numbers = #tpu.dot_dimension_numbers<[1], [0], [0], [1], [0, 0, 1, 1], [], []>} : vector<64x16xf32>, vector<16x32xf32>, vector<64x32xf32> -> vector<64x32xf32>
    %65 = vector.broadcast %61 : vector<1x32xf32> to vector<64x32xf32>
    %66 = arith.addf %65, %64 : vector<64x32xf32>
    %c1_38 = arith.constant 1 : index
    %c0_39 = arith.constant 0 : index
    %c0_40 = arith.constant 0 : index
    %67 = vector.load %arg4[%c1_38, %c0_39, %c0_40] : memref<3x16x32xf32, #tpu.memory_space<vmem>>, vector<1x16x32xf32>
    %68 = vector.shape_cast %67 : vector<1x16x32xf32> to vector<16x32xf32>
    %cst_41 = arith.constant dense<0.000000e+00> : vector<64x32xf32>
    %69 = tpu.matmul %44, %68, %cst_41 {dimension_numbers = #tpu.dot_dimension_numbers<[1], [0], [0], [1], [0, 0, 1, 1], [], []>} : vector<64x16xf32>, vector<16x32xf32>, vector<64x32xf32> -> vector<64x32xf32>
    %70 = arith.addf %66, %69 : vector<64x32xf32>
    %c2_42 = arith.constant 2 : index
    %c0_43 = arith.constant 0 : index
    %c0_44 = arith.constant 0 : index
    %71 = vector.load %arg4[%c2_42, %c0_43, %c0_44] : memref<3x16x32xf32, #tpu.memory_space<vmem>>, vector<1x16x32xf32>
    %72 = vector.shape_cast %71 : vector<1x16x32xf32> to vector<16x32xf32>
    %cst_45 = arith.constant dense<0.000000e+00> : vector<64x32xf32>
    %73 = tpu.matmul %60, %72, %cst_45 {dimension_numbers = #tpu.dot_dimension_numbers<[1], [0], [0], [1], [0, 0, 1, 1], [], []>} : vector<64x16xf32>, vector<16x32xf32>, vector<64x32xf32> -> vector<64x32xf32>
    %74 = arith.addf %70, %73 : vector<64x32xf32>
    %75 = tpu.iota {dimensions = array<i32: 0>} : vector<32x64xi32>
    %76 = tpu.iota {dimensions = array<i32: 1>} : vector<32x64xi32>
    %c2_i32_46 = arith.constant 2 : i32
    %77 = vector.broadcast %c2_i32_46 : i32 to vector<32x64xi32>
    %78 = arith.muli %77, %75 : vector<32x64xi32>
    %79 = arith.cmpi eq, %76, %78 : vector<32x64xi32>
    %80 = arith.extui %79 : vector<32x64xi1> to vector<32x64xi32>
    %81 = arith.sitofp %80 : vector<32x64xi32> to vector<32x64xf32>
    %cst_47 = arith.constant dense<0.000000e+00> : vector<32x32xf32>
    %82 = tpu.matmul %81, %74, %cst_47 {dimension_numbers = #tpu.dot_dimension_numbers<[1], [0], [0], [1], [0, 0, 1, 1], [], []>} : vector<32x64xf32>, vector<64x32xf32>, vector<32x32xf32> -> vector<32x32xf32>
    %c2_i32_48 = arith.constant 2 : i32
    %83 = vector.broadcast %c2_i32_48 : i32 to vector<32x64xi32>
    %84 = arith.muli %83, %75 : vector<32x64xi32>
    %c1_i32_49 = arith.constant 1 : i32
    %85 = vector.broadcast %c1_i32_49 : i32 to vector<32x64xi32>
    %86 = arith.addi %84, %85 : vector<32x64xi32>
    %87 = arith.cmpi eq, %76, %86 : vector<32x64xi32>
    %88 = arith.extui %87 : vector<32x64xi1> to vector<32x64xi32>
    %89 = arith.sitofp %88 : vector<32x64xi32> to vector<32x64xf32>
    %cst_50 = arith.constant dense<0.000000e+00> : vector<32x32xf32>
    %90 = tpu.matmul %89, %74, %cst_50 {dimension_numbers = #tpu.dot_dimension_numbers<[1], [0], [0], [1], [0, 0, 1, 1], [], []>} : vector<32x64xf32>, vector<64x32xf32>, vector<32x32xf32> -> vector<32x32xf32>
    %91 = arith.maximumf %82, %90 : vector<32x32xf32>
    %cst_51 = arith.constant 0.000000e+00 : f32
    %92 = vector.broadcast %cst_51 : f32 to vector<32x32xf32>
    %93 = arith.maximumf %91, %92 : vector<32x32xf32>
    %94 = tpu.iota {dimensions = array<i32: 1>} : vector<32x32xi32>
    %95 = tpu.iota {dimensions = array<i32: 0>} : vector<32x32xi32>
    %c-1_i32_52 = arith.constant -1 : i32
    %96 = vector.broadcast %c-1_i32_52 : i32 to vector<32x32xi32>
    %97 = arith.addi %95, %96 : vector<32x32xi32>
    %98 = arith.cmpi eq, %94, %97 : vector<32x32xi32>
    %99 = arith.extui %98 : vector<32x32xi1> to vector<32x32xi32>
    %100 = arith.sitofp %99 : vector<32x32xi32> to vector<32x32xf32>
    %cst_53 = arith.constant dense<0.000000e+00> : vector<32x32xf32>
    %101 = tpu.matmul %100, %93, %cst_53 {dimension_numbers = #tpu.dot_dimension_numbers<[1], [0], [0], [1], [0, 0, 1, 1], [], []>} : vector<32x32xf32>, vector<32x32xf32>, vector<32x32xf32> -> vector<32x32xf32>
    %102 = tpu.iota {dimensions = array<i32: 1>} : vector<32x32xi32>
    %103 = tpu.iota {dimensions = array<i32: 0>} : vector<32x32xi32>
    %c1_i32_54 = arith.constant 1 : i32
    %104 = vector.broadcast %c1_i32_54 : i32 to vector<32x32xi32>
    %105 = arith.addi %103, %104 : vector<32x32xi32>
    %106 = arith.cmpi eq, %102, %105 : vector<32x32xi32>
    %107 = arith.extui %106 : vector<32x32xi1> to vector<32x32xi32>
    %108 = arith.sitofp %107 : vector<32x32xi32> to vector<32x32xf32>
    %cst_55 = arith.constant dense<0.000000e+00> : vector<32x32xf32>
    %109 = tpu.matmul %108, %93, %cst_55 {dimension_numbers = #tpu.dot_dimension_numbers<[1], [0], [0], [1], [0, 0, 1, 1], [], []>} : vector<32x32xf32>, vector<32x32xf32>, vector<32x32xf32> -> vector<32x32xf32>
    %c0_56 = arith.constant 0 : index
    %c0_57 = arith.constant 0 : index
    %110 = vector.load %arg7[%c0_56, %c0_57] : memref<1x64xf32, #tpu.memory_space<vmem>>, vector<1x64xf32>
    %c0_58 = arith.constant 0 : index
    %c0_59 = arith.constant 0 : index
    %c0_60 = arith.constant 0 : index
    %111 = vector.load %arg6[%c0_58, %c0_59, %c0_60] : memref<3x32x64xf32, #tpu.memory_space<vmem>>, vector<1x32x64xf32>
    %112 = vector.shape_cast %111 : vector<1x32x64xf32> to vector<32x64xf32>
    %cst_61 = arith.constant dense<0.000000e+00> : vector<32x64xf32>
    %113 = tpu.matmul %101, %112, %cst_61 {dimension_numbers = #tpu.dot_dimension_numbers<[1], [0], [0], [1], [0, 0, 1, 1], [], []>} : vector<32x32xf32>, vector<32x64xf32>, vector<32x64xf32> -> vector<32x64xf32>
    %114 = vector.broadcast %110 : vector<1x64xf32> to vector<32x64xf32>
    %115 = arith.addf %114, %113 : vector<32x64xf32>
    %c1_62 = arith.constant 1 : index
    %c0_63 = arith.constant 0 : index
    %c0_64 = arith.constant 0 : index
    %116 = vector.load %arg6[%c1_62, %c0_63, %c0_64] : memref<3x32x64xf32, #tpu.memory_space<vmem>>, vector<1x32x64xf32>
    %117 = vector.shape_cast %116 : vector<1x32x64xf32> to vector<32x64xf32>
    %cst_65 = arith.constant dense<0.000000e+00> : vector<32x64xf32>
    %118 = tpu.matmul %93, %117, %cst_65 {dimension_numbers = #tpu.dot_dimension_numbers<[1], [0], [0], [1], [0, 0, 1, 1], [], []>} : vector<32x32xf32>, vector<32x64xf32>, vector<32x64xf32> -> vector<32x64xf32>
    %119 = arith.addf %115, %118 : vector<32x64xf32>
    %c2_66 = arith.constant 2 : index
    %c0_67 = arith.constant 0 : index
    %c0_68 = arith.constant 0 : index
    %120 = vector.load %arg6[%c2_66, %c0_67, %c0_68] : memref<3x32x64xf32, #tpu.memory_space<vmem>>, vector<1x32x64xf32>
    %121 = vector.shape_cast %120 : vector<1x32x64xf32> to vector<32x64xf32>
    %cst_69 = arith.constant dense<0.000000e+00> : vector<32x64xf32>
    %122 = tpu.matmul %109, %121, %cst_69 {dimension_numbers = #tpu.dot_dimension_numbers<[1], [0], [0], [1], [0, 0, 1, 1], [], []>} : vector<32x32xf32>, vector<32x64xf32>, vector<32x64xf32> -> vector<32x64xf32>
    %123 = arith.addf %119, %122 : vector<32x64xf32>
    %124 = tpu.iota {dimensions = array<i32: 0>} : vector<16x32xi32>
    %125 = tpu.iota {dimensions = array<i32: 1>} : vector<16x32xi32>
    %c2_i32_70 = arith.constant 2 : i32
    %126 = vector.broadcast %c2_i32_70 : i32 to vector<16x32xi32>
    %127 = arith.muli %126, %124 : vector<16x32xi32>
    %128 = arith.cmpi eq, %125, %127 : vector<16x32xi32>
    %129 = arith.extui %128 : vector<16x32xi1> to vector<16x32xi32>
    %130 = arith.sitofp %129 : vector<16x32xi32> to vector<16x32xf32>
    %cst_71 = arith.constant dense<0.000000e+00> : vector<16x64xf32>
    %131 = tpu.matmul %130, %123, %cst_71 {dimension_numbers = #tpu.dot_dimension_numbers<[1], [0], [0], [1], [0, 0, 1, 1], [], []>} : vector<16x32xf32>, vector<32x64xf32>, vector<16x64xf32> -> vector<16x64xf32>
    %c2_i32_72 = arith.constant 2 : i32
    %132 = vector.broadcast %c2_i32_72 : i32 to vector<16x32xi32>
    %133 = arith.muli %132, %124 : vector<16x32xi32>
    %c1_i32_73 = arith.constant 1 : i32
    %134 = vector.broadcast %c1_i32_73 : i32 to vector<16x32xi32>
    %135 = arith.addi %133, %134 : vector<16x32xi32>
    %136 = arith.cmpi eq, %125, %135 : vector<16x32xi32>
    %137 = arith.extui %136 : vector<16x32xi1> to vector<16x32xi32>
    %138 = arith.sitofp %137 : vector<16x32xi32> to vector<16x32xf32>
    %cst_74 = arith.constant dense<0.000000e+00> : vector<16x64xf32>
    %139 = tpu.matmul %138, %123, %cst_74 {dimension_numbers = #tpu.dot_dimension_numbers<[1], [0], [0], [1], [0, 0, 1, 1], [], []>} : vector<16x32xf32>, vector<32x64xf32>, vector<16x64xf32> -> vector<16x64xf32>
    %140 = arith.maximumf %131, %139 : vector<16x64xf32>
    %cst_75 = arith.constant 0.000000e+00 : f32
    %141 = vector.broadcast %cst_75 : f32 to vector<16x64xf32>
    %142 = arith.maximumf %140, %141 : vector<16x64xf32>
    %143 = tpu.iota {dimensions = array<i32: 1>} : vector<16x16xi32>
    %144 = tpu.iota {dimensions = array<i32: 0>} : vector<16x16xi32>
    %c-1_i32_76 = arith.constant -1 : i32
    %145 = vector.broadcast %c-1_i32_76 : i32 to vector<16x16xi32>
    %146 = arith.addi %144, %145 : vector<16x16xi32>
    %147 = arith.cmpi eq, %143, %146 : vector<16x16xi32>
    %148 = arith.extui %147 : vector<16x16xi1> to vector<16x16xi32>
    %149 = arith.sitofp %148 : vector<16x16xi32> to vector<16x16xf32>
    %cst_77 = arith.constant dense<0.000000e+00> : vector<16x64xf32>
    %150 = tpu.matmul %149, %142, %cst_77 {dimension_numbers = #tpu.dot_dimension_numbers<[1], [0], [0], [1], [0, 0, 1, 1], [], []>} : vector<16x16xf32>, vector<16x64xf32>, vector<16x64xf32> -> vector<16x64xf32>
    %151 = tpu.iota {dimensions = array<i32: 1>} : vector<16x16xi32>
    %152 = tpu.iota {dimensions = array<i32: 0>} : vector<16x16xi32>
    %c1_i32_78 = arith.constant 1 : i32
    %153 = vector.broadcast %c1_i32_78 : i32 to vector<16x16xi32>
    %154 = arith.addi %152, %153 : vector<16x16xi32>
    %155 = arith.cmpi eq, %151, %154 : vector<16x16xi32>
    %156 = arith.extui %155 : vector<16x16xi1> to vector<16x16xi32>
    %157 = arith.sitofp %156 : vector<16x16xi32> to vector<16x16xf32>
    %cst_79 = arith.constant dense<0.000000e+00> : vector<16x64xf32>
    %158 = tpu.matmul %157, %142, %cst_79 {dimension_numbers = #tpu.dot_dimension_numbers<[1], [0], [0], [1], [0, 0, 1, 1], [], []>} : vector<16x16xf32>, vector<16x64xf32>, vector<16x64xf32> -> vector<16x64xf32>
    %c0_80 = arith.constant 0 : index
    %c0_81 = arith.constant 0 : index
    %159 = vector.load %arg9[%c0_80, %c0_81] : memref<1x64xf32, #tpu.memory_space<vmem>>, vector<1x64xf32>
    %c0_82 = arith.constant 0 : index
    %c0_83 = arith.constant 0 : index
    %c0_84 = arith.constant 0 : index
    %160 = vector.load %arg8[%c0_82, %c0_83, %c0_84] : memref<3x64x64xf32, #tpu.memory_space<vmem>>, vector<1x64x64xf32>
    %161 = vector.shape_cast %160 : vector<1x64x64xf32> to vector<64x64xf32>
    %cst_85 = arith.constant dense<0.000000e+00> : vector<16x64xf32>
    %162 = tpu.matmul %150, %161, %cst_85 {dimension_numbers = #tpu.dot_dimension_numbers<[1], [0], [0], [1], [0, 0, 1, 1], [], []>} : vector<16x64xf32>, vector<64x64xf32>, vector<16x64xf32> -> vector<16x64xf32>
    %163 = vector.broadcast %159 : vector<1x64xf32> to vector<16x64xf32>
    %164 = arith.addf %163, %162 : vector<16x64xf32>
    %c1_86 = arith.constant 1 : index
    %c0_87 = arith.constant 0 : index
    %c0_88 = arith.constant 0 : index
    %165 = vector.load %arg8[%c1_86, %c0_87, %c0_88] : memref<3x64x64xf32, #tpu.memory_space<vmem>>, vector<1x64x64xf32>
    %166 = vector.shape_cast %165 : vector<1x64x64xf32> to vector<64x64xf32>
    %cst_89 = arith.constant dense<0.000000e+00> : vector<16x64xf32>
    %167 = tpu.matmul %142, %166, %cst_89 {dimension_numbers = #tpu.dot_dimension_numbers<[1], [0], [0], [1], [0, 0, 1, 1], [], []>} : vector<16x64xf32>, vector<64x64xf32>, vector<16x64xf32> -> vector<16x64xf32>
    %168 = arith.addf %164, %167 : vector<16x64xf32>
    %c2_90 = arith.constant 2 : index
    %c0_91 = arith.constant 0 : index
    %c0_92 = arith.constant 0 : index
    %169 = vector.load %arg8[%c2_90, %c0_91, %c0_92] : memref<3x64x64xf32, #tpu.memory_space<vmem>>, vector<1x64x64xf32>
    %170 = vector.shape_cast %169 : vector<1x64x64xf32> to vector<64x64xf32>
    %cst_93 = arith.constant dense<0.000000e+00> : vector<16x64xf32>
    %171 = tpu.matmul %158, %170, %cst_93 {dimension_numbers = #tpu.dot_dimension_numbers<[1], [0], [0], [1], [0, 0, 1, 1], [], []>} : vector<16x64xf32>, vector<64x64xf32>, vector<16x64xf32> -> vector<16x64xf32>
    %172 = arith.addf %168, %171 : vector<16x64xf32>
    %173 = tpu.iota {dimensions = array<i32: 0>} : vector<8x16xi32>
    %174 = tpu.iota {dimensions = array<i32: 1>} : vector<8x16xi32>
    %c2_i32_94 = arith.constant 2 : i32
    %175 = vector.broadcast %c2_i32_94 : i32 to vector<8x16xi32>
    %176 = arith.muli %175, %173 : vector<8x16xi32>
    %177 = arith.cmpi eq, %174, %176 : vector<8x16xi32>
    %178 = arith.extui %177 : vector<8x16xi1> to vector<8x16xi32>
    %179 = arith.sitofp %178 : vector<8x16xi32> to vector<8x16xf32>
    %cst_95 = arith.constant dense<0.000000e+00> : vector<8x64xf32>
    %180 = tpu.matmul %179, %172, %cst_95 {dimension_numbers = #tpu.dot_dimension_numbers<[1], [0], [0], [1], [0, 0, 1, 1], [], []>} : vector<8x16xf32>, vector<16x64xf32>, vector<8x64xf32> -> vector<8x64xf32>
    %c2_i32_96 = arith.constant 2 : i32
    %181 = vector.broadcast %c2_i32_96 : i32 to vector<8x16xi32>
    %182 = arith.muli %181, %173 : vector<8x16xi32>
    %c1_i32_97 = arith.constant 1 : i32
    %183 = vector.broadcast %c1_i32_97 : i32 to vector<8x16xi32>
    %184 = arith.addi %182, %183 : vector<8x16xi32>
    %185 = arith.cmpi eq, %174, %184 : vector<8x16xi32>
    %186 = arith.extui %185 : vector<8x16xi1> to vector<8x16xi32>
    %187 = arith.sitofp %186 : vector<8x16xi32> to vector<8x16xf32>
    %cst_98 = arith.constant dense<0.000000e+00> : vector<8x64xf32>
    %188 = tpu.matmul %187, %172, %cst_98 {dimension_numbers = #tpu.dot_dimension_numbers<[1], [0], [0], [1], [0, 0, 1, 1], [], []>} : vector<8x16xf32>, vector<16x64xf32>, vector<8x64xf32> -> vector<8x64xf32>
    %189 = arith.maximumf %180, %188 : vector<8x64xf32>
    %cst_99 = arith.constant 0.000000e+00 : f32
    %190 = vector.broadcast %cst_99 : f32 to vector<8x64xf32>
    %191 = arith.maximumf %189, %190 : vector<8x64xf32>
    %192 = tpu.iota {dimensions = array<i32: 1>} : vector<8x8xi32>
    %193 = tpu.iota {dimensions = array<i32: 0>} : vector<8x8xi32>
    %c1_i32_100 = arith.constant 1 : i32
    %194 = vector.broadcast %c1_i32_100 : i32 to vector<8x8xi32>
    %195 = arith.addi %193, %194 : vector<8x8xi32>
    %196 = arith.cmpi eq, %192, %195 : vector<8x8xi32>
    %197 = arith.extui %196 : vector<8x8xi1> to vector<8x8xi32>
    %198 = arith.sitofp %197 : vector<8x8xi32> to vector<8x8xf32>
    %cst_101 = arith.constant dense<0.000000e+00> : vector<8x64xf32>
    %199 = tpu.matmul %198, %191, %cst_101 {dimension_numbers = #tpu.dot_dimension_numbers<[1], [0], [0], [1], [0, 0, 1, 1], [], []>} : vector<8x8xf32>, vector<8x64xf32>, vector<8x64xf32> -> vector<8x64xf32>
    %200 = tpu.iota {dimensions = array<i32: 1>} : vector<8x8xi32>
    %201 = tpu.iota {dimensions = array<i32: 0>} : vector<8x8xi32>
    %c2_i32_102 = arith.constant 2 : i32
    %202 = vector.broadcast %c2_i32_102 : i32 to vector<8x8xi32>
    %203 = arith.addi %201, %202 : vector<8x8xi32>
    %204 = arith.cmpi eq, %200, %203 : vector<8x8xi32>
    %205 = arith.extui %204 : vector<8x8xi1> to vector<8x8xi32>
    %206 = arith.sitofp %205 : vector<8x8xi32> to vector<8x8xf32>
    %cst_103 = arith.constant dense<0.000000e+00> : vector<8x64xf32>
    %207 = tpu.matmul %206, %191, %cst_103 {dimension_numbers = #tpu.dot_dimension_numbers<[1], [0], [0], [1], [0, 0, 1, 1], [], []>} : vector<8x8xf32>, vector<8x64xf32>, vector<8x64xf32> -> vector<8x64xf32>
    %c0_104 = arith.constant 0 : index
    %c0_105 = arith.constant 0 : index
    %208 = vector.load %arg11[%c0_104, %c0_105] : memref<1x64xf32, #tpu.memory_space<vmem>>, vector<1x64xf32>
    %c0_106 = arith.constant 0 : index
    %c0_107 = arith.constant 0 : index
    %c0_108 = arith.constant 0 : index
    %209 = vector.load %arg10[%c0_106, %c0_107, %c0_108] : memref<3x64x64xf32, #tpu.memory_space<vmem>>, vector<1x64x64xf32>
    %210 = vector.shape_cast %209 : vector<1x64x64xf32> to vector<64x64xf32>
    %cst_109 = arith.constant dense<0.000000e+00> : vector<8x64xf32>
    %211 = tpu.matmul %191, %210, %cst_109 {dimension_numbers = #tpu.dot_dimension_numbers<[1], [0], [0], [1], [0, 0, 1, 1], [], []>} : vector<8x64xf32>, vector<64x64xf32>, vector<8x64xf32> -> vector<8x64xf32>
    %212 = vector.broadcast %208 : vector<1x64xf32> to vector<8x64xf32>
    %213 = arith.addf %212, %211 : vector<8x64xf32>
    %c1_110 = arith.constant 1 : index
    %c0_111 = arith.constant 0 : index
    %c0_112 = arith.constant 0 : index
    %214 = vector.load %arg10[%c1_110, %c0_111, %c0_112] : memref<3x64x64xf32, #tpu.memory_space<vmem>>, vector<1x64x64xf32>
    %215 = vector.shape_cast %214 : vector<1x64x64xf32> to vector<64x64xf32>
    %cst_113 = arith.constant dense<0.000000e+00> : vector<8x64xf32>
    %216 = tpu.matmul %199, %215, %cst_113 {dimension_numbers = #tpu.dot_dimension_numbers<[1], [0], [0], [1], [0, 0, 1, 1], [], []>} : vector<8x64xf32>, vector<64x64xf32>, vector<8x64xf32> -> vector<8x64xf32>
    %217 = arith.addf %213, %216 : vector<8x64xf32>
    %c2_114 = arith.constant 2 : index
    %c0_115 = arith.constant 0 : index
    %c0_116 = arith.constant 0 : index
    %218 = vector.load %arg10[%c2_114, %c0_115, %c0_116] : memref<3x64x64xf32, #tpu.memory_space<vmem>>, vector<1x64x64xf32>
    %219 = vector.shape_cast %218 : vector<1x64x64xf32> to vector<64x64xf32>
    %cst_117 = arith.constant dense<0.000000e+00> : vector<8x64xf32>
    %220 = tpu.matmul %207, %219, %cst_117 {dimension_numbers = #tpu.dot_dimension_numbers<[1], [0], [0], [1], [0, 0, 1, 1], [], []>} : vector<8x64xf32>, vector<64x64xf32>, vector<8x64xf32> -> vector<8x64xf32>
    %221 = arith.addf %217, %220 : vector<8x64xf32>
    %222 = tpu.iota {dimensions = array<i32: 0>} : vector<3x8xi32>
    %223 = tpu.iota {dimensions = array<i32: 1>} : vector<3x8xi32>
    %c2_i32_118 = arith.constant 2 : i32
    %224 = vector.broadcast %c2_i32_118 : i32 to vector<3x8xi32>
    %225 = arith.muli %224, %222 : vector<3x8xi32>
    %226 = arith.cmpi eq, %223, %225 : vector<3x8xi32>
    %227 = arith.extui %226 : vector<3x8xi1> to vector<3x8xi32>
    %228 = arith.sitofp %227 : vector<3x8xi32> to vector<3x8xf32>
    %cst_119 = arith.constant dense<0.000000e+00> : vector<3x64xf32>
    %229 = tpu.matmul %228, %221, %cst_119 {dimension_numbers = #tpu.dot_dimension_numbers<[1], [0], [0], [1], [0, 0, 1, 1], [], []>} : vector<3x8xf32>, vector<8x64xf32>, vector<3x64xf32> -> vector<3x64xf32>
    %c2_i32_120 = arith.constant 2 : i32
    %230 = vector.broadcast %c2_i32_120 : i32 to vector<3x8xi32>
    %231 = arith.muli %230, %222 : vector<3x8xi32>
    %c1_i32_121 = arith.constant 1 : i32
    %232 = vector.broadcast %c1_i32_121 : i32 to vector<3x8xi32>
    %233 = arith.addi %231, %232 : vector<3x8xi32>
    %234 = arith.cmpi eq, %223, %233 : vector<3x8xi32>
    %235 = arith.extui %234 : vector<3x8xi1> to vector<3x8xi32>
    %236 = arith.sitofp %235 : vector<3x8xi32> to vector<3x8xf32>
    %cst_122 = arith.constant dense<0.000000e+00> : vector<3x64xf32>
    %237 = tpu.matmul %236, %221, %cst_122 {dimension_numbers = #tpu.dot_dimension_numbers<[1], [0], [0], [1], [0, 0, 1, 1], [], []>} : vector<3x8xf32>, vector<8x64xf32>, vector<3x64xf32> -> vector<3x64xf32>
    %238 = arith.maximumf %229, %237 : vector<3x64xf32>
    %cst_123 = arith.constant 0.000000e+00 : f32
    %239 = vector.broadcast %cst_123 : f32 to vector<3x64xf32>
    %240 = arith.maximumf %238, %239 : vector<3x64xf32>
    %c0_124 = arith.constant 0 : index
    %c0_125 = arith.constant 0 : index
    %241 = vector.load %arg13[%c0_124, %c0_125] : memref<1x18xf32, #tpu.memory_space<vmem>>, vector<1x18xf32>
    %242 = vector.extract_strided_slice %240 {offsets = [0, 0], sizes = [1, 64], strides = [1, 1]} : vector<3x64xf32> to vector<1x64xf32>
    %c0_126 = arith.constant 0 : index
    %c0_127 = arith.constant 0 : index
    %c0_128 = arith.constant 0 : index
    %243 = vector.load %arg12[%c0_126, %c0_127, %c0_128] : memref<3x64x18xf32, #tpu.memory_space<vmem>>, vector<1x64x18xf32>
    %244 = vector.shape_cast %243 : vector<1x64x18xf32> to vector<64x18xf32>
    %cst_129 = arith.constant dense<0.000000e+00> : vector<1x18xf32>
    %245 = tpu.matmul %242, %244, %cst_129 {dimension_numbers = #tpu.dot_dimension_numbers<[1], [0], [0], [1], [0, 0, 1, 1], [], []>} : vector<1x64xf32>, vector<64x18xf32>, vector<1x18xf32> -> vector<1x18xf32>
    %246 = arith.addf %241, %245 : vector<1x18xf32>
    %247 = vector.extract_strided_slice %240 {offsets = [1, 0], sizes = [1, 64], strides = [1, 1]} : vector<3x64xf32> to vector<1x64xf32>
    %c1_130 = arith.constant 1 : index
    %c0_131 = arith.constant 0 : index
    %c0_132 = arith.constant 0 : index
    %248 = vector.load %arg12[%c1_130, %c0_131, %c0_132] : memref<3x64x18xf32, #tpu.memory_space<vmem>>, vector<1x64x18xf32>
    %249 = vector.shape_cast %248 : vector<1x64x18xf32> to vector<64x18xf32>
    %cst_133 = arith.constant dense<0.000000e+00> : vector<1x18xf32>
    %250 = tpu.matmul %247, %249, %cst_133 {dimension_numbers = #tpu.dot_dimension_numbers<[1], [0], [0], [1], [0, 0, 1, 1], [], []>} : vector<1x64xf32>, vector<64x18xf32>, vector<1x18xf32> -> vector<1x18xf32>
    %251 = arith.addf %246, %250 : vector<1x18xf32>
    %252 = vector.extract_strided_slice %240 {offsets = [2, 0], sizes = [1, 64], strides = [1, 1]} : vector<3x64xf32> to vector<1x64xf32>
    %c2_134 = arith.constant 2 : index
    %c0_135 = arith.constant 0 : index
    %c0_136 = arith.constant 0 : index
    %253 = vector.load %arg12[%c2_134, %c0_135, %c0_136] : memref<3x64x18xf32, #tpu.memory_space<vmem>>, vector<1x64x18xf32>
    %254 = vector.shape_cast %253 : vector<1x64x18xf32> to vector<64x18xf32>
    %cst_137 = arith.constant dense<0.000000e+00> : vector<1x18xf32>
    %255 = tpu.matmul %252, %254, %cst_137 {dimension_numbers = #tpu.dot_dimension_numbers<[1], [0], [0], [1], [0, 0, 1, 1], [], []>} : vector<1x64xf32>, vector<64x18xf32>, vector<1x18xf32> -> vector<1x18xf32>
    %256 = arith.addf %251, %255 : vector<1x18xf32>
    %cst_138 = arith.constant 0.000000e+00 : f32
    %257 = vector.broadcast %cst_138 : f32 to vector<1x18xf32>
    %258 = arith.maximumf %256, %257 : vector<1x18xf32>
    %c0_139 = arith.constant 0 : index
    %c0_140 = arith.constant 0 : index
    %259 = vector.load %arg14[%c0_139, %c0_140] : memref<18x10xf32, #tpu.memory_space<vmem>>, vector<18x10xf32>
    %cst_141 = arith.constant dense<0.000000e+00> : vector<1x10xf32>
    %260 = tpu.matmul %258, %259, %cst_141 {dimension_numbers = #tpu.dot_dimension_numbers<[1], [0], [0], [1], [0, 0, 1, 1], [], []>} : vector<1x18xf32>, vector<18x10xf32>, vector<1x10xf32> -> vector<1x10xf32>
    %c0_142 = arith.constant 0 : index
    %c0_143 = arith.constant 0 : index
    %261 = vector.load %arg15[%c0_142, %c0_143] : memref<1x10xf32, #tpu.memory_space<vmem>>, vector<1x10xf32>
    %262 = arith.addf %260, %261 : vector<1x10xf32>
    %c0_144 = arith.constant 0 : index
    %c0_145 = arith.constant 0 : index
    %c0_146 = arith.constant 0 : index
    %263 = vector.load %arg16[%c0_144, %c0_145, %c0_146] : memref<1x1x10xf32, #tpu.memory_space<vmem>>, vector<1x1x10xf32>
    %264 = vector.shape_cast %263 : vector<1x1x10xf32> to vector<1x10xf32>
    %265 = vector.shape_cast %262 : vector<1x10xf32> to vector<1x1x10xf32>
    tpu.vector_store %arg16[%c0_144, %c0_145, %c0_146], %265 {strides = array<i32>} : memref<1x1x10xf32, #tpu.memory_space<vmem>>, vector<1x1x10xf32>,
    return
  }
  func.func @transform_0(%arg0: i32) -> (i32, i32, i32) {
    %c0_i32 = arith.constant 0 : i32
    %c0_i32_0 = arith.constant 0 : i32
    %c0_i32_1 = arith.constant 0 : i32
    return %arg0, %c0_i32, %c0_i32_0 : i32, i32, i32
  }
  func.func @transform_1(%arg0: i32) -> (i32, i32, i32) {
    %c0_i32 = arith.constant 0 : i32
    %c0_i32_0 = arith.constant 0 : i32
    %c0_i32_1 = arith.constant 0 : i32
    %c0_i32_2 = arith.constant 0 : i32
    return %c0_i32, %c0_i32_0, %c0_i32_1 : i32, i32, i32
  }
  func.func @transform_2(%arg0: i32) -> (i32, i32) {
    %c0_i32 = arith.constant 0 : i32
    %c0_i32_0 = arith.constant 0 : i32
    %c0_i32_1 = arith.constant 0 : i32
    return %c0_i32, %c0_i32_0 : i32, i32
  }
  func.func @transform_3(%arg0: i32) -> (i32, i32, i32) {
    %c0_i32 = arith.constant 0 : i32
    %c0_i32_0 = arith.constant 0 : i32
    %c0_i32_1 = arith.constant 0 : i32
    %c0_i32_2 = arith.constant 0 : i32
    return %c0_i32, %c0_i32_0, %c0_i32_1 : i32, i32, i32
  }
  func.func @transform_4(%arg0: i32) -> (i32, i32) {
    %c0_i32 = arith.constant 0 : i32
    %c0_i32_0 = arith.constant 0 : i32
    %c0_i32_1 = arith.constant 0 : i32
    return %c0_i32, %c0_i32_0 : i32, i32
  }
  func.func @transform_5(%arg0: i32) -> (i32, i32, i32) {
    %c0_i32 = arith.constant 0 : i32
    %c0_i32_0 = arith.constant 0 : i32
    %c0_i32_1 = arith.constant 0 : i32
    %c0_i32_2 = arith.constant 0 : i32
    return %c0_i32, %c0_i32_0, %c0_i32_1 : i32, i32, i32
  }
  func.func @transform_6(%arg0: i32) -> (i32, i32) {
    %c0_i32 = arith.constant 0 : i32
    %c0_i32_0 = arith.constant 0 : i32
    %c0_i32_1 = arith.constant 0 : i32
    return %c0_i32, %c0_i32_0 : i32, i32
  }
  func.func @transform_7(%arg0: i32) -> (i32, i32, i32) {
    %c0_i32 = arith.constant 0 : i32
    %c0_i32_0 = arith.constant 0 : i32
    %c0_i32_1 = arith.constant 0 : i32
    %c0_i32_2 = arith.constant 0 : i32
    return %c0_i32, %c0_i32_0, %c0_i32_1 : i32, i32, i32
  }
  func.func @transform_8(%arg0: i32) -> (i32, i32) {
    %c0_i32 = arith.constant 0 : i32
    %c0_i32_0 = arith.constant 0 : i32
    %c0_i32_1 = arith.constant 0 : i32
    return %c0_i32, %c0_i32_0 : i32, i32
  }
  func.func @transform_9(%arg0: i32) -> (i32, i32, i32) {
    %c0_i32 = arith.constant 0 : i32
    %c0_i32_0 = arith.constant 0 : i32
    %c0_i32_1 = arith.constant 0 : i32
    %c0_i32_2 = arith.constant 0 : i32
    return %c0_i32, %c0_i32_0, %c0_i32_1 : i32, i32, i32
  }
  func.func @transform_10(%arg0: i32) -> (i32, i32) {
    %c0_i32 = arith.constant 0 : i32
    %c0_i32_0 = arith.constant 0 : i32
    %c0_i32_1 = arith.constant 0 : i32
    return %c0_i32, %c0_i32_0 : i32, i32
  }
  func.func @transform_11(%arg0: i32) -> (i32, i32, i32) {
    %c0_i32 = arith.constant 0 : i32
    %c0_i32_0 = arith.constant 0 : i32
    %c0_i32_1 = arith.constant 0 : i32
    %c0_i32_2 = arith.constant 0 : i32
    return %c0_i32, %c0_i32_0, %c0_i32_1 : i32, i32, i32
  }
  func.func @transform_12(%arg0: i32) -> (i32, i32) {
    %c0_i32 = arith.constant 0 : i32
    %c0_i32_0 = arith.constant 0 : i32
    %c0_i32_1 = arith.constant 0 : i32
    return %c0_i32, %c0_i32_0 : i32, i32
  }
  func.func @transform_13(%arg0: i32) -> (i32, i32) {
    %c0_i32 = arith.constant 0 : i32
    %c0_i32_0 = arith.constant 0 : i32
    %c0_i32_1 = arith.constant 0 : i32
    return %c0_i32, %c0_i32_0 : i32, i32
  }
  func.func @transform_14(%arg0: i32) -> (i32, i32) {
    %c0_i32 = arith.constant 0 : i32
    %c0_i32_0 = arith.constant 0 : i32
    %c0_i32_1 = arith.constant 0 : i32
    return %c0_i32, %c0_i32_0 : i32, i32
  }
  func.func @transform_15(%arg0: i32) -> (i32, i32, i32) {
    %c0_i32 = arith.constant 0 : i32
    %c0_i32_0 = arith.constant 0 : i32
    %c0_i32_1 = arith.constant 0 : i32
    return %arg0, %c0_i32, %c0_i32_0 : i32, i32, i32
  }
}

</mosaic_0001>

<llo_original>
// kernel: wdcnn_deconv_forward.1
$region0: #{wdcnn_deconv_forward.1}
  #allocation0 [shape = 'u32[]', space=smem, size = 0x4, offset = 0x4, fixed_abs, tag = 'smem constant byte address 0x4 - core index']
  #allocation1 [shape = 'u32[144,128]{1,0:T(1,128)}', space=vmem, size = 0x12000, scoped, tag = 'internal scratch']
  %s0 = inlined_call_operand.vmem [shape: f32[2,131,16], index: 0, kind: input, shape index: {}]
  %s1 = inlined_call_operand.vmem [shape: f32[4,16,16], index: 1, kind: input, shape index: {}]
  %s2 = inlined_call_operand.vmem [shape: f32[1,16], index: 2, kind: input, shape index: {}]
  %s3 = inlined_call_operand.vmem [shape: f32[3,16,32], index: 3, kind: input, shape index: {}]
  %s4 = inlined_call_operand.vmem [shape: f32[1,32], index: 4, kind: input, shape index: {}]
  %s5 = inlined_call_operand.vmem [shape: f32[3,32,64], index: 5, kind: input, shape index: {}]
  %s6 = inlined_call_operand.vmem [shape: f32[1,64], index: 6, kind: input, shape index: {}]
  %s7 = inlined_call_operand.vmem [shape: f32[3,64,64], index: 7, kind: input, shape index: {}]
  %s8 = inlined_call_operand.vmem [shape: f32[1,64], index: 8, kind: input, shape index: {}]
  %s9 = inlined_call_operand.vmem [shape: f32[3,64,64], index: 9, kind: input, shape index: {}]
  %s10 = inlined_call_operand.vmem [shape: f32[1,64], index: 10, kind: input, shape index: {}]
  %s11 = inlined_call_operand.vmem [shape: f32[3,64,18], index: 11, kind: input, shape index: {}]
  %s12 = inlined_call_operand.vmem [shape: f32[1,18], index: 12, kind: input, shape index: {}]
  %s13 = inlined_call_operand.vmem [shape: f32[18,10], index: 13, kind: input, shape index: {}]
  %s14 = inlined_call_operand.vmem [shape: f32[1,10], index: 14, kind: input, shape index: {}]
  %s15 = inlined_call_operand.hbm [shape: f32[2,1,10], index: 15, kind: output, shape index: {}]
  %s16 = sld [smem:[#allocation0]]
  $region93: #{wdcnn_deconv_forward.1} parent=0
    _
  %s18 = ssub.s32 1, %s16
  %s19 = scalar_select 0, %s18, %s16
  $region1: #{wdcnn_deconv_forward.1} parent=0
    #allocation2 [shape = 'u8[1024]{0}', space=vmem, size = 0x400, scoped, tag = 'output window, operand 0']
    #allocation3 [shape = 's32[2]{0}', space=sflag, size = 0x8, scoped, tag = 'scoped memory for wdcnn_deconv_forward.1']
    %20 = vsyncpa [#allocation3], 0
    %s21 = scalar_lea.sflag [#allocation3], 1
    %22 = vsyncpa %s21, 0
    loop: start=0, step=1, limit=4
    $region2: #{wdcnn_deconv_forward.1} parent=1 // loop_pre_header
      _
    $region3: #{wdcnn_deconv_forward.1} parent=1 // loop_header
      %s24 = sphi 0, %s28
      %p25 = scmp.ge.s32.totalorder %s24, 4
      %s34 = sphi 0, %s36
      %s37 = sphi 0, %s34
      %s38 = sphi 0, %s37
      %s54 = sphi 0, %s38
      %s58 = sphi 0, %s58
      %s60 = sphi 0, %s58
      %s61 = sphi 0, %s60
      %s75 = sphi 0, %s61
      %s79 = sphi 0, %s79
      %s81 = sphi 0, %s79
      %s82 = sphi 0, %s81
      %s96 = sphi 0, %s82
      %s100 = sphi 0, %s100
      %s102 = sphi 0, %s100
      %s103 = sphi 0, %s102
      %s117 = sphi 0, %s103
      %s121 = sphi 0, %s121
      %s123 = sphi 0, %s121
      %s124 = sphi 0, %s123
      %s138 = sphi 0, %s124
      %s142 = sphi 0, %s142
      %s144 = sphi 0, %s142
      %s145 = sphi 0, %s144
      %s159 = sphi 0, %s145
      %s163 = sphi 0, %s163
      %s165 = sphi 0, %s163
      %s166 = sphi 0, %s165
      %s180 = sphi 0, %s166
      %s184 = sphi 0, %s184
      %s186 = sphi 0, %s184
      %s187 = sphi 0, %s186
      %s201 = sphi 0, %s187
      %s205 = sphi 0, %s205
      %s207 = sphi 0, %s205
      %s208 = sphi 0, %s207
      %s222 = sphi 0, %s208
      %s226 = sphi 0, %s226
      %s228 = sphi 0, %s226
      %s229 = sphi 0, %s228
      %s243 = sphi 0, %s229
      %s247 = sphi 0, %s247
      %s249 = sphi 0, %s247
      %s250 = sphi 0, %s249
      %s264 = sphi 0, %s250
      %s268 = sphi 0, %s268
      %s270 = sphi 0, %s268
      %s271 = sphi 0, %s270
      %s285 = sphi 0, %s271
      %s289 = sphi 0, %s289
      %s291 = sphi 0, %s289
      %s292 = sphi 0, %s291
      %s306 = sphi 0, %s292
      %s310 = sphi 0, %s310
      %s312 = sphi 0, %s310
      %s313 = sphi 0, %s312
      %s327 = sphi 0, %s313
      %s331 = sphi 0, %s331
      %s333 = sphi 0, %s331
      %s334 = sphi 0, %s333
      %s348 = sphi 0, %s334
      %s354 = sphi 0, %s356
      %s357 = sphi 0, %s354
      %s358 = sphi 0, %s357
      %s374 = sphi 0, %s358
    $region4: #{wdcnn_deconv_forward.1} parent=1 // loop_header_branch
      %27 = sbr.rel (%p25) target = $region8
    $region5: #{wdcnn_deconv_forward.1} parent=1 // loop_body
      %s29 = ssub.s32 %s24, 1
      %s30 = ssub.s32 %s24, 2
      %s31 = sadd.s32 %s24, 1
      %s32 = ssub.s32 %s24, %s31
      %p33 = scmp.eq.s32.totalorder %s32, 0
      %s35 = sadd.s32 %s34, 1
      %s36 = scalar_select %p33, %s34, %s35
      %p39 = pneg %p33
      %p40 = scmp.eq.s32.totalorder %s24, 1
      %p41 = por %p39, %p40
      %p42 = scmp.ne.s32.totalorder %s34, %s37
      %p43 = scmp.eq.s32.totalorder %s24, 0
      %p44 = por %p42, %p43
      %p45 = scmp.ne.s32.totalorder %s34, %s37
      %p46 = scmp.eq.s32.totalorder %s29, 1
      %p47 = por %p45, %p46
      %p48 = scmp.ne.s32.totalorder %s37, %s38
      %p49 = scmp.eq.s32.totalorder %s29, 0
      %p50 = por %p48, %p49
      %p51 = scmp.ne.s32.totalorder %s37, %s38
      %p52 = scmp.eq.s32.totalorder %s30, 1
      %p53 = por %p51, %p52
      %p55 = scmp.ne.s32.totalorder %s38, %s54
      %p56 = scmp.eq.s32.totalorder %s30, 0
      %p57 = por %p55, %p56
      %s59 = sadd.s32 %s58, 1
      %p62 = scmp.eq.s32.totalorder %s24, 1
      %p63 = scmp.ne.s32.totalorder %s58, %s60
      %p64 = scmp.eq.s32.totalorder %s24, 0
      %p65 = por %p63, %p64
      %p66 = scmp.ne.s32.totalorder %s58, %s60
      %p67 = scmp.eq.s32.totalorder %s29, 1
      %p68 = por %p66, %p67
      %p69 = scmp.ne.s32.totalorder %s60, %s61
      %p70 = scmp.eq.s32.totalorder %s29, 0
      %p71 = por %p69, %p70
      %p72 = scmp.ne.s32.totalorder %s60, %s61
      %p73 = scmp.eq.s32.totalorder %s30, 1
      %p74 = por %p72, %p73
      %p76 = scmp.ne.s32.totalorder %s61, %s75
      %p77 = scmp.eq.s32.totalorder %s30, 0
      %p78 = por %p76, %p77
      %s80 = sadd.s32 %s79, 1
      %p83 = scmp.eq.s32.totalorder %s24, 1
      %p84 = scmp.ne.s32.totalorder %s79, %s81
      %p85 = scmp.eq.s32.totalorder %s24, 0
      %p86 = por %p84, %p85
      %p87 = scmp.ne.s32.totalorder %s79, %s81
      %p88 = scmp.eq.s32.totalorder %s29, 1
      %p89 = por %p87, %p88
      %p90 = scmp.ne.s32.totalorder %s81, %s82
      %p91 = scmp.eq.s32.totalorder %s29, 0
      %p92 = por %p90, %p91
      %p93 = scmp.ne.s32.totalorder %s81, %s82
      %p94 = scmp.eq.s32.totalorder %s30, 1
      %p95 = por %p93, %p94
      %p97 = scmp.ne.s32.totalorder %s82, %s96
      %p98 = scmp.eq.s32.totalorder %s30, 0
      %p99 = por %p97, %p98
      %s101 = sadd.s32 %s100, 1
      %p104 = scmp.eq.s32.totalorder %s24, 1
      %p105 = scmp.ne.s32.totalorder %s100, %s102
      %p106 = scmp.eq.s32.totalorder %s24, 0
      %p107 = por %p105, %p106
      %p108 = scmp.ne.s32.totalorder %s100, %s102
      %p109 = scmp.eq.s32.totalorder %s29, 1
      %p110 = por %p108, %p109
      %p111 = scmp.ne.s32.totalorder %s102, %s103
      %p112 = scmp.eq.s32.totalorder %s29, 0
      %p113 = por %p111, %p112
      %p114 = scmp.ne.s32.totalorder %s102, %s103
      %p115 = scmp.eq.s32.totalorder %s30, 1
      %p116 = por %p114, %p115
      %p118 = scmp.ne.s32.totalorder %s103, %s117
      %p119 = scmp.eq.s32.totalorder %s30, 0
      %p120 = por %p118, %p119
      %s122 = sadd.s32 %s121, 1
      %p125 = scmp.eq.s32.totalorder %s24, 1
      %p126 = scmp.ne.s32.totalorder %s121, %s123
      %p127 = scmp.eq.s32.totalorder %s24, 0
      %p128 = por %p126, %p127
      %p129 = scmp.ne.s32.totalorder %s121, %s123
      %p130 = scmp.eq.s32.totalorder %s29, 1
      %p131 = por %p129, %p130
      %p132 = scmp.ne.s32.totalorder %s123, %s124
      %p133 = scmp.eq.s32.totalorder %s29, 0
      %p134 = por %p132, %p133
      %p135 = scmp.ne.s32.totalorder %s123, %s124
      %p136 = scmp.eq.s32.totalorder %s30, 1
      %p137 = por %p135, %p136
      %p139 = scmp.ne.s32.totalorder %s124, %s138
      %p140 = scmp.eq.s32.totalorder %s30, 0
      %p141 = por %p139, %p140
      %s143 = sadd.s32 %s142, 1
      %p146 = scmp.eq.s32.totalorder %s24, 1
      %p147 = scmp.ne.s32.totalorder %s142, %s144
      %p148 = scmp.eq.s32.totalorder %s24, 0
      %p149 = por %p147, %p148
      %p150 = scmp.ne.s32.totalorder %s142, %s144
      %p151 = scmp.eq.s32.totalorder %s29, 1
      %p152 = por %p150, %p151
      %p153 = scmp.ne.s32.totalorder %s144, %s145
      %p154 = scmp.eq.s32.totalorder %s29, 0
      %p155 = por %p153, %p154
      %p156 = scmp.ne.s32.totalorder %s144, %s145
      %p157 = scmp.eq.s32.totalorder %s30, 1
      %p158 = por %p156, %p157
      %p160 = scmp.ne.s32.totalorder %s145, %s159
      %p161 = scmp.eq.s32.totalorder %s30, 0
      %p162 = por %p160, %p161
      %s164 = sadd.s32 %s163, 1
      %p167 = scmp.eq.s32.totalorder %s24, 1
      %p168 = scmp.ne.s32.totalorder %s163, %s165
      %p169 = scmp.eq.s32.totalorder %s24, 0
      %p170 = por %p168, %p169
      %p171 = scmp.ne.s32.totalorder %s163, %s165
      %p172 = scmp.eq.s32.totalorder %s29, 1
      %p173 = por %p171, %p172
      %p174 = scmp.ne.s32.totalorder %s165, %s166
      %p175 = scmp.eq.s32.totalorder %s29, 0
      %p176 = por %p174, %p175
      %p177 = scmp.ne.s32.totalorder %s165, %s166
      %p178 = scmp.eq.s32.totalorder %s30, 1
      %p179 = por %p177, %p178
      %p181 = scmp.ne.s32.totalorder %s166, %s180
      %p182 = scmp.eq.s32.totalorder %s30, 0
      %p183 = por %p181, %p182
      %s185 = sadd.s32 %s184, 1
      %p188 = scmp.eq.s32.totalorder %s24, 1
      %p189 = scmp.ne.s32.totalorder %s184, %s186
      %p190 = scmp.eq.s32.totalorder %s24, 0
      %p191 = por %p189, %p190
      %p192 = scmp.ne.s32.totalorder %s184, %s186
      %p193 = scmp.eq.s32.totalorder %s29, 1
      %p194 = por %p192, %p193
      %p195 = scmp.ne.s32.totalorder %s186, %s187
      %p196 = scmp.eq.s32.totalorder %s29, 0
      %p197 = por %p195, %p196
      %p198 = scmp.ne.s32.totalorder %s186, %s187
      %p199 = scmp.eq.s32.totalorder %s30, 1
      %p200 = por %p198, %p199
      %p202 = scmp.ne.s32.totalorder %s187, %s201
      %p203 = scmp.eq.s32.totalorder %s30, 0
      %p204 = por %p202, %p203
      %s206 = sadd.s32 %s205, 1
      %p209 = scmp.eq.s32.totalorder %s24, 1
      %p210 = scmp.ne.s32.totalorder %s205, %s207
      %p211 = scmp.eq.s32.totalorder %s24, 0
      %p212 = por %p210, %p211
      %p213 = scmp.ne.s32.totalorder %s205, %s207
      %p214 = scmp.eq.s32.totalorder %s29, 1
      %p215 = por %p213, %p214
      %p216 = scmp.ne.s32.totalorder %s207, %s208
      %p217 = scmp.eq.s32.totalorder %s29, 0
      %p218 = por %p216, %p217
      %p219 = scmp.ne.s32.totalorder %s207, %s208
      %p220 = scmp.eq.s32.totalorder %s30, 1
      %p221 = por %p219, %p220
      %p223 = scmp.ne.s32.totalorder %s208, %s222
      %p224 = scmp.eq.s32.totalorder %s30, 0
      %p225 = por %p223, %p224
      %s227 = sadd.s32 %s226, 1
      %p230 = scmp.eq.s32.totalorder %s24, 1
      %p231 = scmp.ne.s32.totalorder %s226, %s228
      %p232 = scmp.eq.s32.totalorder %s24, 0
      %p233 = por %p231, %p232
      %p234 = scmp.ne.s32.totalorder %s226, %s228
      %p235 = scmp.eq.s32.totalorder %s29, 1
      %p236 = por %p234, %p235
      %p237 = scmp.ne.s32.totalorder %s228, %s229
      %p238 = scmp.eq.s32.totalorder %s29, 0
      %p239 = por %p237, %p238
      %p240 = scmp.ne.s32.totalorder %s228, %s229
      %p241 = scmp.eq.s32.totalorder %s30, 1
      %p242 = por %p240, %p241
      %p244 = scmp.ne.s32.totalorder %s229, %s243
      %p245 = scmp.eq.s32.totalorder %s30, 0
      %p246 = por %p244, %p245
      %s248 = sadd.s32 %s247, 1
      %p251 = scmp.eq.s32.totalorder %s24, 1
      %p252 = scmp.ne.s32.totalorder %s247, %s249
      %p253 = scmp.eq.s32.totalorder %s24, 0
      %p254 = por %p252, %p253
      %p255 = scmp.ne.s32.totalorder %s247, %s249
      %p256 = scmp.eq.s32.totalorder %s29, 1
      %p257 = por %p255, %p256
      %p258 = scmp.ne.s32.totalorder %s249, %s250
      %p259 = scmp.eq.s32.totalorder %s29, 0
      %p260 = por %p258, %p259
      %p261 = scmp.ne.s32.totalorder %s249, %s250
      %p262 = scmp.eq.s32.totalorder %s30, 1
      %p263 = por %p261, %p262
      %p265 = scmp.ne.s32.totalorder %s250, %s264
      %p266 = scmp.eq.s32.totalorder %s30, 0
      %p267 = por %p265, %p266
      %s269 = sadd.s32 %s268, 1
      %p272 = scmp.eq.s32.totalorder %s24, 1
      %p273 = scmp.ne.s32.totalorder %s268, %s270
      %p274 = scmp.eq.s32.totalorder %s24, 0
      %p275 = por %p273, %p274
      %p276 = scmp.ne.s32.totalorder %s268, %s270
      %p277 = scmp.eq.s32.totalorder %s29, 1
      %p278 = por %p276, %p277
      %p279 = scmp.ne.s32.totalorder %s270, %s271
      %p280 = scmp.eq.s32.totalorder %s29, 0
      %p281 = por %p279, %p280
      %p282 = scmp.ne.s32.totalorder %s270, %s271
      %p283 = scmp.eq.s32.totalorder %s30, 1
      %p284 = por %p282, %p283
      %p286 = scmp.ne.s32.totalorder %s271, %s285
      %p287 = scmp.eq.s32.totalorder %s30, 0
      %p288 = por %p286, %p287
      %s290 = sadd.s32 %s289, 1
      %p293 = scmp.eq.s32.totalorder %s24, 1
      %p294 = scmp.ne.s32.totalorder %s289, %s291
      %p295 = scmp.eq.s32.totalorder %s24, 0
      %p296 = por %p294, %p295
      %p297 = scmp.ne.s32.totalorder %s289, %s291
      %p298 = scmp.eq.s32.totalorder %s29, 1
      %p299 = por %p297, %p298
      %p300 = scmp.ne.s32.totalorder %s291, %s292
      %p301 = scmp.eq.s32.totalorder %s29, 0
      %p302 = por %p300, %p301
      %p303 = scmp.ne.s32.totalorder %s291, %s292
      %p304 = scmp.eq.s32.totalorder %s30, 1
      %p305 = por %p303, %p304
      %p307 = scmp.ne.s32.totalorder %s292, %s306
      %p308 = scmp.eq.s32.totalorder %s30, 0
      %p309 = por %p307, %p308
      %s311 = sadd.s32 %s310, 1
      %p314 = scmp.eq.s32.totalorder %s24, 1
      %p315 = scmp.ne.s32.totalorder %s310, %s312
      %p316 = scmp.eq.s32.totalorder %s24, 0
      %p317 = por %p315, %p316
      %p318 = scmp.ne.s32.totalorder %s310, %s312
      %p319 = scmp.eq.s32.totalorder %s29, 1
      %p320 = por %p318, %p319
      %p321 = scmp.ne.s32.totalorder %s312, %s313
      %p322 = scmp.eq.s32.totalorder %s29, 0
      %p323 = por %p321, %p322
      %p324 = scmp.ne.s32.totalorder %s312, %s313
      %p325 = scmp.eq.s32.totalorder %s30, 1
      %p326 = por %p324, %p325
      %p328 = scmp.ne.s32.totalorder %s313, %s327
      %p329 = scmp.eq.s32.totalorder %s30, 0
      %p330 = por %p328, %p329
      %s332 = sadd.s32 %s331, 1
      %p335 = scmp.eq.s32.totalorder %s24, 1
      %p336 = scmp.ne.s32.totalorder %s331, %s333
      %p337 = scmp.eq.s32.totalorder %s24, 0
      %p338 = por %p336, %p337
      %p339 = scmp.ne.s32.totalorder %s331, %s333
      %p340 = scmp.eq.s32.totalorder %s29, 1
      %p341 = por %p339, %p340
      %p342 = scmp.ne.s32.totalorder %s333, %s334
      %p343 = scmp.eq.s32.totalorder %s29, 0
      %p344 = por %p342, %p343
      %p345 = scmp.ne.s32.totalorder %s333, %s334
      %p346 = scmp.eq.s32.totalorder %s30, 1
      %p347 = por %p345, %p346
      %p349 = scmp.ne.s32.totalorder %s334, %s348
      %p350 = scmp.eq.s32.totalorder %s30, 0
      %p351 = por %p349, %p350
      %s352 = ssub.s32 %s24, %s31
      %p353 = scmp.eq.s32.totalorder %s352, 0
      %s355 = sadd.s32 %s354, 1
      %s356 = scalar_select %p353, %s354, %s355
      %p359 = pneg %p353
      %p360 = scmp.eq.s32.totalorder %s24, 1
      %p361 = por %p359, %p360
      %p362 = scmp.ne.s32.totalorder %s354, %s357
      %p363 = scmp.eq.s32.totalorder %s24, 0
      %p364 = por %p362, %p363
      %p365 = scmp.ne.s32.totalorder %s354, %s357
      %p366 = scmp.eq.s32.totalorder %s29, 1
      %p367 = por %p365, %p366
      %p368 = scmp.ne.s32.totalorder %s357, %s358
      %p369 = scmp.eq.s32.totalorder %s29, 0
      %p370 = por %p368, %p369
      %p371 = scmp.ne.s32.totalorder %s357, %s358
      %p372 = scmp.eq.s32.totalorder %s30, 1
      %p373 = por %p371, %p372
      %p375 = scmp.ne.s32.totalorder %s358, %s374
      %p376 = scmp.eq.s32.totalorder %s30, 0
      %p377 = por %p375, %p376
      %p378 = scmp.le.s32.totalorder 1, %s24
      %p379 = scmp.lt.s32.totalorder %s24, 3
      %p380 = pnand %p378, %p379
      %p381 = pneg %p380
      // Predicated region
      $region9: #{wdcnn_deconv_forward.1} parent=5 // pred_check
        _
      $region10: #{wdcnn_deconv_forward.1} parent=5 // pred_check_branch
        %383 = sbr.rel (%p380) target = $region12
      $region11: #{wdcnn_deconv_forward.1} parent=5 // pred_region
        %s384 = ssub.s32 %s24, 1
        // Predicated region
        $region13: #{wdcnn_deconv_forward.1} parent=11 // pred_check
          %p385 = pneg %p71
        $region14: #{wdcnn_deconv_forward.1} parent=11 // pred_check_branch
          %387 = sbr.rel (%p385) target = $region16
        $region15: #{wdcnn_deconv_forward.1} parent=11 // pred_region
          _
        $region16: #{wdcnn_deconv_forward.1} parent=11 // pred_fallthru
          _
        // Predicated region
        $region17: #{wdcnn_deconv_forward.1} parent=11 // pred_check
          %p388 = pneg %p92
        $region18: #{wdcnn_deconv_forward.1} parent=11 // pred_check_branch
          %390 = sbr.rel (%p388) target = $region20
        $region19: #{wdcnn_deconv_forward.1} parent=11 // pred_region
          _
        $region20: #{wdcnn_deconv_forward.1} parent=11 // pred_fallthru
          _
        // Predicated region
        $region21: #{wdcnn_deconv_forward.1} parent=11 // pred_check
          %p391 = pneg %p113
        $region22: #{wdcnn_deconv_forward.1} parent=11 // pred_check_branch
          %393 = sbr.rel (%p391) target = $region24
        $region23: #{wdcnn_deconv_forward.1} parent=11 // pred_region
          _
        $region24: #{wdcnn_deconv_forward.1} parent=11 // pred_fallthru
          _
        // Predicated region
        $region25: #{wdcnn_deconv_forward.1} parent=11 // pred_check
          %p394 = pneg %p134
        $region26: #{wdcnn_deconv_forward.1} parent=11 // pred_check_branch
          %396 = sbr.rel (%p394) target = $region28
        $region27: #{wdcnn_deconv_forward.1} parent=11 // pred_region
          _
        $region28: #{wdcnn_deconv_forward.1} parent=11 // pred_fallthru
          _
        // Predicated region
        $region29: #{wdcnn_deconv_forward.1} parent=11 // pred_check
          %p397 = pneg %p155
        $region30: #{wdcnn_deconv_forward.1} parent=11 // pred_check_branch
          %399 = sbr.rel (%p397) target = $region32
        $region31: #{wdcnn_deconv_forward.1} parent=11 // pred_region
          _
        $region32: #{wdcnn_deconv_forward.1} parent=11 // pred_fallthru
          _
        // Predicated region
        $region33: #{wdcnn_deconv_forward.1} parent=11 // pred_check
          %p400 = pneg %p176
        $region34: #{wdcnn_deconv_forward.1} parent=11 // pred_check_branch
          %402 = sbr.rel (%p400) target = $region36
        $region35: #{wdcnn_deconv_forward.1} parent=11 // pred_region
          _
        $region36: #{wdcnn_deconv_forward.1} parent=11 // pred_fallthru
          _
        // Predicated region
        $region37: #{wdcnn_deconv_forward.1} parent=11 // pred_check
          %p403 = pneg %p197
        $region38: #{wdcnn_deconv_forward.1} parent=11 // pred_check_branch
          %405 = sbr.rel (%p403) target = $region40
        $region39: #{wdcnn_deconv_forward.1} parent=11 // pred_region
          _
        $region40: #{wdcnn_deconv_forward.1} parent=11 // pred_fallthru
          _
        // Predicated region
        $region41: #{wdcnn_deconv_forward.1} parent=11 // pred_check
          %p406 = pneg %p218
        $region42: #{wdcnn_deconv_forward.1} parent=11 // pred_check_branch
          %408 = sbr.rel (%p406) target = $region44
        $region43: #{wdcnn_deconv_forward.1} parent=11 // pred_region
          _
        $region44: #{wdcnn_deconv_forward.1} parent=11 // pred_fallthru
          _
        // Predicated region
        $region45: #{wdcnn_deconv_forward.1} parent=11 // pred_check
          %p409 = pneg %p239
        $region46: #{wdcnn_deconv_forward.1} parent=11 // pred_check_branch
          %411 = sbr.rel (%p409) target = $region48
        $region47: #{wdcnn_deconv_forward.1} parent=11 // pred_region
          _
        $region48: #{wdcnn_deconv_forward.1} parent=11 // pred_fallthru
          _
        // Predicated region
        $region49: #{wdcnn_deconv_forward.1} parent=11 // pred_check
          %p412 = pneg %p260
        $region50: #{wdcnn_deconv_forward.1} parent=11 // pred_check_branch
          %414 = sbr.rel (%p412) target = $region52
        $region51: #{wdcnn_deconv_forward.1} parent=11 // pred_region
          _
        $region52: #{wdcnn_deconv_forward.1} parent=11 // pred_fallthru
          _
        // Predicated region
        $region53: #{wdcnn_deconv_forward.1} parent=11 // pred_check
          %p415 = pneg %p281
        $region54: #{wdcnn_deconv_forward.1} parent=11 // pred_check_branch
          %417 = sbr.rel (%p415) target = $region56
        $region55: #{wdcnn_deconv_forward.1} parent=11 // pred_region
          _
        $region56: #{wdcnn_deconv_forward.1} parent=11 // pred_fallthru
          _
        // Predicated region
        $region57: #{wdcnn_deconv_forward.1} parent=11 // pred_check
          %p418 = pneg %p302
        $region58: #{wdcnn_deconv_forward.1} parent=11 // pred_check_branch
          %420 = sbr.rel (%p418) target = $region60
        $region59: #{wdcnn_deconv_forward.1} parent=11 // pred_region
          _
        $region60: #{wdcnn_deconv_forward.1} parent=11 // pred_fallthru
          _
        // Predicated region
        $region61: #{wdcnn_deconv_forward.1} parent=11 // pred_check
          %p421 = pneg %p323
        $region62: #{wdcnn_deconv_forward.1} parent=11 // pred_check_branch
          %423 = sbr.rel (%p421) target = $region64
        $region63: #{wdcnn_deconv_forward.1} parent=11 // pred_region
          _
        $region64: #{wdcnn_deconv_forward.1} parent=11 // pred_fallthru
          _
        // Predicated region
        $region65: #{wdcnn_deconv_forward.1} parent=11 // pred_check
          %p424 = pneg %p344
        $region66: #{wdcnn_deconv_forward.1} parent=11 // pred_check_branch
          %426 = sbr.rel (%p424) target = $region68
        $region67: #{wdcnn_deconv_forward.1} parent=11 // pred_region
          _
        $region68: #{wdcnn_deconv_forward.1} parent=11 // pred_fallthru
          _
      $region12: #{wdcnn_deconv_forward.1} parent=5 // pred_fallthru
        _
      %p427 = scmp.lt.s32.totalorder %s24, 2
      // Predicated region
      $region69: #{wdcnn_deconv_forward.1} parent=5 // pred_check
        %p428 = pneg %p427
      $region70: #{wdcnn_deconv_forward.1} parent=5 // pred_check_branch
        %430 = sbr.rel (%p428) target = $region72
      $region71: #{wdcnn_deconv_forward.1} parent=5 // pred_region
        // Predicated region
        $region73: #{wdcnn_deconv_forward.1} parent=71 // pred_check
          %p431 = pneg %p44
        $region74: #{wdcnn_deconv_forward.1} parent=71 // pred_check_branch
          %433 = sbr.rel (%p431) target = $region76
        $region75: #{wdcnn_deconv_forward.1} parent=71 // pred_region
          %p434 = scmp.lt.s32.totalorder %s24, 1
          %s435 = scalar_select %p434, %s24, 1
          %s436 = smul.addr %s435, 17
          %s437 = smul.addr %s436, 8
          %s438 = scalar_lea.vmem %s0, %s437
        $region76: #{wdcnn_deconv_forward.1} parent=71 // pred_fallthru
          _
      $region72: #{wdcnn_deconv_forward.1} parent=5 // pred_fallthru
        _
      %p439 = scmp.le.s32.totalorder 1, %s24
      %p440 = scmp.lt.s32.totalorder %s24, 3
      %p441 = pnand %p439, %p440
      %p442 = pneg %p441
      // Predicated region
      $region77: #{wdcnn_deconv_forward.1} parent=5 // pred_check
        _
      $region78: #{wdcnn_deconv_forward.1} parent=5 // pred_check_branch
        %444 = sbr.rel (%p441) target = $region80
      $region79: #{wdcnn_deconv_forward.1} parent=5 // pred_region
        %s445 = ssub.s32 %s24, 1
        %p446 = scmp.lt.s32.totalorder %s29, 1
        %s447 = scalar_select %p446, %s29, 1
        %s448 = smul.addr %s447, 17
        %s449 = smul.addr %s448, 8
        %s450 = scalar_lea.vmem %s0, %s449
        %p451 = pneg %p50
        %p452 = pneg %p47
        %p453 = pneg %p71
        %p454 = pneg %p68
        %p455 = pneg %p92
        %p456 = pneg %p89
        %p457 = pneg %p113
        %p458 = pneg %p110
        %p459 = pneg %p134
        %p460 = pneg %p131
        %p461 = pneg %p155
        %p462 = pneg %p152
        %p463 = pneg %p176
        %p464 = pneg %p173
        %p465 = pneg %p197
        %p466 = pneg %p194
        %p467 = pneg %p218
        %p468 = pneg %p215
        %p469 = pneg %p239
        %p470 = pneg %p236
        %p471 = pneg %p260
        %p472 = pneg %p257
        %p473 = pneg %p281
        %p474 = pneg %p278
        %p475 = pneg %p302
        %p476 = pneg %p299
        %p477 = pneg %p323
        %p478 = pneg %p320
        %p479 = pneg %p344
        %p480 = pneg %p341
        %p481 = pneg %p370
        %p482 = pneg %p367
        %s483 = sand.u32 %s357, 1
        %s484 = scalar_lea.sflag [#allocation3], %s483
        %s485 = sand.u32 %s357, 1
        %s486 = scalar_lea.vmem [#allocation2], %s485
        %p487 = scmp.lt.s32.totalorder %s29, 1
        %s488 = scalar_select %p487, %s29, 1
        %s489 = smul.addr %s488, 17
        %s490 = smul.addr %s489, 8
        %s491 = scalar_lea.vmem %s0, %s490
        %v492 = vld [vmem:[%s2] sm:$0x1]
        %v493 = vld [vmem:[%s491] sm:$0xff]
        %v494 = vld [vmem:[%s491 + $0x8] sm:$0xff]
        %v495 = vld [vmem:[%s491 + $0x10] sm:$0xff]
        %v496 = vld [vmem:[%s491 + $0x18] sm:$0xff]
        %v497 = vld [vmem:[%s491 + $0x20] sm:$0xff]
        %v498 = vld [vmem:[%s491 + $0x28] sm:$0xff]
        %v499 = vld [vmem:[%s491 + $0x30] sm:$0xff]
        %v500 = vld [vmem:[%s491 + $0x38] sm:$0xff]
        %v501 = vld [vmem:[%s491 + $0x40] sm:$0xff]
        %v502 = vld [vmem:[%s491 + $0x48] sm:$0xff]
        %v503 = vld [vmem:[%s491 + $0x50] sm:$0xff]
        %v504 = vld [vmem:[%s491 + $0x58] sm:$0xff]
        %v505 = vld [vmem:[%s491 + $0x60] sm:$0xff]
        %v506 = vld [vmem:[%s491 + $0x68] sm:$0xff]
        %v507 = vld [vmem:[%s491 + $0x70] sm:$0xff]
        %v508 = vld [vmem:[%s491 + $0x78] sm:$0xff]
        %v509 = vld [vmem:[%s1] sm:$0xff]
        %v510 = vld [vmem:[%s1 + $0x8] sm:$0xff]
        %vm511 = vcmask 130048
        %v513 = vsel %vm511, %v493, 0
        %v516 = vsel %vm511, %v494, 0
        %v519 = vsel %vm511, %v495, 0
        %v522 = vsel %vm511, %v496, 0
        %v525 = vsel %vm511, %v497, 0
        %v528 = vsel %vm511, %v498, 0
        %v531 = vsel %vm511, %v499, 0
        %v534 = vsel %vm511, %v500, 0
        %v537 = vsel %vm511, %v501, 0
        %v540 = vsel %vm511, %v502, 0
        %v543 = vsel %vm511, %v503, 0
        %v546 = vsel %vm511, %v504, 0
        %v549 = vsel %vm511, %v505, 0
        %v552 = vsel %vm511, %v506, 0
        %v555 = vsel %vm511, %v507, 0
        %v558 = vsel %vm511, %v508, 0
        %560 = vmatprep.subr.mxu0 0.0
        %561 = vmatpush1.msra.mxu0 %v509
        %562 = vmatprep.subr.mxu0 0.0
        %563 = vmatpush1.msra.mxu0 %v510
        %564 = vmatprep.subr.mxu0 0.0
        %565 = vmatpush1.msra.mxu0 0.0
        %566 = vmatprep.subr.mxu0 0.0
        %567 = vmatpush1.msra.mxu0 0.0
        %568 = vmatprep.subr.mxu0 0.0
        %569 = vmatpush1.msra.mxu0 0.0
        %570 = vmatprep.subr.mxu0 0.0
        %571 = vmatpush1.msra.mxu0 0.0
        %572 = vmatprep.subr.mxu0 0.0
        %573 = vmatpush1.msra.mxu0 0.0
        %574 = vmatprep.subr.mxu0 0.0
        %575 = vmatpush1.msra.mxu0 0.0
        %576 = vmatprep.subr.mxu0 0.0
        %577 = vmatpush1.msra.mxu0 0.0
        %578 = vmatprep.subr.mxu0 0.0
        %579 = vmatpush1.msra.mxu0 0.0
        %580 = vmatprep.subr.mxu0 0.0
        %581 = vmatpush1.msra.mxu0 0.0
        %582 = vmatprep.subr.mxu0 0.0
        %583 = vmatpush1.msra.mxu0 0.0
        %584 = vmatprep.subr.mxu0 0.0
        %585 = vmatpush1.msra.mxu0 0.0
        %586 = vmatprep.subr.mxu0 0.0
        %587 = vmatpush1.msra.mxu0 0.0
        %588 = vmatprep.subr.mxu0 0.0
        %589 = vmatpush1.msra.mxu0 0.0
        %590 = vmatprep.subr.mxu0 0.0
        %591 = vmatpush1.msra.mxu0 0.0
        %592 = vmatprep.subr.mxu0 0.0
        %593 = vmatpush1.msra.mxu0 0.0
        %594 = vmatprep.subr.mxu0 0.0
        %595 = vmatpush1.msra.mxu0 0.0
        %596 = vmatprep.subr.mxu0 0.0
        %597 = vmatpush1.msra.mxu0 0.0
        %598 = vmatprep.subr.mxu0 0.0
        %599 = vmatpush1.msra.mxu0 0.0
        %600 = vmatprep.subr.mxu0 0.0
        %601 = vmatpush1.msra.mxu0 0.0
        %602 = vmatprep.subr.mxu0 0.0
        %603 = vmatpush1.msra.mxu0 0.0
        %604 = vmatprep.subr.mxu0 0.0
        %605 = vmatpush1.msra.mxu0 0.0
        %606 = vmatprep.subr.mxu0 0.0
        %607 = vmatpush1.msra.mxu0 0.0
        %608 = vmatprep.subr.mxu0 0.0
        %609 = vmatpush1.msra.mxu0 0.0
        %610 = vmatprep.subr.mxu0 0.0
        %611 = vmatpush1.msra.mxu0 0.0
        %612 = vmatprep.subr.mxu0 0.0
        %613 = vmatpush1.msra.mxu0 0.0
        %614 = vmatprep.subr.mxu0 0.0
        %615 = vmatpush1.msra.mxu0 0.0
        %616 = vmatprep.subr.mxu0 0.0
        %617 = vmatpush1.msra.mxu0 0.0
        %618 = vmatprep.subr.mxu0 0.0
        %619 = vmatpush1.msra.mxu0 0.0
        %620 = vmatprep.subr.mxu0 0.0
        %621 = vmatpush1.msra.mxu0 0.0
        %622 = vmatprep.subr.mxu0 0.0
        %623 = vmatpush1.msra.mxu0 0.0
        %624 = vmatprep.mubr.f32.mxu0 0.0
        %625 = vmatmul.mubr.f32.gmra.mrb[0].mxu0 %v513
        %v626 = vpop.f32.mrb[0].mxu0
        %v627 = vadd.f32 0.0, %v626
        %v628 = vpop.f32.mrb[0].mxu0
        %629 = vmatprep.mubr.f32.mxu0 0.0
        %630 = vmatmul.mubr.f32.gmra.mrb[0].mxu0 %v516
        %v631 = vpop.f32.mrb[0].mxu0
        %v632 = vadd.f32 0.0, %v631
        %v633 = vpop.f32.mrb[0].mxu0
        %634 = vmatprep.mubr.f32.mxu0 0.0
        %635 = vmatmul.mubr.f32.gmra.mrb[0].mxu0 %v519
        %v636 = vpop.f32.mrb[0].mxu0
        %v637 = vadd.f32 0.0, %v636
        %v638 = vpop.f32.mrb[0].mxu0
        %639 = vmatprep.mubr.f32.mxu0 0.0
        %640 = vmatmul.mubr.f32.gmra.mrb[0].mxu0 %v522
        %v641 = vpop.f32.mrb[0].mxu0
        %v642 = vadd.f32 0.0, %v641
        %v643 = vpop.f32.mrb[0].mxu0
        %644 = vmatprep.mubr.f32.mxu0 0.0
        %645 = vmatmul.mubr.f32.gmra.mrb[0].mxu0 %v525
        %v646 = vpop.f32.mrb[0].mxu0
        %v647 = vadd.f32 0.0, %v646
        %v648 = vpop.f32.mrb[0].mxu0
        %649 = vmatprep.mubr.f32.mxu0 0.0
        %650 = vmatmul.mubr.f32.gmra.mrb[0].mxu0 %v528
        %v651 = vpop.f32.mrb[0].mxu0
        %v652 = vadd.f32 0.0, %v651
        %v653 = vpop.f32.mrb[0].mxu0
        %654 = vmatprep.mubr.f32.mxu0 0.0
        %655 = vmatmul.mubr.f32.gmra.mrb[0].mxu0 %v531
        %v656 = vpop.f32.mrb[0].mxu0
        %v657 = vadd.f32 0.0, %v656
        %v658 = vpop.f32.mrb[0].mxu0
        %659 = vmatprep.mubr.f32.mxu0 0.0
        %660 = vmatmul.mubr.f32.gmra.mrb[0].mxu0 %v534
        %v661 = vpop.f32.mrb[0].mxu0
        %v662 = vadd.f32 0.0, %v661
        %v663 = vpop.f32.mrb[0].mxu0
        %664 = vmatprep.mubr.f32.mxu0 0.0
        %665 = vmatmul.mubr.f32.gmra.mrb[0].mxu0 %v537
        %v666 = vpop.f32.mrb[0].mxu0
        %v667 = vadd.f32 0.0, %v666
        %v668 = vpop.f32.mrb[0].mxu0
        %669 = vmatprep.mubr.f32.mxu0 0.0
        %670 = vmatmul.mubr.f32.gmra.mrb[0].mxu0 %v540
        %v671 = vpop.f32.mrb[0].mxu0
        %v672 = vadd.f32 0.0, %v671
        %v673 = vpop.f32.mrb[0].mxu0
        %674 = vmatprep.mubr.f32.mxu0 0.0
        %675 = vmatmul.mubr.f32.gmra.mrb[0].mxu0 %v543
        %v676 = vpop.f32.mrb[0].mxu0
        %v677 = vadd.f32 0.0, %v676
        %v678 = vpop.f32.mrb[0].mxu0
        %679 = vmatprep.mubr.f32.mxu0 0.0
        %680 = vmatmul.mubr.f32.gmra.mrb[0].mxu0 %v546
        %v681 = vpop.f32.mrb[0].mxu0
        %v682 = vadd.f32 0.0, %v681
        %v683 = vpop.f32.mrb[0].mxu0
        %684 = vmatprep.mubr.f32.mxu0 0.0
        %685 = vmatmul.mubr.f32.gmra.mrb[0].mxu0 %v549
        %v686 = vpop.f32.mrb[0].mxu0
        %v687 = vadd.f32 0.0, %v686
        %v688 = vpop.f32.mrb[0].mxu0
        %689 = vmatprep.mubr.f32.mxu0 0.0
        %690 = vmatmul.mubr.f32.gmra.mrb[0].mxu0 %v552
        %v691 = vpop.f32.mrb[0].mxu0
        %v692 = vadd.f32 0.0, %v691
        %v693 = vpop.f32.mrb[0].mxu0
        %694 = vmatprep.mubr.f32.mxu0 0.0
        %695 = vmatmul.mubr.f32.gmra.mrb[0].mxu0 %v555
        %v696 = vpop.f32.mrb[0].mxu0
        %v697 = vadd.f32 0.0, %v696
        %v698 = vpop.f32.mrb[0].mxu0
        %699 = vmatprep.mubr.f32.mxu0 0.0
        %700 = vmatmul.mubr.f32.gmra.mrb[0].mxu0 %v558
        %v701 = vpop.f32.mrb[0].mxu0
        %v702 = vadd.f32 0.0, %v701
        %v703 = vpop.f32.mrb[0].mxu0
        %704 = vdwg.mxu0
        %v706 = vlaneseq
        %v707 = vshrl.u32 %v706, 7
        %v708 = vsub.s32 0, %v707
        %v709 = vrot.slane %v492, %v708
        %v711 = vadd.f32 %v709, %v627
        %v712 = vadd.f32 %v709, %v632
        %v713 = vadd.f32 %v709, %v637
        %v714 = vadd.f32 %v709, %v642
        %v715 = vadd.f32 %v709, %v647
        %v716 = vadd.f32 %v709, %v652
        %v717 = vadd.f32 %v709, %v657
        %v718 = vadd.f32 %v709, %v662
        %v719 = vadd.f32 %v709, %v667
        %v720 = vadd.f32 %v709, %v672
        %v721 = vadd.f32 %v709, %v677
        %v722 = vadd.f32 %v709, %v682
        %v723 = vadd.f32 %v709, %v687
        %v724 = vadd.f32 %v709, %v692
        %v725 = vadd.f32 %v709, %v697
        %v726 = vadd.f32 %v709, %v702
        %v727 = vld [vmem:[%s491 + $0x1] sm:$0xff]
        %v728 = vld [vmem:[%s491 + $0x9] sm:$0xff]
        %v729 = vld [vmem:[%s491 + $0x11] sm:$0xff]
        %v730 = vld [vmem:[%s491 + $0x19] sm:$0xff]
        %v731 = vld [vmem:[%s491 + $0x21] sm:$0xff]
        %v732 = vld [vmem:[%s491 + $0x29] sm:$0xff]
        %v733 = vld [vmem:[%s491 + $0x31] sm:$0xff]
        %v734 = vld [vmem:[%s491 + $0x39] sm:$0xff]
        %v735 = vld [vmem:[%s491 + $0x41] sm:$0xff]
        %v736 = vld [vmem:[%s491 + $0x49] sm:$0xff]
        %v737 = vld [vmem:[%s491 + $0x51] sm:$0xff]
        %v738 = vld [vmem:[%s491 + $0x59] sm:$0xff]
        %v739 = vld [vmem:[%s491 + $0x61] sm:$0xff]
        %v740 = vld [vmem:[%s491 + $0x69] sm:$0xff]
        %v741 = vld [vmem:[%s491 + $0x71] sm:$0xff]
        %v742 = vld [vmem:[%s491 + $0x79] sm:$0xff]
        %s743 = scalar_lea.vmem %s1, 16
        %v744 = vld [vmem:[%s743] sm:$0xff]
        %v745 = vld [vmem:[%s743 + $0x8] sm:$0xff]
        %v747 = vsel %vm511, %v727, 0
        %v750 = vsel %vm511, %v728, 0
        %v753 = vsel %vm511, %v729, 0
        %v756 = vsel %vm511, %v730, 0
        %v759 = vsel %vm511, %v731, 0
        %v762 = vsel %vm511, %v732, 0
        %v765 = vsel %vm511, %v733, 0
        %v768 = vsel %vm511, %v734, 0
        %v771 = vsel %vm511, %v735, 0
        %v774 = vsel %vm511, %v736, 0
        %v777 = vsel %vm511, %v737, 0
        %v780 = vsel %vm511, %v738, 0
        %v783 = vsel %vm511, %v739, 0
        %v786 = vsel %vm511, %v740, 0
        %v789 = vsel %vm511, %v741, 0
        %v792 = vsel %vm511, %v742, 0
        %794 = vmatprep.subr.mxu0 0.0
        %795 = vmatpush1.msra.mxu0 %v744
        %796 = vmatprep.subr.mxu0 0.0
        %797 = vmatpush1.msra.mxu0 %v745
        %798 = vmatprep.subr.mxu0 0.0
        %799 = vmatpush1.msra.mxu0 0.0
        %800 = vmatprep.subr.mxu0 0.0
        %801 = vmatpush1.msra.mxu0 0.0
        %802 = vmatprep.subr.mxu0 0.0
        %803 = vmatpush1.msra.mxu0 0.0
        %804 = vmatprep.subr.mxu0 0.0
        %805 = vmatpush1.msra.mxu0 0.0
        %806 = vmatprep.subr.mxu0 0.0
        %807 = vmatpush1.msra.mxu0 0.0
        %808 = vmatprep.subr.mxu0 0.0
        %809 = vmatpush1.msra.mxu0 0.0
        %810 = vmatprep.subr.mxu0 0.0
        %811 = vmatpush1.msra.mxu0 0.0
        %812 = vmatprep.subr.mxu0 0.0
        %813 = vmatpush1.msra.mxu0 0.0
        %814 = vmatprep.subr.mxu0 0.0
        %815 = vmatpush1.msra.mxu0 0.0
        %816 = vmatprep.subr.mxu0 0.0
        %817 = vmatpush1.msra.mxu0 0.0
        %818 = vmatprep.subr.mxu0 0.0
        %819 = vmatpush1.msra.mxu0 0.0
        %820 = vmatprep.subr.mxu0 0.0
        %821 = vmatpush1.msra.mxu0 0.0
        %822 = vmatprep.subr.mxu0 0.0
        %823 = vmatpush1.msra.mxu0 0.0
        %824 = vmatprep.subr.mxu0 0.0
        %825 = vmatpush1.msra.mxu0 0.0
        %826 = vmatprep.subr.mxu0 0.0
        %827 = vmatpush1.msra.mxu0 0.0
        %828 = vmatprep.subr.mxu0 0.0
        %829 = vmatpush1.msra.mxu0 0.0
        %830 = vmatprep.subr.mxu0 0.0
        %831 = vmatpush1.msra.mxu0 0.0
        %832 = vmatprep.subr.mxu0 0.0
        %833 = vmatpush1.msra.mxu0 0.0
        %834 = vmatprep.subr.mxu0 0.0
        %835 = vmatpush1.msra.mxu0 0.0
        %836 = vmatprep.subr.mxu0 0.0
        %837 = vmatpush1.msra.mxu0 0.0
        %838 = vmatprep.subr.mxu0 0.0
        %839 = vmatpush1.msra.mxu0 0.0
        %840 = vmatprep.subr.mxu0 0.0
        %841 = vmatpush1.msra.mxu0 0.0
        %842 = vmatprep.subr.mxu0 0.0
        %843 = vmatpush1.msra.mxu0 0.0
        %844 = vmatprep.subr.mxu0 0.0
        %845 = vmatpush1.msra.mxu0 0.0
        %846 = vmatprep.subr.mxu0 0.0
        %847 = vmatpush1.msra.mxu0 0.0
        %848 = vmatprep.subr.mxu0 0.0
        %849 = vmatpush1.msra.mxu0 0.0
        %850 = vmatprep.subr.mxu0 0.0
        %851 = vmatpush1.msra.mxu0 0.0
        %852 = vmatprep.subr.mxu0 0.0
        %853 = vmatpush1.msra.mxu0 0.0
        %854 = vmatprep.subr.mxu0 0.0
        %855 = vmatpush1.msra.mxu0 0.0
        %856 = vmatprep.subr.mxu0 0.0
        %857 = vmatpush1.msra.mxu0 0.0
        %858 = vmatprep.mubr.f32.mxu0 0.0
        %859 = vmatmul.mubr.f32.gmra.mrb[0].mxu0 %v747
        %v860 = vpop.f32.mrb[0].mxu0
        %v861 = vadd.f32 0.0, %v860
        %v862 = vpop.f32.mrb[0].mxu0
        %863 = vmatprep.mubr.f32.mxu0 0.0
        %864 = vmatmul.mubr.f32.gmra.mrb[0].mxu0 %v750
        %v865 = vpop.f32.mrb[0].mxu0
        %v866 = vadd.f32 0.0, %v865
        %v867 = vpop.f32.mrb[0].mxu0
        %868 = vmatprep.mubr.f32.mxu0 0.0
        %869 = vmatmul.mubr.f32.gmra.mrb[0].mxu0 %v753
        %v870 = vpop.f32.mrb[0].mxu0
        %v871 = vadd.f32 0.0, %v870
        %v872 = vpop.f32.mrb[0].mxu0
        %873 = vmatprep.mubr.f32.mxu0 0.0
        %874 = vmatmul.mubr.f32.gmra.mrb[0].mxu0 %v756
        %v875 = vpop.f32.mrb[0].mxu0
        %v876 = vadd.f32 0.0, %v875
        %v877 = vpop.f32.mrb[0].mxu0
        %878 = vmatprep.mubr.f32.mxu0 0.0
        %879 = vmatmul.mubr.f32.gmra.mrb[0].mxu0 %v759
        %v880 = vpop.f32.mrb[0].mxu0
        %v881 = vadd.f32 0.0, %v880
        %v882 = vpop.f32.mrb[0].mxu0
        %883 = vmatprep.mubr.f32.mxu0 0.0
        %884 = vmatmul.mubr.f32.gmra.mrb[0].mxu0 %v762
        %v885 = vpop.f32.mrb[0].mxu0
        %v886 = vadd.f32 0.0, %v885
        %v887 = vpop.f32.mrb[0].mxu0
        %888 = vmatprep.mubr.f32.mxu0 0.0
        %889 = vmatmul.mubr.f32.gmra.mrb[0].mxu0 %v765
        %v890 = vpop.f32.mrb[0].mxu0
        %v891 = vadd.f32 0.0, %v890
        %v892 = vpop.f32.mrb[0].mxu0
        %893 = vmatprep.mubr.f32.mxu0 0.0
        %894 = vmatmul.mubr.f32.gmra.mrb[0].mxu0 %v768
        %v895 = vpop.f32.mrb[0].mxu0
        %v896 = vadd.f32 0.0, %v895
        %v897 = vpop.f32.mrb[0].mxu0
        %898 = vmatprep.mubr.f32.mxu0 0.0
        %899 = vmatmul.mubr.f32.gmra.mrb[0].mxu0 %v771
        %v900 = vpop.f32.mrb[0].mxu0
        %v901 = vadd.f32 0.0, %v900
        %v902 = vpop.f32.mrb[0].mxu0
        %903 = vmatprep.mubr.f32.mxu0 0.0
        %904 = vmatmul.mubr.f32.gmra.mrb[0].mxu0 %v774
        %v905 = vpop.f32.mrb[0].mxu0
        %v906 = vadd.f32 0.0, %v905
        %v907 = vpop.f32.mrb[0].mxu0
        %908 = vmatprep.mubr.f32.mxu0 0.0
        %909 = vmatmul.mubr.f32.gmra.mrb[0].mxu0 %v777
        %v910 = vpop.f32.mrb[0].mxu0
        %v911 = vadd.f32 0.0, %v910
        %v912 = vpop.f32.mrb[0].mxu0
        %913 = vmatprep.mubr.f32.mxu0 0.0
        %914 = vmatmul.mubr.f32.gmra.mrb[0].mxu0 %v780
        %v915 = vpop.f32.mrb[0].mxu0
        %v916 = vadd.f32 0.0, %v915
        %v917 = vpop.f32.mrb[0].mxu0
        %918 = vmatprep.mubr.f32.mxu0 0.0
        %919 = vmatmul.mubr.f32.gmra.mrb[0].mxu0 %v783
        %v920 = vpop.f32.mrb[0].mxu0
        %v921 = vadd.f32 0.0, %v920
        %v922 = vpop.f32.mrb[0].mxu0
        %923 = vmatprep.mubr.f32.mxu0 0.0
        %924 = vmatmul.mubr.f32.gmra.mrb[0].mxu0 %v786
        %v925 = vpop.f32.mrb[0].mxu0
        %v926 = vadd.f32 0.0, %v925
        %v927 = vpop.f32.mrb[0].mxu0
        %928 = vmatprep.mubr.f32.mxu0 0.0
        %929 = vmatmul.mubr.f32.gmra.mrb[0].mxu0 %v789
        %v930 = vpop.f32.mrb[0].mxu0
        %v931 = vadd.f32 0.0, %v930
        %v932 = vpop.f32.mrb[0].mxu0
        %933 = vmatprep.mubr.f32.mxu0 0.0
        %934 = vmatmul.mubr.f32.gmra.mrb[0].mxu0 %v792
        %v935 = vpop.f32.mrb[0].mxu0
        %v936 = vadd.f32 0.0, %v935
        %v937 = vpop.f32.mrb[0].mxu0
        %938 = vdwg.mxu0
        %v939 = vadd.f32 %v711, %v861
        %v940 = vadd.f32 %v712, %v866
        %v941 = vadd.f32 %v713, %v871
        %v942 = vadd.f32 %v714, %v876
        %v943 = vadd.f32 %v715, %v881
        %v944 = vadd.f32 %v716, %v886
        %v945 = vadd.f32 %v717, %v891
        %v946 = vadd.f32 %v718, %v896
        %v947 = vadd.f32 %v719, %v901
        %v948 = vadd.f32 %v720, %v906
        %v949 = vadd.f32 %v721, %v911
        %v950 = vadd.f32 %v722, %v916
        %v951 = vadd.f32 %v723, %v921
        %v952 = vadd.f32 %v724, %v926
        %v953 = vadd.f32 %v725, %v931
        %v954 = vadd.f32 %v726, %v936
        %v955 = vld [vmem:[%s491 + $0x2] sm:$0xff]
        %v956 = vld [vmem:[%s491 + $0xa] sm:$0xff]
        %v957 = vld [vmem:[%s491 + $0x12] sm:$0xff]
        %v958 = vld [vmem:[%s491 + $0x1a] sm:$0xff]
        %v959 = vld [vmem:[%s491 + $0x22] sm:$0xff]
        %v960 = vld [vmem:[%s491 + $0x2a] sm:$0xff]
        %v961 = vld [vmem:[%s491 + $0x32] sm:$0xff]
        %v962 = vld [vmem:[%s491 + $0x3a] sm:$0xff]
        %v963 = vld [vmem:[%s491 + $0x42] sm:$0xff]
        %v964 = vld [vmem:[%s491 + $0x4a] sm:$0xff]
        %v965 = vld [vmem:[%s491 + $0x52] sm:$0xff]
        %v966 = vld [vmem:[%s491 + $0x5a] sm:$0xff]
        %v967 = vld [vmem:[%s491 + $0x62] sm:$0xff]
        %v968 = vld [vmem:[%s491 + $0x6a] sm:$0xff]
        %v969 = vld [vmem:[%s491 + $0x72] sm:$0xff]
        %v970 = vld [vmem:[%s491 + $0x7a] sm:$0xff]
        %s971 = scalar_lea.vmem %s1, 32
        %v972 = vld [vmem:[%s971] sm:$0xff]
        %v973 = vld [vmem:[%s971 + $0x8] sm:$0xff]
        %v975 = vsel %vm511, %v955, 0
        %v978 = vsel %vm511, %v956, 0
        %v981 = vsel %vm511, %v957, 0
        %v984 = vsel %vm511, %v958, 0
        %v987 = vsel %vm511, %v959, 0
        %v990 = vsel %vm511, %v960, 0
        %v993 = vsel %vm511, %v961, 0
        %v996 = vsel %vm511, %v962, 0
        %v999 = vsel %vm511, %v963, 0
        %v1002 = vsel %vm511, %v964, 0
        %v1005 = vsel %vm511, %v965, 0
        %v1008 = vsel %vm511, %v966, 0
        %v1011 = vsel %vm511, %v967, 0
        %v1014 = vsel %vm511, %v968, 0
        %v1017 = vsel %vm511, %v969, 0
        %v1020 = vsel %vm511, %v970, 0
        %1022 = vmatprep.subr.mxu0 0.0
        %1023 = vmatpush1.msra.mxu0 %v972
        %1024 = vmatprep.subr.mxu0 0.0
        %1025 = vmatpush1.msra.mxu0 %v973
        %1026 = vmatprep.subr.mxu0 0.0
        %1027 = vmatpush1.msra.mxu0 0.0
        %1028 = vmatprep.subr.mxu0 0.0
        %1029 = vmatpush1.msra.mxu0 0.0
        %1030 = vmatprep.subr.mxu0 0.0
        %1031 = vmatpush1.msra.mxu0 0.0
        %1032 = vmatprep.subr.mxu0 0.0
        %1033 = vmatpush1.msra.mxu0 0.0
        %1034 = vmatprep.subr.mxu0 0.0
        %1035 = vmatpush1.msra.mxu0 0.0
        %1036 = vmatprep.subr.mxu0 0.0
        %1037 = vmatpush1.msra.mxu0 0.0
        %1038 = vmatprep.subr.mxu0 0.0
        %1039 = vmatpush1.msra.mxu0 0.0
        %1040 = vmatprep.subr.mxu0 0.0
        %1041 = vmatpush1.msra.mxu0 0.0
        %1042 = vmatprep.subr.mxu0 0.0
        %1043 = vmatpush1.msra.mxu0 0.0
        %1044 = vmatprep.subr.mxu0 0.0
        %1045 = vmatpush1.msra.mxu0 0.0
        %1046 = vmatprep.subr.mxu0 0.0
        %1047 = vmatpush1.msra.mxu0 0.0
        %1048 = vmatprep.subr.mxu0 0.0
        %1049 = vmatpush1.msra.mxu0 0.0
        %1050 = vmatprep.subr.mxu0 0.0
        %1051 = vmatpush1.msra.mxu0 0.0
        %1052 = vmatprep.subr.mxu0 0.0
        %1053 = vmatpush1.msra.mxu0 0.0
        %1054 = vmatprep.subr.mxu0 0.0
        %1055 = vmatpush1.msra.mxu0 0.0
        %1056 = vmatprep.subr.mxu0 0.0
        %1057 = vmatpush1.msra.mxu0 0.0
        %1058 = vmatprep.subr.mxu0 0.0
        %1059 = vmatpush1.msra.mxu0 0.0
        %1060 = vmatprep.subr.mxu0 0.0
        %1061 = vmatpush1.msra.mxu0 0.0
        %1062 = vmatprep.subr.mxu0 0.0
        %1063 = vmatpush1.msra.mxu0 0.0
        %1064 = vmatprep.subr.mxu0 0.0
        %1065 = vmatpush1.msra.mxu0 0.0
        %1066 = vmatprep.subr.mxu0 0.0
        %1067 = vmatpush1.msra.mxu0 0.0
        %1068 = vmatprep.subr.mxu0 0.0
        %1069 = vmatpush1.msra.mxu0 0.0
        %1070 = vmatprep.subr.mxu0 0.0
        %1071 = vmatpush1.msra.mxu0 0.0
        %1072 = vmatprep.subr.mxu0 0.0
        %1073 = vmatpush1.msra.mxu0 0.0
        %1074 = vmatprep.subr.mxu0 0.0
        %1075 = vmatpush1.msra.mxu0 0.0
        %1076 = vmatprep.subr.mxu0 0.0
        %1077 = vmatpush1.msra.mxu0 0.0
        %1078 = vmatprep.subr.mxu0 0.0
        %1079 = vmatpush1.msra.mxu0 0.0
        %1080 = vmatprep.subr.mxu0 0.0
        %1081 = vmatpush1.msra.mxu0 0.0
        %1082 = vmatprep.subr.mxu0 0.0
        %1083 = vmatpush1.msra.mxu0 0.0
        %1084 = vmatprep.subr.mxu0 0.0
        %1085 = vmatpush1.msra.mxu0 0.0
        %1086 = vmatprep.mubr.f32.mxu0 0.0
        %1087 = vmatmul.mubr.f32.gmra.mrb[0].mxu0 %v975
        %v1088 = vpop.f32.mrb[0].mxu0
        %v1089 = vadd.f32 0.0, %v1088
        %v1090 = vpop.f32.mrb[0].mxu0
        %1091 = vmatprep.mubr.f32.mxu0 0.0
        %1092 = vmatmul.mubr.f32.gmra.mrb[0].mxu0 %v978
        %v1093 = vpop.f32.mrb[0].mxu0
        %v1094 = vadd.f32 0.0, %v1093
        %v1095 = vpop.f32.mrb[0].mxu0
        %1096 = vmatprep.mubr.f32.mxu0 0.0
        %1097 = vmatmul.mubr.f32.gmra.mrb[0].mxu0 %v981
        %v1098 = vpop.f32.mrb[0].mxu0
        %v1099 = vadd.f32 0.0, %v1098
        %v1100 = vpop.f32.mrb[0].mxu0
        %1101 = vmatprep.mubr.f32.mxu0 0.0
        %1102 = vmatmul.mubr.f32.gmra.mrb[0].mxu0 %v984
        %v1103 = vpop.f32.mrb[0].mxu0
        %v1104 = vadd.f32 0.0, %v1103
        %v1105 = vpop.f32.mrb[0].mxu0
        %1106 = vmatprep.mubr.f32.mxu0 0.0
        %1107 = vmatmul.mubr.f32.gmra.mrb[0].mxu0 %v987
        %v1108 = vpop.f32.mrb[0].mxu0
        %v1109 = vadd.f32 0.0, %v1108
        %v1110 = vpop.f32.mrb[0].mxu0
        %1111 = vmatprep.mubr.f32.mxu0 0.0
        %1112 = vmatmul.mubr.f32.gmra.mrb[0].mxu0 %v990
        %v1113 = vpop.f32.mrb[0].mxu0
        %v1114 = vadd.f32 0.0, %v1113
        %v1115 = vpop.f32.mrb[0].mxu0
        %1116 = vmatprep.mubr.f32.mxu0 0.0
        %1117 = vmatmul.mubr.f32.gmra.mrb[0].mxu0 %v993
        %v1118 = vpop.f32.mrb[0].mxu0
        %v1119 = vadd.f32 0.0, %v1118
        %v1120 = vpop.f32.mrb[0].mxu0
        %1121 = vmatprep.mubr.f32.mxu0 0.0
        %1122 = vmatmul.mubr.f32.gmra.mrb[0].mxu0 %v996
        %v1123 = vpop.f32.mrb[0].mxu0
        %v1124 = vadd.f32 0.0, %v1123
        %v1125 = vpop.f32.mrb[0].mxu0
        %1126 = vmatprep.mubr.f32.mxu0 0.0
        %1127 = vmatmul.mubr.f32.gmra.mrb[0].mxu0 %v999
        %v1128 = vpop.f32.mrb[0].mxu0
        %v1129 = vadd.f32 0.0, %v1128
        %v1130 = vpop.f32.mrb[0].mxu0
        %1131 = vmatprep.mubr.f32.mxu0 0.0
        %1132 = vmatmul.mubr.f32.gmra.mrb[0].mxu0 %v1002
        %v1133 = vpop.f32.mrb[0].mxu0
        %v1134 = vadd.f32 0.0, %v1133
        %v1135 = vpop.f32.mrb[0].mxu0
        %1136 = vmatprep.mubr.f32.mxu0 0.0
        %1137 = vmatmul.mubr.f32.gmra.mrb[0].mxu0 %v1005
        %v1138 = vpop.f32.mrb[0].mxu0
        %v1139 = vadd.f32 0.0, %v1138
        %v1140 = vpop.f32.mrb[0].mxu0
        %1141 = vmatprep.mubr.f32.mxu0 0.0
        %1142 = vmatmul.mubr.f32.gmra.mrb[0].mxu0 %v1008
        %v1143 = vpop.f32.mrb[0].mxu0
        %v1144 = vadd.f32 0.0, %v1143
        %v1145 = vpop.f32.mrb[0].mxu0
        %1146 = vmatprep.mubr.f32.mxu0 0.0
        %1147 = vmatmul.mubr.f32.gmra.mrb[0].mxu0 %v1011
        %v1148 = vpop.f32.mrb[0].mxu0
        %v1149 = vadd.f32 0.0, %v1148
        %v1150 = vpop.f32.mrb[0].mxu0
        %1151 = vmatprep.mubr.f32.mxu0 0.0
        %1152 = vmatmul.mubr.f32.gmra.mrb[0].mxu0 %v1014
        %v1153 = vpop.f32.mrb[0].mxu0
        %v1154 = vadd.f32 0.0, %v1153
        %v1155 = vpop.f32.mrb[0].mxu0
        %1156 = vmatprep.mubr.f32.mxu0 0.0
        %1157 = vmatmul.mubr.f32.gmra.mrb[0].mxu0 %v1017
        %v1158 = vpop.f32.mrb[0].mxu0
        %v1159 = vadd.f32 0.0, %v1158
        %v1160 = vpop.f32.mrb[0].mxu0
        %1161 = vmatprep.mubr.f32.mxu0 0.0
        %1162 = vmatmul.mubr.f32.gmra.mrb[0].mxu0 %v1020
        %v1163 = vpop.f32.mrb[0].mxu0
        %v1164 = vadd.f32 0.0, %v1163
        %v1165 = vpop.f32.mrb[0].mxu0
        %1166 = vdwg.mxu0
        %v1167 = vadd.f32 %v939, %v1089
        %v1168 = vadd.f32 %v940, %v1094
        %v1169 = vadd.f32 %v941, %v1099
        %v1170 = vadd.f32 %v942, %v1104
        %v1171 = vadd.f32 %v943, %v1109
        %v1172 = vadd.f32 %v944, %v1114
        %v1173 = vadd.f32 %v945, %v1119
        %v1174 = vadd.f32 %v946, %v1124
        %v1175 = vadd.f32 %v947, %v1129
        %v1176 = vadd.f32 %v948, %v1134
        %v1177 = vadd.f32 %v949, %v1139
        %v1178 = vadd.f32 %v950, %v1144
        %v1179 = vadd.f32 %v951, %v1149
        %v1180 = vadd.f32 %v952, %v1154
        %v1181 = vadd.f32 %v953, %v1159
        %v1182 = vadd.f32 %v954, %v1164
        %v1183 = vld [vmem:[%s491 + $0x3] sm:$0xff]
        %v1184 = vld [vmem:[%s491 + $0xb] sm:$0xff]
        %v1185 = vld [vmem:[%s491 + $0x13] sm:$0xff]
        %v1186 = vld [vmem:[%s491 + $0x1b] sm:$0xff]
        %v1187 = vld [vmem:[%s491 + $0x23] sm:$0xff]
        %v1188 = vld [vmem:[%s491 + $0x2b] sm:$0xff]
        %v1189 = vld [vmem:[%s491 + $0x33] sm:$0xff]
        %v1190 = vld [vmem:[%s491 + $0x3b] sm:$0xff]
        %v1191 = vld [vmem:[%s491 + $0x43] sm:$0xff]
        %v1192 = vld [vmem:[%s491 + $0x4b] sm:$0xff]
        %v1193 = vld [vmem:[%s491 + $0x53] sm:$0xff]
        %v1194 = vld [vmem:[%s491 + $0x5b] sm:$0xff]
        %v1195 = vld [vmem:[%s491 + $0x63] sm:$0xff]
        %v1196 = vld [vmem:[%s491 + $0x6b] sm:$0xff]
        %v1197 = vld [vmem:[%s491 + $0x73] sm:$0xff]
        %v1198 = vld [vmem:[%s491 + $0x7b] sm:$0xff]
        %s1199 = scalar_lea.vmem %s1, 48
        %v1200 = vld [vmem:[%s1199] sm:$0xff]
        %v1201 = vld [vmem:[%s1199 + $0x8] sm:$0xff]
        %v1203 = vsel %vm511, %v1183, 0
        %v1206 = vsel %vm511, %v1184, 0
        %v1209 = vsel %vm511, %v1185, 0
        %v1212 = vsel %vm511, %v1186, 0
        %v1215 = vsel %vm511, %v1187, 0
        %v1218 = vsel %vm511, %v1188, 0
        %v1221 = vsel %vm511, %v1189, 0
        %v1224 = vsel %vm511, %v1190, 0
        %v1227 = vsel %vm511, %v1191, 0
        %v1230 = vsel %vm511, %v1192, 0
        %v1233 = vsel %vm511, %v1193, 0
        %v1236 = vsel %vm511, %v1194, 0
        %v1239 = vsel %vm511, %v1195, 0
        %v1242 = vsel %vm511, %v1196, 0
        %v1245 = vsel %vm511, %v1197, 0
        %v1248 = vsel %vm511, %v1198, 0
        %1250 = vmatprep.subr.mxu0 0.0
        %1251 = vmatpush1.msra.mxu0 %v1200
        %1252 = vmatprep.subr.mxu0 0.0
        %1253 = vmatpush1.msra.mxu0 %v1201
        %1254 = vmatprep.subr.mxu0 0.0
        %1255 = vmatpush1.msra.mxu0 0.0
        %1256 = vmatprep.subr.mxu0 0.0
        %1257 = vmatpush1.msra.mxu0 0.0
        %1258 = vmatprep.subr.mxu0 0.0
        %1259 = vmatpush1.msra.mxu0 0.0
        %1260 = vmatprep.subr.mxu0 0.0
        %1261 = vmatpush1.msra.mxu0 0.0
        %1262 = vmatprep.subr.mxu0 0.0
        %1263 = vmatpush1.msra.mxu0 0.0
        %1264 = vmatprep.subr.mxu0 0.0
        %1265 = vmatpush1.msra.mxu0 0.0
        %1266 = vmatprep.subr.mxu0 0.0
        %1267 = vmatpush1.msra.mxu0 0.0
        %1268 = vmatprep.subr.mxu0 0.0
        %1269 = vmatpush1.msra.mxu0 0.0
        %1270 = vmatprep.subr.mxu0 0.0
        %1271 = vmatpush1.msra.mxu0 0.0
        %1272 = vmatprep.subr.mxu0 0.0
        %1273 = vmatpush1.msra.mxu0 0.0
        %1274 = vmatprep.subr.mxu0 0.0
        %1275 = vmatpush1.msra.mxu0 0.0
        %1276 = vmatprep.subr.mxu0 0.0
        %1277 = vmatpush1.msra.mxu0 0.0
        %1278 = vmatprep.subr.mxu0 0.0
        %1279 = vmatpush1.msra.mxu0 0.0
        %1280 = vmatprep.subr.mxu0 0.0
        %1281 = vmatpush1.msra.mxu0 0.0
        %1282 = vmatprep.subr.mxu0 0.0
        %1283 = vmatpush1.msra.mxu0 0.0
        %1284 = vmatprep.subr.mxu0 0.0
        %1285 = vmatpush1.msra.mxu0 0.0
        %1286 = vmatprep.subr.mxu0 0.0
        %1287 = vmatpush1.msra.mxu0 0.0
        %1288 = vmatprep.subr.mxu0 0.0
        %1289 = vmatpush1.msra.mxu0 0.0
        %1290 = vmatprep.subr.mxu0 0.0
        %1291 = vmatpush1.msra.mxu0 0.0
        %1292 = vmatprep.subr.mxu0 0.0
        %1293 = vmatpush1.msra.mxu0 0.0
        %1294 = vmatprep.subr.mxu0 0.0
        %1295 = vmatpush1.msra.mxu0 0.0
        %1296 = vmatprep.subr.mxu0 0.0
        %1297 = vmatpush1.msra.mxu0 0.0
        %1298 = vmatprep.subr.mxu0 0.0
        %1299 = vmatpush1.msra.mxu0 0.0
        %1300 = vmatprep.subr.mxu0 0.0
        %1301 = vmatpush1.msra.mxu0 0.0
        %1302 = vmatprep.subr.mxu0 0.0
        %1303 = vmatpush1.msra.mxu0 0.0
        %1304 = vmatprep.subr.mxu0 0.0
        %1305 = vmatpush1.msra.mxu0 0.0
        %1306 = vmatprep.subr.mxu0 0.0
        %1307 = vmatpush1.msra.mxu0 0.0
        %1308 = vmatprep.subr.mxu0 0.0
        %1309 = vmatpush1.msra.mxu0 0.0
        %1310 = vmatprep.subr.mxu0 0.0
        %1311 = vmatpush1.msra.mxu0 0.0
        %1312 = vmatprep.subr.mxu0 0.0
        %1313 = vmatpush1.msra.mxu0 0.0
        %1314 = vmatprep.mubr.f32.mxu0 0.0
        %1315 = vmatmul.mubr.f32.gmra.mrb[0].mxu0 %v1203
        %v1316 = vpop.f32.mrb[0].mxu0
        %v1317 = vadd.f32 0.0, %v1316
        %v1318 = vpop.f32.mrb[0].mxu0
        %1319 = vmatprep.mubr.f32.mxu0 0.0
        %1320 = vmatmul.mubr.f32.gmra.mrb[0].mxu0 %v1206
        %v1321 = vpop.f32.mrb[0].mxu0
        %v1322 = vadd.f32 0.0, %v1321
        %v1323 = vpop.f32.mrb[0].mxu0
        %1324 = vmatprep.mubr.f32.mxu0 0.0
        %1325 = vmatmul.mubr.f32.gmra.mrb[0].mxu0 %v1209
        %v1326 = vpop.f32.mrb[0].mxu0
        %v1327 = vadd.f32 0.0, %v1326
        %v1328 = vpop.f32.mrb[0].mxu0
        %1329 = vmatprep.mubr.f32.mxu0 0.0
        %1330 = vmatmul.mubr.f32.gmra.mrb[0].mxu0 %v1212
        %v1331 = vpop.f32.mrb[0].mxu0
        %v1332 = vadd.f32 0.0, %v1331
        %v1333 = vpop.f32.mrb[0].mxu0
        %1334 = vmatprep.mubr.f32.mxu0 0.0
        %1335 = vmatmul.mubr.f32.gmra.mrb[0].mxu0 %v1215
        %v1336 = vpop.f32.mrb[0].mxu0
        %v1337 = vadd.f32 0.0, %v1336
        %v1338 = vpop.f32.mrb[0].mxu0
        %1339 = vmatprep.mubr.f32.mxu0 0.0
        %1340 = vmatmul.mubr.f32.gmra.mrb[0].mxu0 %v1218
        %v1341 = vpop.f32.mrb[0].mxu0
        %v1342 = vadd.f32 0.0, %v1341
        %v1343 = vpop.f32.mrb[0].mxu0
        %1344 = vmatprep.mubr.f32.mxu0 0.0
        %1345 = vmatmul.mubr.f32.gmra.mrb[0].mxu0 %v1221
        %v1346 = vpop.f32.mrb[0].mxu0
        %v1347 = vadd.f32 0.0, %v1346
        %v1348 = vpop.f32.mrb[0].mxu0
        %1349 = vmatprep.mubr.f32.mxu0 0.0
        %1350 = vmatmul.mubr.f32.gmra.mrb[0].mxu0 %v1224
        %v1351 = vpop.f32.mrb[0].mxu0
        %v1352 = vadd.f32 0.0, %v1351
        %v1353 = vpop.f32.mrb[0].mxu0
        %1354 = vmatprep.mubr.f32.mxu0 0.0
        %1355 = vmatmul.mubr.f32.gmra.mrb[0].mxu0 %v1227
        %v1356 = vpop.f32.mrb[0].mxu0
        %v1357 = vadd.f32 0.0, %v1356
        %v1358 = vpop.f32.mrb[0].mxu0
        %1359 = vmatprep.mubr.f32.mxu0 0.0
        %1360 = vmatmul.mubr.f32.gmra.mrb[0].mxu0 %v1230
        %v1361 = vpop.f32.mrb[0].mxu0
        %v1362 = vadd.f32 0.0, %v1361
        %v1363 = vpop.f32.mrb[0].mxu0
        %1364 = vmatprep.mubr.f32.mxu0 0.0
        %1365 = vmatmul.mubr.f32.gmra.mrb[0].mxu0 %v1233
        %v1366 = vpop.f32.mrb[0].mxu0
        %v1367 = vadd.f32 0.0, %v1366
        %v1368 = vpop.f32.mrb[0].mxu0
        %1369 = vmatprep.mubr.f32.mxu0 0.0
        %1370 = vmatmul.mubr.f32.gmra.mrb[0].mxu0 %v1236
        %v1371 = vpop.f32.mrb[0].mxu0
        %v1372 = vadd.f32 0.0, %v1371
        %v1373 = vpop.f32.mrb[0].mxu0
        %1374 = vmatprep.mubr.f32.mxu0 0.0
        %1375 = vmatmul.mubr.f32.gmra.mrb[0].mxu0 %v1239
        %v1376 = vpop.f32.mrb[0].mxu0
        %v1377 = vadd.f32 0.0, %v1376
        %v1378 = vpop.f32.mrb[0].mxu0
        %1379 = vmatprep.mubr.f32.mxu0 0.0
        %1380 = vmatmul.mubr.f32.gmra.mrb[0].mxu0 %v1242
        %v1381 = vpop.f32.mrb[0].mxu0
        %v1382 = vadd.f32 0.0, %v1381
        %v1383 = vpop.f32.mrb[0].mxu0
        %1384 = vmatprep.mubr.f32.mxu0 0.0
        %1385 = vmatmul.mubr.f32.gmra.mrb[0].mxu0 %v1245
        %v1386 = vpop.f32.mrb[0].mxu0
        %v1387 = vadd.f32 0.0, %v1386
        %v1388 = vpop.f32.mrb[0].mxu0
        %1389 = vmatprep.mubr.f32.mxu0 0.0
        %1390 = vmatmul.mubr.f32.gmra.mrb[0].mxu0 %v1248
        %v1391 = vpop.f32.mrb[0].mxu0
        %v1392 = vadd.f32 0.0, %v1391
        %v1393 = vpop.f32.mrb[0].mxu0
        %1394 = vdwg.mxu0
        %v1395 = vadd.f32 %v1167, %v1317
        %v1396 = vadd.f32 %v1168, %v1322
        %v1397 = vadd.f32 %v1169, %v1327
        %v1398 = vadd.f32 %v1170, %v1332
        %v1399 = vadd.f32 %v1171, %v1337
        %v1400 = vadd.f32 %v1172, %v1342
        %v1401 = vadd.f32 %v1173, %v1347
        %v1402 = vadd.f32 %v1174, %v1352
        %v1403 = vadd.f32 %v1175, %v1357
        %v1404 = vadd.f32 %v1176, %v1362
        %v1405 = vadd.f32 %v1177, %v1367
        %v1406 = vadd.f32 %v1178, %v1372
        %v1407 = vadd.f32 %v1179, %v1377
        %v1408 = vadd.f32 %v1180, %v1382
        %v1409 = vadd.f32 %v1181, %v1387
        %v1410 = vadd.f32 %v1182, %v1392
        %v1411 = vlaneseq
        %v1412 = vshrl.u32 %v1411, 7
        %v1413 = vadd.s32 %v1412, 8
        %v1414 = vadd.s32 %v1412, 16
        %v1415 = vadd.s32 %v1412, 24
        %v1416 = vadd.s32 %v1412, 32
        %v1417 = vadd.s32 %v1412, 40
        %v1418 = vadd.s32 %v1412, 48
        %v1419 = vadd.s32 %v1412, 56
        %v1420 = vlaneseq
        %v1421 = vand.u32 %v1420, 127
        %v1422 = vmul.u32 %v1412, 2
        %v1423 = vmul.u32 %v1413, 2
        %v1424 = vmul.u32 %v1414, 2
        %v1425 = vmul.u32 %v1415, 2
        %v1426 = vmul.u32 %v1416, 2
        %v1427 = vmul.u32 %v1417, 2
        %v1428 = vmul.u32 %v1418, 2
        %v1429 = vmul.u32 %v1419, 2
        %vm1430 = vcmp.eq.s32.totalorder %v1421, %v1422
        %vm1431 = vcmp.eq.s32.totalorder %v1421, %v1423
        %vm1432 = vcmp.eq.s32.totalorder %v1421, %v1424
        %vm1433 = vcmp.eq.s32.totalorder %v1421, %v1425
        %vm1434 = vcmp.eq.s32.totalorder %v1421, %v1426
        %vm1435 = vcmp.eq.s32.totalorder %v1421, %v1427
        %vm1436 = vcmp.eq.s32.totalorder %v1421, %v1428
        %vm1437 = vcmp.eq.s32.totalorder %v1421, %v1429
        %v1438 = vsel %vm1430, 1, 0
        %v1439 = vsel %vm1431, 1, 0
        %v1440 = vsel %vm1432, 1, 0
        %v1441 = vsel %vm1433, 1, 0
        %v1442 = vsel %vm1434, 1, 0
        %v1443 = vsel %vm1435, 1, 0
        %v1444 = vsel %vm1436, 1, 0
        %v1445 = vsel %vm1437, 1, 0
        %v1446 = vcvt.s32.f32 %v1438
        %v1447 = vcvt.s32.f32 %v1439
        %v1448 = vcvt.s32.f32 %v1440
        %v1449 = vcvt.s32.f32 %v1441
        %v1450 = vcvt.s32.f32 %v1442
        %v1451 = vcvt.s32.f32 %v1443
        %v1452 = vcvt.s32.f32 %v1444
        %v1453 = vcvt.s32.f32 %v1445
        %1454 = vmatprep.subr.mxu0 0.0
        %1455 = vmatpush1.msra.mxu0 %v1395
        %1456 = vmatprep.subr.mxu0 0.0
        %1457 = vmatpush1.msra.mxu0 %v1396
        %1458 = vmatprep.subr.mxu0 0.0
        %1459 = vmatpush1.msra.mxu0 %v1397
        %1460 = vmatprep.subr.mxu0 0.0
        %1461 = vmatpush1.msra.mxu0 %v1398
        %1462 = vmatprep.subr.mxu0 0.0
        %1463 = vmatpush1.msra.mxu0 %v1399
        %1464 = vmatprep.subr.mxu0 0.0
        %1465 = vmatpush1.msra.mxu0 %v1400
        %1466 = vmatprep.subr.mxu0 0.0
        %1467 = vmatpush1.msra.mxu0 %v1401
        %1468 = vmatprep.subr.mxu0 0.0
        %1469 = vmatpush1.msra.mxu0 %v1402
        %1470 = vmatprep.subr.mxu0 0.0
        %1471 = vmatpush1.msra.mxu0 %v1403
        %1472 = vmatprep.subr.mxu0 0.0
        %1473 = vmatpush1.msra.mxu0 %v1404
        %1474 = vmatprep.subr.mxu0 0.0
        %1475 = vmatpush1.msra.mxu0 %v1405
        %1476 = vmatprep.subr.mxu0 0.0
        %1477 = vmatpush1.msra.mxu0 %v1406
        %1478 = vmatprep.subr.mxu0 0.0
        %1479 = vmatpush1.msra.mxu0 %v1407
        %1480 = vmatprep.subr.mxu0 0.0
        %1481 = vmatpush1.msra.mxu0 %v1408
        %1482 = vmatprep.subr.mxu0 0.0
        %1483 = vmatpush1.msra.mxu0 %v1409
        %1484 = vmatprep.subr.mxu0 0.0
        %1485 = vmatpush1.msra.mxu0 %v1410
        %1486 = vmatprep.subr.mxu0 0.0
        %1487 = vmatpush1.msra.mxu0 0.0
        %1488 = vmatprep.subr.mxu0 0.0
        %1489 = vmatpush1.msra.mxu0 0.0
        %1490 = vmatprep.subr.mxu0 0.0
        %1491 = vmatpush1.msra.mxu0 0.0
        %1492 = vmatprep.subr.mxu0 0.0
        %1493 = vmatpush1.msra.mxu0 0.0
        %1494 = vmatprep.subr.mxu0 0.0
        %1495 = vmatpush1.msra.mxu0 0.0
        %1496 = vmatprep.subr.mxu0 0.0
        %1497 = vmatpush1.msra.mxu0 0.0
        %1498 = vmatprep.subr.mxu0 0.0
        %1499 = vmatpush1.msra.mxu0 0.0
        %1500 = vmatprep.subr.mxu0 0.0
        %1501 = vmatpush1.msra.mxu0 0.0
        %1502 = vmatprep.subr.mxu0 0.0
        %1503 = vmatpush1.msra.mxu0 0.0
        %1504 = vmatprep.subr.mxu0 0.0
        %1505 = vmatpush1.msra.mxu0 0.0
        %1506 = vmatprep.subr.mxu0 0.0
        %1507 = vmatpush1.msra.mxu0 0.0
        %1508 = vmatprep.subr.mxu0 0.0
        %1509 = vmatpush1.msra.mxu0 0.0
        %1510 = vmatprep.subr.mxu0 0.0
        %1511 = vmatpush1.msra.mxu0 0.0
        %1512 = vmatprep.subr.mxu0 0.0
        %1513 = vmatpush1.msra.mxu0 0.0
        %1514 = vmatprep.subr.mxu0 0.0
        %1515 = vmatpush1.msra.mxu0 0.0
        %1516 = vmatprep.subr.mxu0 0.0
        %1517 = vmatpush1.msra.mxu0 0.0
        %1518 = vmatprep.mubr.f32.mxu0 0.0
        %1519 = vmatmul.mubr.f32.gmra.mrb[0].mxu0 %v1446
        %v1520 = vpop.f32.mrb[0].mxu0
        %v1521 = vadd.f32 0.0, %v1520
        %v1522 = vpop.f32.mrb[0].mxu0
        %1523 = vmatprep.mubr.f32.mxu0 0.0
        %1524 = vmatmul.mubr.f32.gmra.mrb[0].mxu0 %v1447
        %v1525 = vpop.f32.mrb[0].mxu0
        %v1526 = vadd.f32 0.0, %v1525
        %v1527 = vpop.f32.mrb[0].mxu0
        %1528 = vmatprep.mubr.f32.mxu0 0.0
        %1529 = vmatmul.mubr.f32.gmra.mrb[0].mxu0 %v1448
        %v1530 = vpop.f32.mrb[0].mxu0
        %v1531 = vadd.f32 0.0, %v1530
        %v1532 = vpop.f32.mrb[0].mxu0
        %1533 = vmatprep.mubr.f32.mxu0 0.0
        %1534 = vmatmul.mubr.f32.gmra.mrb[0].mxu0 %v1449
        %v1535 = vpop.f32.mrb[0].mxu0
        %v1536 = vadd.f32 0.0, %v1535
        %v1537 = vpop.f32.mrb[0].mxu0
        %1538 = vmatprep.mubr.f32.mxu0 0.0
        %1539 = vmatmul.mubr.f32.gmra.mrb[0].mxu0 %v1450
        %v1540 = vpop.f32.mrb[0].mxu0
        %v1541 = vadd.f32 0.0, %v1540
        %v1542 = vpop.f32.mrb[0].mxu0
        %1543 = vmatprep.mubr.f32.mxu0 0.0
        %1544 = vmatmul.mubr.f32.gmra.mrb[0].mxu0 %v1451
        %v1545 = vpop.f32.mrb[0].mxu0
        %v1546 = vadd.f32 0.0, %v1545
        %v1547 = vpop.f32.mrb[0].mxu0
        %1548 = vmatprep.mubr.f32.mxu0 0.0
        %1549 = vmatmul.mubr.f32.gmra.mrb[0].mxu0 %v1452
        %v1550 = vpop.f32.mrb[0].mxu0
        %v1551 = vadd.f32 0.0, %v1550
        %v1552 = vpop.f32.mrb[0].mxu0
        %1553 = vmatprep.mubr.f32.mxu0 0.0
        %1554 = vmatmul.mubr.f32.gmra.mrb[0].mxu0 %v1453
        %v1555 = vpop.f32.mrb[0].mxu0
        %v1556 = vadd.f32 0.0, %v1555
        %v1557 = vpop.f32.mrb[0].mxu0
        %1558 = vdwg.mxu0
        %v1559 = vadd.s32 %v1422, 1
        %v1560 = vadd.s32 %v1423, 1
        %v1561 = vadd.s32 %v1424, 1
        %v1562 = vadd.s32 %v1425, 1
        %v1563 = vadd.s32 %v1426, 1
        %v1564 = vadd.s32 %v1427, 1
        %v1565 = vadd.s32 %v1428, 1
        %v1566 = vadd.s32 %v1429, 1
        %vm1567 = vcmp.eq.s32.totalorder %v1421, %v1559
        %vm1568 = vcmp.eq.s32.totalorder %v1421, %v1560
        %vm1569 = vcmp.eq.s32.totalorder %v1421, %v1561
        %vm1570 = vcmp.eq.s32.totalorder %v1421, %v1562
        %vm1571 = vcmp.eq.s32.totalorder %v1421, %v1563
        %vm1572 = vcmp.eq.s32.totalorder %v1421, %v1564
        %vm1573 = vcmp.eq.s32.totalorder %v1421, %v1565
        %vm1574 = vcmp.eq.s32.totalorder %v1421, %v1566
        %v1575 = vsel %vm1567, 1, 0
        %v1576 = vsel %vm1568, 1, 0
        %v1577 = vsel %vm1569, 1, 0
        %v1578 = vsel %vm1570, 1, 0
        %v1579 = vsel %vm1571, 1, 0
        %v1580 = vsel %vm1572, 1, 0
        %v1581 = vsel %vm1573, 1, 0
        %v1582 = vsel %vm1574, 1, 0
        %v1583 = vcvt.s32.f32 %v1575
        %v1584 = vcvt.s32.f32 %v1576
        %v1585 = vcvt.s32.f32 %v1577
        %v1586 = vcvt.s32.f32 %v1578
        %v1587 = vcvt.s32.f32 %v1579
        %v1588 = vcvt.s32.f32 %v1580
        %v1589 = vcvt.s32.f32 %v1581
        %v1590 = vcvt.s32.f32 %v1582
        %1591 = vmatprep.subr.mxu0 0.0
        %1592 = vmatpush1.msra.mxu0 %v1395
        %1593 = vmatprep.subr.mxu0 0.0
        %1594 = vmatpush1.msra.mxu0 %v1396
        %1595 = vmatprep.subr.mxu0 0.0
        %1596 = vmatpush1.msra.mxu0 %v1397
        %1597 = vmatprep.subr.mxu0 0.0
        %1598 = vmatpush1.msra.mxu0 %v1398
        %1599 = vmatprep.subr.mxu0 0.0
        %1600 = vmatpush1.msra.mxu0 %v1399
        %1601 = vmatprep.subr.mxu0 0.0
        %1602 = vmatpush1.msra.mxu0 %v1400
        %1603 = vmatprep.subr.mxu0 0.0
        %1604 = vmatpush1.msra.mxu0 %v1401
        %1605 = vmatprep.subr.mxu0 0.0
        %1606 = vmatpush1.msra.mxu0 %v1402
        %1607 = vmatprep.subr.mxu0 0.0
        %1608 = vmatpush1.msra.mxu0 %v1403
        %1609 = vmatprep.subr.mxu0 0.0
        %1610 = vmatpush1.msra.mxu0 %v1404
        %1611 = vmatprep.subr.mxu0 0.0
        %1612 = vmatpush1.msra.mxu0 %v1405
        %1613 = vmatprep.subr.mxu0 0.0
        %1614 = vmatpush1.msra.mxu0 %v1406
        %1615 = vmatprep.subr.mxu0 0.0
        %1616 = vmatpush1.msra.mxu0 %v1407
        %1617 = vmatprep.subr.mxu0 0.0
        %1618 = vmatpush1.msra.mxu0 %v1408
        %1619 = vmatprep.subr.mxu0 0.0
        %1620 = vmatpush1.msra.mxu0 %v1409
        %1621 = vmatprep.subr.mxu0 0.0
        %1622 = vmatpush1.msra.mxu0 %v1410
        %1623 = vmatprep.subr.mxu0 0.0
        %1624 = vmatpush1.msra.mxu0 0.0
        %1625 = vmatprep.subr.mxu0 0.0
        %1626 = vmatpush1.msra.mxu0 0.0
        %1627 = vmatprep.subr.mxu0 0.0
        %1628 = vmatpush1.msra.mxu0 0.0
        %1629 = vmatprep.subr.mxu0 0.0
        %1630 = vmatpush1.msra.mxu0 0.0
        %1631 = vmatprep.subr.mxu0 0.0
        %1632 = vmatpush1.msra.mxu0 0.0
        %1633 = vmatprep.subr.mxu0 0.0
        %1634 = vmatpush1.msra.mxu0 0.0
        %1635 = vmatprep.subr.mxu0 0.0
        %1636 = vmatpush1.msra.mxu0 0.0
        %1637 = vmatprep.subr.mxu0 0.0
        %1638 = vmatpush1.msra.mxu0 0.0
        %1639 = vmatprep.subr.mxu0 0.0
        %1640 = vmatpush1.msra.mxu0 0.0
        %1641 = vmatprep.subr.mxu0 0.0
        %1642 = vmatpush1.msra.mxu0 0.0
        %1643 = vmatprep.subr.mxu0 0.0
        %1644 = vmatpush1.msra.mxu0 0.0
        %1645 = vmatprep.subr.mxu0 0.0
        %1646 = vmatpush1.msra.mxu0 0.0
        %1647 = vmatprep.subr.mxu0 0.0
        %1648 = vmatpush1.msra.mxu0 0.0
        %1649 = vmatprep.subr.mxu0 0.0
        %1650 = vmatpush1.msra.mxu0 0.0
        %1651 = vmatprep.subr.mxu0 0.0
        %1652 = vmatpush1.msra.mxu0 0.0
        %1653 = vmatprep.subr.mxu0 0.0
        %1654 = vmatpush1.msra.mxu0 0.0
        %1655 = vmatprep.mubr.f32.mxu0 0.0
        %1656 = vmatmul.mubr.f32.gmra.mrb[0].mxu0 %v1583
        %v1657 = vpop.f32.mrb[0].mxu0
        %v1658 = vadd.f32 0.0, %v1657
        %v1659 = vpop.f32.mrb[0].mxu0
        %1660 = vmatprep.mubr.f32.mxu0 0.0
        %1661 = vmatmul.mubr.f32.gmra.mrb[0].mxu0 %v1584
        %v1662 = vpop.f32.mrb[0].mxu0
        %v1663 = vadd.f32 0.0, %v1662
        %v1664 = vpop.f32.mrb[0].mxu0
        %1665 = vmatprep.mubr.f32.mxu0 0.0
        %1666 = vmatmul.mubr.f32.gmra.mrb[0].mxu0 %v1585
        %v1667 = vpop.f32.mrb[0].mxu0
        %v1668 = vadd.f32 0.0, %v1667
        %v1669 = vpop.f32.mrb[0].mxu0
        %1670 = vmatprep.mubr.f32.mxu0 0.0
        %1671 = vmatmul.mubr.f32.gmra.mrb[0].mxu0 %v1586
        %v1672 = vpop.f32.mrb[0].mxu0
        %v1673 = vadd.f32 0.0, %v1672
        %v1674 = vpop.f32.mrb[0].mxu0
        %1675 = vmatprep.mubr.f32.mxu0 0.0
        %1676 = vmatmul.mubr.f32.gmra.mrb[0].mxu0 %v1587
        %v1677 = vpop.f32.mrb[0].mxu0
        %v1678 = vadd.f32 0.0, %v1677
        %v1679 = vpop.f32.mrb[0].mxu0
        %1680 = vmatprep.mubr.f32.mxu0 0.0
        %1681 = vmatmul.mubr.f32.gmra.mrb[0].mxu0 %v1588
        %v1682 = vpop.f32.mrb[0].mxu0
        %v1683 = vadd.f32 0.0, %v1682
        %v1684 = vpop.f32.mrb[0].mxu0
        %1685 = vmatprep.mubr.f32.mxu0 0.0
        %1686 = vmatmul.mubr.f32.gmra.mrb[0].mxu0 %v1589
        %v1687 = vpop.f32.mrb[0].mxu0
        %v1688 = vadd.f32 0.0, %v1687
        %v1689 = vpop.f32.mrb[0].mxu0
        %1690 = vmatprep.mubr.f32.mxu0 0.0
        %1691 = vmatmul.mubr.f32.gmra.mrb[0].mxu0 %v1590
        %v1692 = vpop.f32.mrb[0].mxu0
        %v1693 = vadd.f32 0.0, %v1692
        %v1694 = vpop.f32.mrb[0].mxu0
        %1695 = vdwg.mxu0
        %v1696 = vmax.f32 %v1521, %v1658
        %v1697 = vmax.f32 %v1526, %v1663
        %v1698 = vmax.f32 %v1531, %v1668
        %v1699 = vmax.f32 %v1536, %v1673
        %v1700 = vmax.f32 %v1541, %v1678
        %v1701 = vmax.f32 %v1546, %v1683
        %v1702 = vmax.f32 %v1551, %v1688
        %v1703 = vmax.f32 %v1556, %v1693
        %v1704 = vmax.f32 %v1696, 0.0
        %v1705 = vmax.f32 %v1697, 0.0
        %v1706 = vmax.f32 %v1698, 0.0
        %v1707 = vmax.f32 %v1699, 0.0
        %v1708 = vmax.f32 %v1700, 0.0
        %v1709 = vmax.f32 %v1701, 0.0
        %v1710 = vmax.f32 %v1702, 0.0
        %v1711 = vmax.f32 %v1703, 0.0
        %v1712 = vadd.s32 %v1412, 4294967295
        %v1713 = vadd.s32 %v1413, 4294967295
        %v1714 = vadd.s32 %v1414, 4294967295
        %v1715 = vadd.s32 %v1415, 4294967295
        %v1716 = vadd.s32 %v1416, 4294967295
        %v1717 = vadd.s32 %v1417, 4294967295
        %v1718 = vadd.s32 %v1418, 4294967295
        %v1719 = vadd.s32 %v1419, 4294967295
        %vm1720 = vcmp.eq.s32.totalorder %v1421, %v1712
        %vm1721 = vcmp.eq.s32.totalorder %v1421, %v1713
        %vm1722 = vcmp.eq.s32.totalorder %v1421, %v1714
        %vm1723 = vcmp.eq.s32.totalorder %v1421, %v1715
        %vm1724 = vcmp.eq.s32.totalorder %v1421, %v1716
        %vm1725 = vcmp.eq.s32.totalorder %v1421, %v1717
        %vm1726 = vcmp.eq.s32.totalorder %v1421, %v1718
        %vm1727 = vcmp.eq.s32.totalorder %v1421, %v1719
        %v1728 = vsel %vm1720, 1, 0
        %v1729 = vsel %vm1721, 1, 0
        %v1730 = vsel %vm1722, 1, 0
        %v1731 = vsel %vm1723, 1, 0
        %v1732 = vsel %vm1724, 1, 0
        %v1733 = vsel %vm1725, 1, 0
        %v1734 = vsel %vm1726, 1, 0
        %v1735 = vsel %vm1727, 1, 0
        %v1736 = vcvt.s32.f32 %v1728
        %v1737 = vcvt.s32.f32 %v1729
        %v1738 = vcvt.s32.f32 %v1730
        %v1739 = vcvt.s32.f32 %v1731
        %v1740 = vcvt.s32.f32 %v1732
        %v1741 = vcvt.s32.f32 %v1733
        %v1742 = vcvt.s32.f32 %v1734
        %v1743 = vcvt.s32.f32 %v1735
        %vm1744 = vcmask 523264
        %v1746 = vsel %vm1744, %v1736, 0
        %v1749 = vsel %vm1744, %v1737, 0
        %v1752 = vsel %vm1744, %v1738, 0
        %v1755 = vsel %vm1744, %v1739, 0
        %v1758 = vsel %vm1744, %v1740, 0
        %v1761 = vsel %vm1744, %v1741, 0
        %v1764 = vsel %vm1744, %v1742, 0
        %v1767 = vsel %vm1744, %v1743, 0
        %1769 = vmatprep.subr.mxu0 0.0
        %1770 = vmatpush1.msra.mxu0 %v1704
        %1771 = vmatprep.subr.mxu0 0.0
        %1772 = vmatpush1.msra.mxu0 %v1705
        %1773 = vmatprep.subr.mxu0 0.0
        %1774 = vmatpush1.msra.mxu0 %v1706
        %1775 = vmatprep.subr.mxu0 0.0
        %1776 = vmatpush1.msra.mxu0 %v1707
        %1777 = vmatprep.subr.mxu0 0.0
        %1778 = vmatpush1.msra.mxu0 %v1708
        %1779 = vmatprep.subr.mxu0 0.0
        %1780 = vmatpush1.msra.mxu0 %v1709
        %1781 = vmatprep.subr.mxu0 0.0
        %1782 = vmatpush1.msra.mxu0 %v1710
        %1783 = vmatprep.subr.mxu0 0.0
        %1784 = vmatpush1.msra.mxu0 %v1711
        %1785 = vmatprep.subr.mxu0 0.0
        %1786 = vmatpush1.msra.mxu0 0.0
        %1787 = vmatprep.subr.mxu0 0.0
        %1788 = vmatpush1.msra.mxu0 0.0
        %1789 = vmatprep.subr.mxu0 0.0
        %1790 = vmatpush1.msra.mxu0 0.0
        %1791 = vmatprep.subr.mxu0 0.0
        %1792 = vmatpush1.msra.mxu0 0.0
        %1793 = vmatprep.subr.mxu0 0.0
        %1794 = vmatpush1.msra.mxu0 0.0
        %1795 = vmatprep.subr.mxu0 0.0
        %1796 = vmatpush1.msra.mxu0 0.0
        %1797 = vmatprep.subr.mxu0 0.0
        %1798 = vmatpush1.msra.mxu0 0.0
        %1799 = vmatprep.subr.mxu0 0.0
        %1800 = vmatpush1.msra.mxu0 0.0
        %1801 = vmatprep.subr.mxu0 0.0
        %1802 = vmatpush1.msra.mxu0 0.0
        %1803 = vmatprep.subr.mxu0 0.0
        %1804 = vmatpush1.msra.mxu0 0.0
        %1805 = vmatprep.subr.mxu0 0.0
        %1806 = vmatpush1.msra.mxu0 0.0
        %1807 = vmatprep.subr.mxu0 0.0
        %1808 = vmatpush1.msra.mxu0 0.0
        %1809 = vmatprep.subr.mxu0 0.0
        %1810 = vmatpush1.msra.mxu0 0.0
        %1811 = vmatprep.subr.mxu0 0.0
        %1812 = vmatpush1.msra.mxu0 0.0
        %1813 = vmatprep.subr.mxu0 0.0
        %1814 = vmatpush1.msra.mxu0 0.0
        %1815 = vmatprep.subr.mxu0 0.0
        %1816 = vmatpush1.msra.mxu0 0.0
        %1817 = vmatprep.subr.mxu0 0.0
        %1818 = vmatpush1.msra.mxu0 0.0
        %1819 = vmatprep.subr.mxu0 0.0
        %1820 = vmatpush1.msra.mxu0 0.0
        %1821 = vmatprep.subr.mxu0 0.0
        %1822 = vmatpush1.msra.mxu0 0.0
        %1823 = vmatprep.subr.mxu0 0.0
        %1824 = vmatpush1.msra.mxu0 0.0
        %1825 = vmatprep.subr.mxu0 0.0
        %1826 = vmatpush1.msra.mxu0 0.0
        %1827 = vmatprep.subr.mxu0 0.0
        %1828 = vmatpush1.msra.mxu0 0.0
        %1829 = vmatprep.subr.mxu0 0.0
        %1830 = vmatpush1.msra.mxu0 0.0
        %1831 = vmatprep.subr.mxu0 0.0
        %1832 = vmatpush1.msra.mxu0 0.0
        %1833 = vmatprep.mubr.f32.mxu0 0.0
        %1834 = vmatmul.mubr.f32.gmra.mrb[0].mxu0 %v1746
        %v1835 = vpop.f32.mrb[0].mxu0
        %v1836 = vadd.f32 0.0, %v1835
        %v1837 = vpop.f32.mrb[0].mxu0
        %1838 = vmatprep.mubr.f32.mxu0 0.0
        %1839 = vmatmul.mubr.f32.gmra.mrb[0].mxu0 %v1749
        %v1840 = vpop.f32.mrb[0].mxu0
        %v1841 = vadd.f32 0.0, %v1840
        %v1842 = vpop.f32.mrb[0].mxu0
        %1843 = vmatprep.mubr.f32.mxu0 0.0
        %1844 = vmatmul.mubr.f32.gmra.mrb[0].mxu0 %v1752
        %v1845 = vpop.f32.mrb[0].mxu0
        %v1846 = vadd.f32 0.0, %v1845
        %v1847 = vpop.f32.mrb[0].mxu0
        %1848 = vmatprep.mubr.f32.mxu0 0.0
        %1849 = vmatmul.mubr.f32.gmra.mrb[0].mxu0 %v1755
        %v1850 = vpop.f32.mrb[0].mxu0
        %v1851 = vadd.f32 0.0, %v1850
        %v1852 = vpop.f32.mrb[0].mxu0
        %1853 = vmatprep.mubr.f32.mxu0 0.0
        %1854 = vmatmul.mubr.f32.gmra.mrb[0].mxu0 %v1758
        %v1855 = vpop.f32.mrb[0].mxu0
        %v1856 = vadd.f32 0.0, %v1855
        %v1857 = vpop.f32.mrb[0].mxu0
        %1858 = vmatprep.mubr.f32.mxu0 0.0
        %1859 = vmatmul.mubr.f32.gmra.mrb[0].mxu0 %v1761
        %v1860 = vpop.f32.mrb[0].mxu0
        %v1861 = vadd.f32 0.0, %v1860
        %v1862 = vpop.f32.mrb[0].mxu0
        %1863 = vmatprep.mubr.f32.mxu0 0.0
        %1864 = vmatmul.mubr.f32.gmra.mrb[0].mxu0 %v1764
        %v1865 = vpop.f32.mrb[0].mxu0
        %v1866 = vadd.f32 0.0, %v1865
        %v1867 = vpop.f32.mrb[0].mxu0
        %1868 = vmatprep.mubr.f32.mxu0 0.0
        %1869 = vmatmul.mubr.f32.gmra.mrb[0].mxu0 %v1767
        %v1870 = vpop.f32.mrb[0].mxu0
        %v1871 = vadd.f32 0.0, %v1870
        %v1872 = vpop.f32.mrb[0].mxu0
        %1873 = vdwg.mxu0
        %v1874 = vadd.s32 %v1412, 1
        %v1875 = vadd.s32 %v1413, 1
        %v1876 = vadd.s32 %v1414, 1
        %v1877 = vadd.s32 %v1415, 1
        %v1878 = vadd.s32 %v1416, 1
        %v1879 = vadd.s32 %v1417, 1
        %v1880 = vadd.s32 %v1418, 1
        %v1881 = vadd.s32 %v1419, 1
        %vm1882 = vcmp.eq.s32.totalorder %v1421, %v1874
        %vm1883 = vcmp.eq.s32.totalorder %v1421, %v1875
        %vm1884 = vcmp.eq.s32.totalorder %v1421, %v1876
        %vm1885 = vcmp.eq.s32.totalorder %v1421, %v1877
        %vm1886 = vcmp.eq.s32.totalorder %v1421, %v1878
        %vm1887 = vcmp.eq.s32.totalorder %v1421, %v1879
        %vm1888 = vcmp.eq.s32.totalorder %v1421, %v1880
        %vm1889 = vcmp.eq.s32.totalorder %v1421, %v1881
        %v1890 = vsel %vm1882, 1, 0
        %v1891 = vsel %vm1883, 1, 0
        %v1892 = vsel %vm1884, 1, 0
        %v1893 = vsel %vm1885, 1, 0
        %v1894 = vsel %vm1886, 1, 0
        %v1895 = vsel %vm1887, 1, 0
        %v1896 = vsel %vm1888, 1, 0
        %v1897 = vsel %vm1889, 1, 0
        %v1898 = vcvt.s32.f32 %v1890
        %v1899 = vcvt.s32.f32 %v1891
        %v1900 = vcvt.s32.f32 %v1892
        %v1901 = vcvt.s32.f32 %v1893
        %v1902 = vcvt.s32.f32 %v1894
        %v1903 = vcvt.s32.f32 %v1895
        %v1904 = vcvt.s32.f32 %v1896
        %v1905 = vcvt.s32.f32 %v1897
        %v1907 = vsel %vm1744, %v1898, 0
        %v1910 = vsel %vm1744, %v1899, 0
        %v1913 = vsel %vm1744, %v1900, 0
        %v1916 = vsel %vm1744, %v1901, 0
        %v1919 = vsel %vm1744, %v1902, 0
        %v1922 = vsel %vm1744, %v1903, 0
        %v1925 = vsel %vm1744, %v1904, 0
        %v1928 = vsel %vm1744, %v1905, 0
        %1930 = vmatprep.subr.mxu0 0.0
        %1931 = vmatpush1.msra.mxu0 %v1704
        %1932 = vmatprep.subr.mxu0 0.0
        %1933 = vmatpush1.msra.mxu0 %v1705
        %1934 = vmatprep.subr.mxu0 0.0
        %1935 = vmatpush1.msra.mxu0 %v1706
        %1936 = vmatprep.subr.mxu0 0.0
        %1937 = vmatpush1.msra.mxu0 %v1707
        %1938 = vmatprep.subr.mxu0 0.0
        %1939 = vmatpush1.msra.mxu0 %v1708
        %1940 = vmatprep.subr.mxu0 0.0
        %1941 = vmatpush1.msra.mxu0 %v1709
        %1942 = vmatprep.subr.mxu0 0.0
        %1943 = vmatpush1.msra.mxu0 %v1710
        %1944 = vmatprep.subr.mxu0 0.0
        %1945 = vmatpush1.msra.mxu0 %v1711
        %1946 = vmatprep.subr.mxu0 0.0
        %1947 = vmatpush1.msra.mxu0 0.0
        %1948 = vmatprep.subr.mxu0 0.0
        %1949 = vmatpush1.msra.mxu0 0.0
        %1950 = vmatprep.subr.mxu0 0.0
        %1951 = vmatpush1.msra.mxu0 0.0
        %1952 = vmatprep.subr.mxu0 0.0
        %1953 = vmatpush1.msra.mxu0 0.0
        %1954 = vmatprep.subr.mxu0 0.0
        %1955 = vmatpush1.msra.mxu0 0.0
        %1956 = vmatprep.subr.mxu0 0.0
        %1957 = vmatpush1.msra.mxu0 0.0
        %1958 = vmatprep.subr.mxu0 0.0
        %1959 = vmatpush1.msra.mxu0 0.0
        %1960 = vmatprep.subr.mxu0 0.0
        %1961 = vmatpush1.msra.mxu0 0.0
        %1962 = vmatprep.subr.mxu0 0.0
        %1963 = vmatpush1.msra.mxu0 0.0
        %1964 = vmatprep.subr.mxu0 0.0
        %1965 = vmatpush1.msra.mxu0 0.0
        %1966 = vmatprep.subr.mxu0 0.0
        %1967 = vmatpush1.msra.mxu0 0.0
        %1968 = vmatprep.subr.mxu0 0.0
        %1969 = vmatpush1.msra.mxu0 0.0
        %1970 = vmatprep.subr.mxu0 0.0
        %1971 = vmatpush1.msra.mxu0 0.0
        %1972 = vmatprep.subr.mxu0 0.0
        %1973 = vmatpush1.msra.mxu0 0.0
        %1974 = vmatprep.subr.mxu0 0.0
        %1975 = vmatpush1.msra.mxu0 0.0
        %1976 = vmatprep.subr.mxu0 0.0
        %1977 = vmatpush1.msra.mxu0 0.0
        %1978 = vmatprep.subr.mxu0 0.0
        %1979 = vmatpush1.msra.mxu0 0.0
        %1980 = vmatprep.subr.mxu0 0.0
        %1981 = vmatpush1.msra.mxu0 0.0
        %1982 = vmatprep.subr.mxu0 0.0
        %1983 = vmatpush1.msra.mxu0 0.0
        %1984 = vmatprep.subr.mxu0 0.0
        %1985 = vmatpush1.msra.mxu0 0.0
        %1986 = vmatprep.subr.mxu0 0.0
        %1987 = vmatpush1.msra.mxu0 0.0
        %1988 = vmatprep.subr.mxu0 0.0
        %1989 = vmatpush1.msra.mxu0 0.0
        %1990 = vmatprep.subr.mxu0 0.0
        %1991 = vmatpush1.msra.mxu0 0.0
        %1992 = vmatprep.subr.mxu0 0.0
        %1993 = vmatpush1.msra.mxu0 0.0
        %1994 = vmatprep.mubr.f32.mxu0 0.0
        %1995 = vmatmul.mubr.f32.gmra.mrb[0].mxu0 %v1907
        %v1996 = vpop.f32.mrb[0].mxu0
        %v1997 = vadd.f32 0.0, %v1996
        %v1998 = vpop.f32.mrb[0].mxu0
        %1999 = vmatprep.mubr.f32.mxu0 0.0
        %2000 = vmatmul.mubr.f32.gmra.mrb[0].mxu0 %v1910
        %v2001 = vpop.f32.mrb[0].mxu0
        %v2002 = vadd.f32 0.0, %v2001
        %v2003 = vpop.f32.mrb[0].mxu0
        %2004 = vmatprep.mubr.f32.mxu0 0.0
        %2005 = vmatmul.mubr.f32.gmra.mrb[0].mxu0 %v1913
        %v2006 = vpop.f32.mrb[0].mxu0
        %v2007 = vadd.f32 0.0, %v2006
        %v2008 = vpop.f32.mrb[0].mxu0
        %2009 = vmatprep.mubr.f32.mxu0 0.0
        %2010 = vmatmul.mubr.f32.gmra.mrb[0].mxu0 %v1916
        %v2011 = vpop.f32.mrb[0].mxu0
        %v2012 = vadd.f32 0.0, %v2011
        %v2013 = vpop.f32.mrb[0].mxu0
        %2014 = vmatprep.mubr.f32.mxu0 0.0
        %2015 = vmatmul.mubr.f32.gmra.mrb[0].mxu0 %v1919
        %v2016 = vpop.f32.mrb[0].mxu0
        %v2017 = vadd.f32 0.0, %v2016
        %v2018 = vpop.f32.mrb[0].mxu0
        %2019 = vmatprep.mubr.f32.mxu0 0.0
        %2020 = vmatmul.mubr.f32.gmra.mrb[0].mxu0 %v1922
        %v2021 = vpop.f32.mrb[0].mxu0
        %v2022 = vadd.f32 0.0, %v2021
        %v2023 = vpop.f32.mrb[0].mxu0
        %2024 = vmatprep.mubr.f32.mxu0 0.0
        %2025 = vmatmul.mubr.f32.gmra.mrb[0].mxu0 %v1925
        %v2026 = vpop.f32.mrb[0].mxu0
        %v2027 = vadd.f32 0.0, %v2026
        %v2028 = vpop.f32.mrb[0].mxu0
        %2029 = vmatprep.mubr.f32.mxu0 0.0
        %2030 = vmatmul.mubr.f32.gmra.mrb[0].mxu0 %v1928
        %v2031 = vpop.f32.mrb[0].mxu0
        %v2032 = vadd.f32 0.0, %v2031
        %v2033 = vpop.f32.mrb[0].mxu0
        %2034 = vdwg.mxu0
        %v2035 = vld [vmem:[%s4] sm:$0x1]
        %v2036 = vld [vmem:[%s3] sm:$0xff]
        %v2037 = vld [vmem:[%s3 + $0x8] sm:$0xff]
        %v2039 = vsel %vm511, %v1836, 0
        %v2042 = vsel %vm511, %v1841, 0
        %v2045 = vsel %vm511, %v1846, 0
        %v2048 = vsel %vm511, %v1851, 0
        %v2051 = vsel %vm511, %v1856, 0
        %v2054 = vsel %vm511, %v1861, 0
        %v2057 = vsel %vm511, %v1866, 0
        %v2060 = vsel %vm511, %v1871, 0
        %2062 = vmatprep.subr.mxu0 0.0
        %2063 = vmatpush1.msra.mxu0 %v2036
        %2064 = vmatprep.subr.mxu0 0.0
        %2065 = vmatpush1.msra.mxu0 %v2037
        %2066 = vmatprep.subr.mxu0 0.0
        %2067 = vmatpush1.msra.mxu0 0.0
        %2068 = vmatprep.subr.mxu0 0.0
        %2069 = vmatpush1.msra.mxu0 0.0
        %2070 = vmatprep.subr.mxu0 0.0
        %2071 = vmatpush1.msra.mxu0 0.0
        %2072 = vmatprep.subr.mxu0 0.0
        %2073 = vmatpush1.msra.mxu0 0.0
        %2074 = vmatprep.subr.mxu0 0.0
        %2075 = vmatpush1.msra.mxu0 0.0
        %2076 = vmatprep.subr.mxu0 0.0
        %2077 = vmatpush1.msra.mxu0 0.0
        %2078 = vmatprep.subr.mxu0 0.0
        %2079 = vmatpush1.msra.mxu0 0.0
        %2080 = vmatprep.subr.mxu0 0.0
        %2081 = vmatpush1.msra.mxu0 0.0
        %2082 = vmatprep.subr.mxu0 0.0
        %2083 = vmatpush1.msra.mxu0 0.0
        %2084 = vmatprep.subr.mxu0 0.0
        %2085 = vmatpush1.msra.mxu0 0.0
        %2086 = vmatprep.subr.mxu0 0.0
        %2087 = vmatpush1.msra.mxu0 0.0
        %2088 = vmatprep.subr.mxu0 0.0
        %2089 = vmatpush1.msra.mxu0 0.0
        %2090 = vmatprep.subr.mxu0 0.0
        %2091 = vmatpush1.msra.mxu0 0.0
        %2092 = vmatprep.subr.mxu0 0.0
        %2093 = vmatpush1.msra.mxu0 0.0
        %2094 = vmatprep.subr.mxu0 0.0
        %2095 = vmatpush1.msra.mxu0 0.0
        %2096 = vmatprep.subr.mxu0 0.0
        %2097 = vmatpush1.msra.mxu0 0.0
        %2098 = vmatprep.subr.mxu0 0.0
        %2099 = vmatpush1.msra.mxu0 0.0
        %2100 = vmatprep.subr.mxu0 0.0
        %2101 = vmatpush1.msra.mxu0 0.0
        %2102 = vmatprep.subr.mxu0 0.0
        %2103 = vmatpush1.msra.mxu0 0.0
        %2104 = vmatprep.subr.mxu0 0.0
        %2105 = vmatpush1.msra.mxu0 0.0
        %2106 = vmatprep.subr.mxu0 0.0
        %2107 = vmatpush1.msra.mxu0 0.0
        %2108 = vmatprep.subr.mxu0 0.0
        %2109 = vmatpush1.msra.mxu0 0.0
        %2110 = vmatprep.subr.mxu0 0.0
        %2111 = vmatpush1.msra.mxu0 0.0
        %2112 = vmatprep.subr.mxu0 0.0
        %2113 = vmatpush1.msra.mxu0 0.0
        %2114 = vmatprep.subr.mxu0 0.0
        %2115 = vmatpush1.msra.mxu0 0.0
        %2116 = vmatprep.subr.mxu0 0.0
        %2117 = vmatpush1.msra.mxu0 0.0
        %2118 = vmatprep.subr.mxu0 0.0
        %2119 = vmatpush1.msra.mxu0 0.0
        %2120 = vmatprep.subr.mxu0 0.0
        %2121 = vmatpush1.msra.mxu0 0.0
        %2122 = vmatprep.subr.mxu0 0.0
        %2123 = vmatpush1.msra.mxu0 0.0
        %2124 = vmatprep.subr.mxu0 0.0
        %2125 = vmatpush1.msra.mxu0 0.0
        %2126 = vmatprep.mubr.f32.mxu0 0.0
        %2127 = vmatmul.mubr.f32.gmra.mrb[0].mxu0 %v2039
        %v2128 = vpop.f32.mrb[0].mxu0
        %v2129 = vadd.f32 0.0, %v2128
        %v2130 = vpop.f32.mrb[0].mxu0
        %2131 = vmatprep.mubr.f32.mxu0 0.0
        %2132 = vmatmul.mubr.f32.gmra.mrb[0].mxu0 %v2042
        %v2133 = vpop.f32.mrb[0].mxu0
        %v2134 = vadd.f32 0.0, %v2133
        %v2135 = vpop.f32.mrb[0].mxu0
        %2136 = vmatprep.mubr.f32.mxu0 0.0
        %2137 = vmatmul.mubr.f32.gmra.mrb[0].mxu0 %v2045
        %v2138 = vpop.f32.mrb[0].mxu0
        %v2139 = vadd.f32 0.0, %v2138
        %v2140 = vpop.f32.mrb[0].mxu0
        %2141 = vmatprep.mubr.f32.mxu0 0.0
        %2142 = vmatmul.mubr.f32.gmra.mrb[0].mxu0 %v2048
        %v2143 = vpop.f32.mrb[0].mxu0
        %v2144 = vadd.f32 0.0, %v2143
        %v2145 = vpop.f32.mrb[0].mxu0
        %2146 = vmatprep.mubr.f32.mxu0 0.0
        %2147 = vmatmul.mubr.f32.gmra.mrb[0].mxu0 %v2051
        %v2148 = vpop.f32.mrb[0].mxu0
        %v2149 = vadd.f32 0.0, %v2148
        %v2150 = vpop.f32.mrb[0].mxu0
        %2151 = vmatprep.mubr.f32.mxu0 0.0
        %2152 = vmatmul.mubr.f32.gmra.mrb[0].mxu0 %v2054
        %v2153 = vpop.f32.mrb[0].mxu0
        %v2154 = vadd.f32 0.0, %v2153
        %v2155 = vpop.f32.mrb[0].mxu0
        %2156 = vmatprep.mubr.f32.mxu0 0.0
        %2157 = vmatmul.mubr.f32.gmra.mrb[0].mxu0 %v2057
        %v2158 = vpop.f32.mrb[0].mxu0
        %v2159 = vadd.f32 0.0, %v2158
        %v2160 = vpop.f32.mrb[0].mxu0
        %2161 = vmatprep.mubr.f32.mxu0 0.0
        %2162 = vmatmul.mubr.f32.gmra.mrb[0].mxu0 %v2060
        %v2163 = vpop.f32.mrb[0].mxu0
        %v2164 = vadd.f32 0.0, %v2163
        %v2165 = vpop.f32.mrb[0].mxu0
        %2166 = vdwg.mxu0
        %v2168 = vlaneseq
        %v2169 = vshrl.u32 %v2168, 7
        %v2170 = vsub.s32 0, %v2169
        %v2171 = vrot.slane %v2035, %v2170
        %v2173 = vadd.f32 %v2171, %v2129
        %v2174 = vadd.f32 %v2171, %v2134
        %v2175 = vadd.f32 %v2171, %v2139
        %v2176 = vadd.f32 %v2171, %v2144
        %v2177 = vadd.f32 %v2171, %v2149
        %v2178 = vadd.f32 %v2171, %v2154
        %v2179 = vadd.f32 %v2171, %v2159
        %v2180 = vadd.f32 %v2171, %v2164
        %s2181 = scalar_lea.vmem %s3, 16
        %v2182 = vld [vmem:[%s2181] sm:$0xff]
        %v2183 = vld [vmem:[%s2181 + $0x8] sm:$0xff]
        %v2185 = vsel %vm511, %v1704, 0
        %v2188 = vsel %vm511, %v1705, 0
        %v2191 = vsel %vm511, %v1706, 0
        %v2194 = vsel %vm511, %v1707, 0
        %v2197 = vsel %vm511, %v1708, 0
        %v2200 = vsel %vm511, %v1709, 0
        %v2203 = vsel %vm511, %v1710, 0
        %v2206 = vsel %vm511, %v1711, 0
        %2208 = vmatprep.subr.mxu0 0.0
        %2209 = vmatpush1.msra.mxu0 %v2182
        %2210 = vmatprep.subr.mxu0 0.0
        %2211 = vmatpush1.msra.mxu0 %v2183
        %2212 = vmatprep.subr.mxu0 0.0
        %2213 = vmatpush1.msra.mxu0 0.0
        %2214 = vmatprep.subr.mxu0 0.0
        %2215 = vmatpush1.msra.mxu0 0.0
        %2216 = vmatprep.subr.mxu0 0.0
        %2217 = vmatpush1.msra.mxu0 0.0
        %2218 = vmatprep.subr.mxu0 0.0
        %2219 = vmatpush1.msra.mxu0 0.0
        %2220 = vmatprep.subr.mxu0 0.0
        %2221 = vmatpush1.msra.mxu0 0.0
        %2222 = vmatprep.subr.mxu0 0.0
        %2223 = vmatpush1.msra.mxu0 0.0
        %2224 = vmatprep.subr.mxu0 0.0
        %2225 = vmatpush1.msra.mxu0 0.0
        %2226 = vmatprep.subr.mxu0 0.0
        %2227 = vmatpush1.msra.mxu0 0.0
        %2228 = vmatprep.subr.mxu0 0.0
        %2229 = vmatpush1.msra.mxu0 0.0
        %2230 = vmatprep.subr.mxu0 0.0
        %2231 = vmatpush1.msra.mxu0 0.0
        %2232 = vmatprep.subr.mxu0 0.0
        %2233 = vmatpush1.msra.mxu0 0.0
        %2234 = vmatprep.subr.mxu0 0.0
        %2235 = vmatpush1.msra.mxu0 0.0
        %2236 = vmatprep.subr.mxu0 0.0
        %2237 = vmatpush1.msra.mxu0 0.0
        %2238 = vmatprep.subr.mxu0 0.0
        %2239 = vmatpush1.msra.mxu0 0.0
        %2240 = vmatprep.subr.mxu0 0.0
        %2241 = vmatpush1.msra.mxu0 0.0
        %2242 = vmatprep.subr.mxu0 0.0
        %2243 = vmatpush1.msra.mxu0 0.0
        %2244 = vmatprep.subr.mxu0 0.0
        %2245 = vmatpush1.msra.mxu0 0.0
        %2246 = vmatprep.subr.mxu0 0.0
        %2247 = vmatpush1.msra.mxu0 0.0
        %2248 = vmatprep.subr.mxu0 0.0
        %2249 = vmatpush1.msra.mxu0 0.0
        %2250 = vmatprep.subr.mxu0 0.0
        %2251 = vmatpush1.msra.mxu0 0.0
        %2252 = vmatprep.subr.mxu0 0.0
        %2253 = vmatpush1.msra.mxu0 0.0
        %2254 = vmatprep.subr.mxu0 0.0
        %2255 = vmatpush1.msra.mxu0 0.0
        %2256 = vmatprep.subr.mxu0 0.0
        %2257 = vmatpush1.msra.mxu0 0.0
        %2258 = vmatprep.subr.mxu0 0.0
        %2259 = vmatpush1.msra.mxu0 0.0
        %2260 = vmatprep.subr.mxu0 0.0
        %2261 = vmatpush1.msra.mxu0 0.0
        %2262 = vmatprep.subr.mxu0 0.0
        %2263 = vmatpush1.msra.mxu0 0.0
        %2264 = vmatprep.subr.mxu0 0.0
        %2265 = vmatpush1.msra.mxu0 0.0
        %2266 = vmatprep.subr.mxu0 0.0
        %2267 = vmatpush1.msra.mxu0 0.0
        %2268 = vmatprep.subr.mxu0 0.0
        %2269 = vmatpush1.msra.mxu0 0.0
        %2270 = vmatprep.subr.mxu0 0.0
        %2271 = vmatpush1.msra.mxu0 0.0
        %2272 = vmatprep.mubr.f32.mxu0 0.0
        %2273 = vmatmul.mubr.f32.gmra.mrb[0].mxu0 %v2185
        %v2274 = vpop.f32.mrb[0].mxu0
        %v2275 = vadd.f32 0.0, %v2274
        %v2276 = vpop.f32.mrb[0].mxu0
        %2277 = vmatprep.mubr.f32.mxu0 0.0
        %2278 = vmatmul.mubr.f32.gmra.mrb[0].mxu0 %v2188
        %v2279 = vpop.f32.mrb[0].mxu0
        %v2280 = vadd.f32 0.0, %v2279
        %v2281 = vpop.f32.mrb[0].mxu0
        %2282 = vmatprep.mubr.f32.mxu0 0.0
        %2283 = vmatmul.mubr.f32.gmra.mrb[0].mxu0 %v2191
        %v2284 = vpop.f32.mrb[0].mxu0
        %v2285 = vadd.f32 0.0, %v2284
        %v2286 = vpop.f32.mrb[0].mxu0
        %2287 = vmatprep.mubr.f32.mxu0 0.0
        %2288 = vmatmul.mubr.f32.gmra.mrb[0].mxu0 %v2194
        %v2289 = vpop.f32.mrb[0].mxu0
        %v2290 = vadd.f32 0.0, %v2289
        %v2291 = vpop.f32.mrb[0].mxu0
        %2292 = vmatprep.mubr.f32.mxu0 0.0
        %2293 = vmatmul.mubr.f32.gmra.mrb[0].mxu0 %v2197
        %v2294 = vpop.f32.mrb[0].mxu0
        %v2295 = vadd.f32 0.0, %v2294
        %v2296 = vpop.f32.mrb[0].mxu0
        %2297 = vmatprep.mubr.f32.mxu0 0.0
        %2298 = vmatmul.mubr.f32.gmra.mrb[0].mxu0 %v2200
        %v2299 = vpop.f32.mrb[0].mxu0
        %v2300 = vadd.f32 0.0, %v2299
        %v2301 = vpop.f32.mrb[0].mxu0
        %2302 = vmatprep.mubr.f32.mxu0 0.0
        %2303 = vmatmul.mubr.f32.gmra.mrb[0].mxu0 %v2203
        %v2304 = vpop.f32.mrb[0].mxu0
        %v2305 = vadd.f32 0.0, %v2304
        %v2306 = vpop.f32.mrb[0].mxu0
        %2307 = vmatprep.mubr.f32.mxu0 0.0
        %2308 = vmatmul.mubr.f32.gmra.mrb[0].mxu0 %v2206
        %v2309 = vpop.f32.mrb[0].mxu0
        %v2310 = vadd.f32 0.0, %v2309
        %v2311 = vpop.f32.mrb[0].mxu0
        %2312 = vdwg.mxu0
        %v2313 = vadd.f32 %v2173, %v2275
        %v2314 = vadd.f32 %v2174, %v2280
        %v2315 = vadd.f32 %v2175, %v2285
        %v2316 = vadd.f32 %v2176, %v2290
        %v2317 = vadd.f32 %v2177, %v2295
        %v2318 = vadd.f32 %v2178, %v2300
        %v2319 = vadd.f32 %v2179, %v2305
        %v2320 = vadd.f32 %v2180, %v2310
        %s2321 = scalar_lea.vmem %s3, 32
        %v2322 = vld [vmem:[%s2321] sm:$0xff]
        %v2323 = vld [vmem:[%s2321 + $0x8] sm:$0xff]
        %v2325 = vsel %vm511, %v1997, 0
        %v2328 = vsel %vm511, %v2002, 0
        %v2331 = vsel %vm511, %v2007, 0
        %v2334 = vsel %vm511, %v2012, 0
        %v2337 = vsel %vm511, %v2017, 0
        %v2340 = vsel %vm511, %v2022, 0
        %v2343 = vsel %vm511, %v2027, 0
        %v2346 = vsel %vm511, %v2032, 0
        %2348 = vmatprep.subr.mxu0 0.0
        %2349 = vmatpush1.msra.mxu0 %v2322
        %2350 = vmatprep.subr.mxu0 0.0
        %2351 = vmatpush1.msra.mxu0 %v2323
        %2352 = vmatprep.subr.mxu0 0.0
        %2353 = vmatpush1.msra.mxu0 0.0
        %2354 = vmatprep.subr.mxu0 0.0
        %2355 = vmatpush1.msra.mxu0 0.0
        %2356 = vmatprep.subr.mxu0 0.0
        %2357 = vmatpush1.msra.mxu0 0.0
        %2358 = vmatprep.subr.mxu0 0.0
        %2359 = vmatpush1.msra.mxu0 0.0
        %2360 = vmatprep.subr.mxu0 0.0
        %2361 = vmatpush1.msra.mxu0 0.0
        %2362 = vmatprep.subr.mxu0 0.0
        %2363 = vmatpush1.msra.mxu0 0.0
        %2364 = vmatprep.subr.mxu0 0.0
        %2365 = vmatpush1.msra.mxu0 0.0
        %2366 = vmatprep.subr.mxu0 0.0
        %2367 = vmatpush1.msra.mxu0 0.0
        %2368 = vmatprep.subr.mxu0 0.0
        %2369 = vmatpush1.msra.mxu0 0.0
        %2370 = vmatprep.subr.mxu0 0.0
        %2371 = vmatpush1.msra.mxu0 0.0
        %2372 = vmatprep.subr.mxu0 0.0
        %2373 = vmatpush1.msra.mxu0 0.0
        %2374 = vmatprep.subr.mxu0 0.0
        %2375 = vmatpush1.msra.mxu0 0.0
        %2376 = vmatprep.subr.mxu0 0.0
        %2377 = vmatpush1.msra.mxu0 0.0
        %2378 = vmatprep.subr.mxu0 0.0
        %2379 = vmatpush1.msra.mxu0 0.0
        %2380 = vmatprep.subr.mxu0 0.0
        %2381 = vmatpush1.msra.mxu0 0.0
        %2382 = vmatprep.subr.mxu0 0.0
        %2383 = vmatpush1.msra.mxu0 0.0
        %2384 = vmatprep.subr.mxu0 0.0
        %2385 = vmatpush1.msra.mxu0 0.0
        %2386 = vmatprep.subr.mxu0 0.0
        %2387 = vmatpush1.msra.mxu0 0.0
        %2388 = vmatprep.subr.mxu0 0.0
        %2389 = vmatpush1.msra.mxu0 0.0
        %2390 = vmatprep.subr.mxu0 0.0
        %2391 = vmatpush1.msra.mxu0 0.0
        %2392 = vmatprep.subr.mxu0 0.0
        %2393 = vmatpush1.msra.mxu0 0.0
        %2394 = vmatprep.subr.mxu0 0.0
        %2395 = vmatpush1.msra.mxu0 0.0
        %2396 = vmatprep.subr.mxu0 0.0
        %2397 = vmatpush1.msra.mxu0 0.0
        %2398 = vmatprep.subr.mxu0 0.0
        %2399 = vmatpush1.msra.mxu0 0.0
        %2400 = vmatprep.subr.mxu0 0.0
        %2401 = vmatpush1.msra.mxu0 0.0
        %2402 = vmatprep.subr.mxu0 0.0
        %2403 = vmatpush1.msra.mxu0 0.0
        %2404 = vmatprep.subr.mxu0 0.0
        %2405 = vmatpush1.msra.mxu0 0.0
        %2406 = vmatprep.subr.mxu0 0.0
        %2407 = vmatpush1.msra.mxu0 0.0
        %2408 = vmatprep.subr.mxu0 0.0
        %2409 = vmatpush1.msra.mxu0 0.0
        %2410 = vmatprep.subr.mxu0 0.0
        %2411 = vmatpush1.msra.mxu0 0.0
        %2412 = vmatprep.mubr.f32.mxu0 0.0
        %2413 = vmatmul.mubr.f32.gmra.mrb[0].mxu0 %v2325
        %v2414 = vpop.f32.mrb[0].mxu0
        %v2415 = vadd.f32 0.0, %v2414
        %v2416 = vpop.f32.mrb[0].mxu0
        %2417 = vmatprep.mubr.f32.mxu0 0.0
        %2418 = vmatmul.mubr.f32.gmra.mrb[0].mxu0 %v2328
        %v2419 = vpop.f32.mrb[0].mxu0
        %v2420 = vadd.f32 0.0, %v2419
        %v2421 = vpop.f32.mrb[0].mxu0
        %2422 = vmatprep.mubr.f32.mxu0 0.0
        %2423 = vmatmul.mubr.f32.gmra.mrb[0].mxu0 %v2331
        %v2424 = vpop.f32.mrb[0].mxu0
        %v2425 = vadd.f32 0.0, %v2424
        %v2426 = vpop.f32.mrb[0].mxu0
        %2427 = vmatprep.mubr.f32.mxu0 0.0
        %2428 = vmatmul.mubr.f32.gmra.mrb[0].mxu0 %v2334
        %v2429 = vpop.f32.mrb[0].mxu0
        %v2430 = vadd.f32 0.0, %v2429
        %v2431 = vpop.f32.mrb[0].mxu0
        %2432 = vmatprep.mubr.f32.mxu0 0.0
        %2433 = vmatmul.mubr.f32.gmra.mrb[0].mxu0 %v2337
        %v2434 = vpop.f32.mrb[0].mxu0
        %v2435 = vadd.f32 0.0, %v2434
        %v2436 = vpop.f32.mrb[0].mxu0
        %2437 = vmatprep.mubr.f32.mxu0 0.0
        %2438 = vmatmul.mubr.f32.gmra.mrb[0].mxu0 %v2340
        %v2439 = vpop.f32.mrb[0].mxu0
        %v2440 = vadd.f32 0.0, %v2439
        %v2441 = vpop.f32.mrb[0].mxu0
        %2442 = vmatprep.mubr.f32.mxu0 0.0
        %2443 = vmatmul.mubr.f32.gmra.mrb[0].mxu0 %v2343
        %v2444 = vpop.f32.mrb[0].mxu0
        %v2445 = vadd.f32 0.0, %v2444
        %v2446 = vpop.f32.mrb[0].mxu0
        %2447 = vmatprep.mubr.f32.mxu0 0.0
        %2448 = vmatmul.mubr.f32.gmra.mrb[0].mxu0 %v2346
        %v2449 = vpop.f32.mrb[0].mxu0
        %v2450 = vadd.f32 0.0, %v2449
        %v2451 = vpop.f32.mrb[0].mxu0
        %2452 = vdwg.mxu0
        %v2453 = vadd.f32 %v2313, %v2415
        %v2454 = vadd.f32 %v2314, %v2420
        %v2455 = vadd.f32 %v2315, %v2425
        %v2456 = vadd.f32 %v2316, %v2430
        %v2457 = vadd.f32 %v2317, %v2435
        %v2458 = vadd.f32 %v2318, %v2440
        %v2459 = vadd.f32 %v2319, %v2445
        %v2460 = vadd.f32 %v2320, %v2450
        %v2462 = vsel %vm1744, %v1446, 0
        %v2465 = vsel %vm1744, %v1447, 0
        %v2468 = vsel %vm1744, %v1448, 0
        %v2471 = vsel %vm1744, %v1449, 0
        %2473 = vmatprep.subr.mxu0 0.0
        %2474 = vmatpush1.msra.mxu0 %v2453
        %2475 = vmatprep.subr.mxu0 0.0
        %2476 = vmatpush1.msra.mxu0 %v2454
        %2477 = vmatprep.subr.mxu0 0.0
        %2478 = vmatpush1.msra.mxu0 %v2455
        %2479 = vmatprep.subr.mxu0 0.0
        %2480 = vmatpush1.msra.mxu0 %v2456
        %2481 = vmatprep.subr.mxu0 0.0
        %2482 = vmatpush1.msra.mxu0 %v2457
        %2483 = vmatprep.subr.mxu0 0.0
        %2484 = vmatpush1.msra.mxu0 %v2458
        %2485 = vmatprep.subr.mxu0 0.0
        %2486 = vmatpush1.msra.mxu0 %v2459
        %2487 = vmatprep.subr.mxu0 0.0
        %2488 = vmatpush1.msra.mxu0 %v2460
        %2489 = vmatprep.subr.mxu0 0.0
        %2490 = vmatpush1.msra.mxu0 0.0
        %2491 = vmatprep.subr.mxu0 0.0
        %2492 = vmatpush1.msra.mxu0 0.0
        %2493 = vmatprep.subr.mxu0 0.0
        %2494 = vmatpush1.msra.mxu0 0.0
        %2495 = vmatprep.subr.mxu0 0.0
        %2496 = vmatpush1.msra.mxu0 0.0
        %2497 = vmatprep.subr.mxu0 0.0
        %2498 = vmatpush1.msra.mxu0 0.0
        %2499 = vmatprep.subr.mxu0 0.0
        %2500 = vmatpush1.msra.mxu0 0.0
        %2501 = vmatprep.subr.mxu0 0.0
        %2502 = vmatpush1.msra.mxu0 0.0
        %2503 = vmatprep.subr.mxu0 0.0
        %2504 = vmatpush1.msra.mxu0 0.0
        %2505 = vmatprep.subr.mxu0 0.0
        %2506 = vmatpush1.msra.mxu0 0.0
        %2507 = vmatprep.subr.mxu0 0.0
        %2508 = vmatpush1.msra.mxu0 0.0
        %2509 = vmatprep.subr.mxu0 0.0
        %2510 = vmatpush1.msra.mxu0 0.0
        %2511 = vmatprep.subr.mxu0 0.0
        %2512 = vmatpush1.msra.mxu0 0.0
        %2513 = vmatprep.subr.mxu0 0.0
        %2514 = vmatpush1.msra.mxu0 0.0
        %2515 = vmatprep.subr.mxu0 0.0
        %2516 = vmatpush1.msra.mxu0 0.0
        %2517 = vmatprep.subr.mxu0 0.0
        %2518 = vmatpush1.msra.mxu0 0.0
        %2519 = vmatprep.subr.mxu0 0.0
        %2520 = vmatpush1.msra.mxu0 0.0
        %2521 = vmatprep.subr.mxu0 0.0
        %2522 = vmatpush1.msra.mxu0 0.0
        %2523 = vmatprep.subr.mxu0 0.0
        %2524 = vmatpush1.msra.mxu0 0.0
        %2525 = vmatprep.subr.mxu0 0.0
        %2526 = vmatpush1.msra.mxu0 0.0
        %2527 = vmatprep.subr.mxu0 0.0
        %2528 = vmatpush1.msra.mxu0 0.0
        %2529 = vmatprep.subr.mxu0 0.0
        %2530 = vmatpush1.msra.mxu0 0.0
        %2531 = vmatprep.subr.mxu0 0.0
        %2532 = vmatpush1.msra.mxu0 0.0
        %2533 = vmatprep.subr.mxu0 0.0
        %2534 = vmatpush1.msra.mxu0 0.0
        %2535 = vmatprep.subr.mxu0 0.0
        %2536 = vmatpush1.msra.mxu0 0.0
        %2537 = vmatprep.mubr.f32.mxu0 0.0
        %2538 = vmatmul.mubr.f32.gmra.mrb[0].mxu0 %v2462
        %v2539 = vpop.f32.mrb[0].mxu0
        %v2540 = vadd.f32 0.0, %v2539
        %v2541 = vpop.f32.mrb[0].mxu0
        %2542 = vmatprep.mubr.f32.mxu0 0.0
        %2543 = vmatmul.mubr.f32.gmra.mrb[0].mxu0 %v2465
        %v2544 = vpop.f32.mrb[0].mxu0
        %v2545 = vadd.f32 0.0, %v2544
        %v2546 = vpop.f32.mrb[0].mxu0
        %2547 = vmatprep.mubr.f32.mxu0 0.0
        %2548 = vmatmul.mubr.f32.gmra.mrb[0].mxu0 %v2468
        %v2549 = vpop.f32.mrb[0].mxu0
        %v2550 = vadd.f32 0.0, %v2549
        %v2551 = vpop.f32.mrb[0].mxu0
        %2552 = vmatprep.mubr.f32.mxu0 0.0
        %2553 = vmatmul.mubr.f32.gmra.mrb[0].mxu0 %v2471
        %v2554 = vpop.f32.mrb[0].mxu0
        %v2555 = vadd.f32 0.0, %v2554
        %v2556 = vpop.f32.mrb[0].mxu0
        %2557 = vdwg.mxu0
        %v2559 = vsel %vm1744, %v1583, 0
        %v2562 = vsel %vm1744, %v1584, 0
        %v2565 = vsel %vm1744, %v1585, 0
        %v2568 = vsel %vm1744, %v1586, 0
        %2570 = vmatprep.subr.mxu0 0.0
        %2571 = vmatpush1.msra.mxu0 %v2453
        %2572 = vmatprep.subr.mxu0 0.0
        %2573 = vmatpush1.msra.mxu0 %v2454
        %2574 = vmatprep.subr.mxu0 0.0
        %2575 = vmatpush1.msra.mxu0 %v2455
        %2576 = vmatprep.subr.mxu0 0.0
        %2577 = vmatpush1.msra.mxu0 %v2456
        %2578 = vmatprep.subr.mxu0 0.0
        %2579 = vmatpush1.msra.mxu0 %v2457
        %2580 = vmatprep.subr.mxu0 0.0
        %2581 = vmatpush1.msra.mxu0 %v2458
        %2582 = vmatprep.subr.mxu0 0.0
        %2583 = vmatpush1.msra.mxu0 %v2459
        %2584 = vmatprep.subr.mxu0 0.0
        %2585 = vmatpush1.msra.mxu0 %v2460
        %2586 = vmatprep.subr.mxu0 0.0
        %2587 = vmatpush1.msra.mxu0 0.0
        %2588 = vmatprep.subr.mxu0 0.0
        %2589 = vmatpush1.msra.mxu0 0.0
        %2590 = vmatprep.subr.mxu0 0.0
        %2591 = vmatpush1.msra.mxu0 0.0
        %2592 = vmatprep.subr.mxu0 0.0
        %2593 = vmatpush1.msra.mxu0 0.0
        %2594 = vmatprep.subr.mxu0 0.0
        %2595 = vmatpush1.msra.mxu0 0.0
        %2596 = vmatprep.subr.mxu0 0.0
        %2597 = vmatpush1.msra.mxu0 0.0
        %2598 = vmatprep.subr.mxu0 0.0
        %2599 = vmatpush1.msra.mxu0 0.0
        %2600 = vmatprep.subr.mxu0 0.0
        %2601 = vmatpush1.msra.mxu0 0.0
        %2602 = vmatprep.subr.mxu0 0.0
        %2603 = vmatpush1.msra.mxu0 0.0
        %2604 = vmatprep.subr.mxu0 0.0
        %2605 = vmatpush1.msra.mxu0 0.0
        %2606 = vmatprep.subr.mxu0 0.0
        %2607 = vmatpush1.msra.mxu0 0.0
        %2608 = vmatprep.subr.mxu0 0.0
        %2609 = vmatpush1.msra.mxu0 0.0
        %2610 = vmatprep.subr.mxu0 0.0
        %2611 = vmatpush1.msra.mxu0 0.0
        %2612 = vmatprep.subr.mxu0 0.0
        %2613 = vmatpush1.msra.mxu0 0.0
        %2614 = vmatprep.subr.mxu0 0.0
        %2615 = vmatpush1.msra.mxu0 0.0
        %2616 = vmatprep.subr.mxu0 0.0
        %2617 = vmatpush1.msra.mxu0 0.0
        %2618 = vmatprep.subr.mxu0 0.0
        %2619 = vmatpush1.msra.mxu0 0.0
        %2620 = vmatprep.subr.mxu0 0.0
        %2621 = vmatpush1.msra.mxu0 0.0
        %2622 = vmatprep.subr.mxu0 0.0
        %2623 = vmatpush1.msra.mxu0 0.0
        %2624 = vmatprep.subr.mxu0 0.0
        %2625 = vmatpush1.msra.mxu0 0.0
        %2626 = vmatprep.subr.mxu0 0.0
        %2627 = vmatpush1.msra.mxu0 0.0
        %2628 = vmatprep.subr.mxu0 0.0
        %2629 = vmatpush1.msra.mxu0 0.0
        %2630 = vmatprep.subr.mxu0 0.0
        %2631 = vmatpush1.msra.mxu0 0.0
        %2632 = vmatprep.subr.mxu0 0.0
        %2633 = vmatpush1.msra.mxu0 0.0
        %2634 = vmatprep.mubr.f32.mxu0 0.0
        %2635 = vmatmul.mubr.f32.gmra.mrb[0].mxu0 %v2559
        %v2636 = vpop.f32.mrb[0].mxu0
        %v2637 = vadd.f32 0.0, %v2636
        %v2638 = vpop.f32.mrb[0].mxu0
        %2639 = vmatprep.mubr.f32.mxu0 0.0
        %2640 = vmatmul.mubr.f32.gmra.mrb[0].mxu0 %v2562
        %v2641 = vpop.f32.mrb[0].mxu0
        %v2642 = vadd.f32 0.0, %v2641
        %v2643 = vpop.f32.mrb[0].mxu0
        %2644 = vmatprep.mubr.f32.mxu0 0.0
        %2645 = vmatmul.mubr.f32.gmra.mrb[0].mxu0 %v2565
        %v2646 = vpop.f32.mrb[0].mxu0
        %v2647 = vadd.f32 0.0, %v2646
        %v2648 = vpop.f32.mrb[0].mxu0
        %2649 = vmatprep.mubr.f32.mxu0 0.0
        %2650 = vmatmul.mubr.f32.gmra.mrb[0].mxu0 %v2568
        %v2651 = vpop.f32.mrb[0].mxu0
        %v2652 = vadd.f32 0.0, %v2651
        %v2653 = vpop.f32.mrb[0].mxu0
        %2654 = vdwg.mxu0
        %v2655 = vmax.f32 %v2540, %v2637
        %v2656 = vmax.f32 %v2545, %v2642
        %v2657 = vmax.f32 %v2550, %v2647
        %v2658 = vmax.f32 %v2555, %v2652
        %v2659 = vmax.f32 %v2655, 0.0
        %v2660 = vmax.f32 %v2656, 0.0
        %v2661 = vmax.f32 %v2657, 0.0
        %v2662 = vmax.f32 %v2658, 0.0
        %vm2663 = vcmask 261120
        %v2664 = vsel %vm2663, %v1736, 0
        %v2666 = vsel %vm2663, %v1737, 0
        %v2668 = vsel %vm2663, %v1738, 0
        %v2670 = vsel %vm2663, %v1739, 0
        %2672 = vmatprep.subr.mxu0 0.0
        %2673 = vmatpush1.msra.mxu0 %v2659
        %2674 = vmatprep.subr.mxu0 0.0
        %2675 = vmatpush1.msra.mxu0 %v2660
        %2676 = vmatprep.subr.mxu0 0.0
        %2677 = vmatpush1.msra.mxu0 %v2661
        %2678 = vmatprep.subr.mxu0 0.0
        %2679 = vmatpush1.msra.mxu0 %v2662
        %2680 = vmatprep.subr.mxu0 0.0
        %2681 = vmatpush1.msra.mxu0 0.0
        %2682 = vmatprep.subr.mxu0 0.0
        %2683 = vmatpush1.msra.mxu0 0.0
        %2684 = vmatprep.subr.mxu0 0.0
        %2685 = vmatpush1.msra.mxu0 0.0
        %2686 = vmatprep.subr.mxu0 0.0
        %2687 = vmatpush1.msra.mxu0 0.0
        %2688 = vmatprep.subr.mxu0 0.0
        %2689 = vmatpush1.msra.mxu0 0.0
        %2690 = vmatprep.subr.mxu0 0.0
        %2691 = vmatpush1.msra.mxu0 0.0
        %2692 = vmatprep.subr.mxu0 0.0
        %2693 = vmatpush1.msra.mxu0 0.0
        %2694 = vmatprep.subr.mxu0 0.0
        %2695 = vmatpush1.msra.mxu0 0.0
        %2696 = vmatprep.subr.mxu0 0.0
        %2697 = vmatpush1.msra.mxu0 0.0
        %2698 = vmatprep.subr.mxu0 0.0
        %2699 = vmatpush1.msra.mxu0 0.0
        %2700 = vmatprep.subr.mxu0 0.0
        %2701 = vmatpush1.msra.mxu0 0.0
        %2702 = vmatprep.subr.mxu0 0.0
        %2703 = vmatpush1.msra.mxu0 0.0
        %2704 = vmatprep.subr.mxu0 0.0
        %2705 = vmatpush1.msra.mxu0 0.0
        %2706 = vmatprep.subr.mxu0 0.0
        %2707 = vmatpush1.msra.mxu0 0.0
        %2708 = vmatprep.subr.mxu0 0.0
        %2709 = vmatpush1.msra.mxu0 0.0
        %2710 = vmatprep.subr.mxu0 0.0
        %2711 = vmatpush1.msra.mxu0 0.0
        %2712 = vmatprep.subr.mxu0 0.0
        %2713 = vmatpush1.msra.mxu0 0.0
        %2714 = vmatprep.subr.mxu0 0.0
        %2715 = vmatpush1.msra.mxu0 0.0
        %2716 = vmatprep.subr.mxu0 0.0
        %2717 = vmatpush1.msra.mxu0 0.0
        %2718 = vmatprep.subr.mxu0 0.0
        %2719 = vmatpush1.msra.mxu0 0.0
        %2720 = vmatprep.subr.mxu0 0.0
        %2721 = vmatpush1.msra.mxu0 0.0
        %2722 = vmatprep.subr.mxu0 0.0
        %2723 = vmatpush1.msra.mxu0 0.0
        %2724 = vmatprep.subr.mxu0 0.0
        %2725 = vmatpush1.msra.mxu0 0.0
        %2726 = vmatprep.subr.mxu0 0.0
        %2727 = vmatpush1.msra.mxu0 0.0
        %2728 = vmatprep.subr.mxu0 0.0
        %2729 = vmatpush1.msra.mxu0 0.0
        %2730 = vmatprep.subr.mxu0 0.0
        %2731 = vmatpush1.msra.mxu0 0.0
        %2732 = vmatprep.subr.mxu0 0.0
        %2733 = vmatpush1.msra.mxu0 0.0
        %2734 = vmatprep.subr.mxu0 0.0
        %2735 = vmatpush1.msra.mxu0 0.0
        %2736 = vmatprep.mubr.f32.mxu0 0.0
        %2737 = vmatmul.mubr.f32.gmra.mrb[0].mxu0 %v2664
        %v2738 = vpop.f32.mrb[0].mxu0
        %v2739 = vadd.f32 0.0, %v2738
        %v2740 = vpop.f32.mrb[0].mxu0
        %2741 = vmatprep.mubr.f32.mxu0 0.0
        %2742 = vmatmul.mubr.f32.gmra.mrb[0].mxu0 %v2666
        %v2743 = vpop.f32.mrb[0].mxu0
        %v2744 = vadd.f32 0.0, %v2743
        %v2745 = vpop.f32.mrb[0].mxu0
        %2746 = vmatprep.mubr.f32.mxu0 0.0
        %2747 = vmatmul.mubr.f32.gmra.mrb[0].mxu0 %v2668
        %v2748 = vpop.f32.mrb[0].mxu0
        %v2749 = vadd.f32 0.0, %v2748
        %v2750 = vpop.f32.mrb[0].mxu0
        %2751 = vmatprep.mubr.f32.mxu0 0.0
        %2752 = vmatmul.mubr.f32.gmra.mrb[0].mxu0 %v2670
        %v2753 = vpop.f32.mrb[0].mxu0
        %v2754 = vadd.f32 0.0, %v2753
        %v2755 = vpop.f32.mrb[0].mxu0
        %2756 = vdwg.mxu0
        %v2757 = vsel %vm2663, %v1898, 0
        %v2759 = vsel %vm2663, %v1899, 0
        %v2761 = vsel %vm2663, %v1900, 0
        %v2763 = vsel %vm2663, %v1901, 0
        %2765 = vmatprep.subr.mxu0 0.0
        %2766 = vmatpush1.msra.mxu0 %v2659
        %2767 = vmatprep.subr.mxu0 0.0
        %2768 = vmatpush1.msra.mxu0 %v2660
        %2769 = vmatprep.subr.mxu0 0.0
        %2770 = vmatpush1.msra.mxu0 %v2661
        %2771 = vmatprep.subr.mxu0 0.0
        %2772 = vmatpush1.msra.mxu0 %v2662
        %2773 = vmatprep.subr.mxu0 0.0
        %2774 = vmatpush1.msra.mxu0 0.0
        %2775 = vmatprep.subr.mxu0 0.0
        %2776 = vmatpush1.msra.mxu0 0.0
        %2777 = vmatprep.subr.mxu0 0.0
        %2778 = vmatpush1.msra.mxu0 0.0
        %2779 = vmatprep.subr.mxu0 0.0
        %2780 = vmatpush1.msra.mxu0 0.0
        %2781 = vmatprep.subr.mxu0 0.0
        %2782 = vmatpush1.msra.mxu0 0.0
        %2783 = vmatprep.subr.mxu0 0.0
        %2784 = vmatpush1.msra.mxu0 0.0
        %2785 = vmatprep.subr.mxu0 0.0
        %2786 = vmatpush1.msra.mxu0 0.0
        %2787 = vmatprep.subr.mxu0 0.0
        %2788 = vmatpush1.msra.mxu0 0.0
        %2789 = vmatprep.subr.mxu0 0.0
        %2790 = vmatpush1.msra.mxu0 0.0
        %2791 = vmatprep.subr.mxu0 0.0
        %2792 = vmatpush1.msra.mxu0 0.0
        %2793 = vmatprep.subr.mxu0 0.0
        %2794 = vmatpush1.msra.mxu0 0.0
        %2795 = vmatprep.subr.mxu0 0.0
        %2796 = vmatpush1.msra.mxu0 0.0
        %2797 = vmatprep.subr.mxu0 0.0
        %2798 = vmatpush1.msra.mxu0 0.0
        %2799 = vmatprep.subr.mxu0 0.0
        %2800 = vmatpush1.msra.mxu0 0.0
        %2801 = vmatprep.subr.mxu0 0.0
        %2802 = vmatpush1.msra.mxu0 0.0
        %2803 = vmatprep.subr.mxu0 0.0
        %2804 = vmatpush1.msra.mxu0 0.0
        %2805 = vmatprep.subr.mxu0 0.0
        %2806 = vmatpush1.msra.mxu0 0.0
        %2807 = vmatprep.subr.mxu0 0.0
        %2808 = vmatpush1.msra.mxu0 0.0
        %2809 = vmatprep.subr.mxu0 0.0
        %2810 = vmatpush1.msra.mxu0 0.0
        %2811 = vmatprep.subr.mxu0 0.0
        %2812 = vmatpush1.msra.mxu0 0.0
        %2813 = vmatprep.subr.mxu0 0.0
        %2814 = vmatpush1.msra.mxu0 0.0
        %2815 = vmatprep.subr.mxu0 0.0
        %2816 = vmatpush1.msra.mxu0 0.0
        %2817 = vmatprep.subr.mxu0 0.0
        %2818 = vmatpush1.msra.mxu0 0.0
        %2819 = vmatprep.subr.mxu0 0.0
        %2820 = vmatpush1.msra.mxu0 0.0
        %2821 = vmatprep.subr.mxu0 0.0
        %2822 = vmatpush1.msra.mxu0 0.0
        %2823 = vmatprep.subr.mxu0 0.0
        %2824 = vmatpush1.msra.mxu0 0.0
        %2825 = vmatprep.subr.mxu0 0.0
        %2826 = vmatpush1.msra.mxu0 0.0
        %2827 = vmatprep.subr.mxu0 0.0
        %2828 = vmatpush1.msra.mxu0 0.0
        %2829 = vmatprep.mubr.f32.mxu0 0.0
        %2830 = vmatmul.mubr.f32.gmra.mrb[0].mxu0 %v2757
        %v2831 = vpop.f32.mrb[0].mxu0
        %v2832 = vadd.f32 0.0, %v2831
        %v2833 = vpop.f32.mrb[0].mxu0
        %2834 = vmatprep.mubr.f32.mxu0 0.0
        %2835 = vmatmul.mubr.f32.gmra.mrb[0].mxu0 %v2759
        %v2836 = vpop.f32.mrb[0].mxu0
        %v2837 = vadd.f32 0.0, %v2836
        %v2838 = vpop.f32.mrb[0].mxu0
        %2839 = vmatprep.mubr.f32.mxu0 0.0
        %2840 = vmatmul.mubr.f32.gmra.mrb[0].mxu0 %v2761
        %v2841 = vpop.f32.mrb[0].mxu0
        %v2842 = vadd.f32 0.0, %v2841
        %v2843 = vpop.f32.mrb[0].mxu0
        %2844 = vmatprep.mubr.f32.mxu0 0.0
        %2845 = vmatmul.mubr.f32.gmra.mrb[0].mxu0 %v2763
        %v2846 = vpop.f32.mrb[0].mxu0
        %v2847 = vadd.f32 0.0, %v2846
        %v2848 = vpop.f32.mrb[0].mxu0
        %2849 = vdwg.mxu0
        %v2850 = vld [vmem:[%s6] sm:$0x1]
        %v2851 = vld [vmem:[%s5] sm:$0xff]
        %v2852 = vld [vmem:[%s5 + $0x8] sm:$0xff]
        %v2853 = vld [vmem:[%s5 + $0x10] sm:$0xff]
        %v2854 = vld [vmem:[%s5 + $0x18] sm:$0xff]
        %v2856 = vsel %vm2663, %v2739, 0
        %v2859 = vsel %vm2663, %v2744, 0
        %v2862 = vsel %vm2663, %v2749, 0
        %v2865 = vsel %vm2663, %v2754, 0
        %2867 = vmatprep.subr.mxu0 0.0
        %2868 = vmatpush1.msra.mxu0 %v2851
        %2869 = vmatprep.subr.mxu0 0.0
        %2870 = vmatpush1.msra.mxu0 %v2852
        %2871 = vmatprep.subr.mxu0 0.0
        %2872 = vmatpush1.msra.mxu0 %v2853
        %2873 = vmatprep.subr.mxu0 0.0
        %2874 = vmatpush1.msra.mxu0 %v2854
        %2875 = vmatprep.subr.mxu0 0.0
        %2876 = vmatpush1.msra.mxu0 0.0
        %2877 = vmatprep.subr.mxu0 0.0
        %2878 = vmatpush1.msra.mxu0 0.0
        %2879 = vmatprep.subr.mxu0 0.0
        %2880 = vmatpush1.msra.mxu0 0.0
        %2881 = vmatprep.subr.mxu0 0.0
        %2882 = vmatpush1.msra.mxu0 0.0
        %2883 = vmatprep.subr.mxu0 0.0
        %2884 = vmatpush1.msra.mxu0 0.0
        %2885 = vmatprep.subr.mxu0 0.0
        %2886 = vmatpush1.msra.mxu0 0.0
        %2887 = vmatprep.subr.mxu0 0.0
        %2888 = vmatpush1.msra.mxu0 0.0
        %2889 = vmatprep.subr.mxu0 0.0
        %2890 = vmatpush1.msra.mxu0 0.0
        %2891 = vmatprep.subr.mxu0 0.0
        %2892 = vmatpush1.msra.mxu0 0.0
        %2893 = vmatprep.subr.mxu0 0.0
        %2894 = vmatpush1.msra.mxu0 0.0
        %2895 = vmatprep.subr.mxu0 0.0
        %2896 = vmatpush1.msra.mxu0 0.0
        %2897 = vmatprep.subr.mxu0 0.0
        %2898 = vmatpush1.msra.mxu0 0.0
        %2899 = vmatprep.subr.mxu0 0.0
        %2900 = vmatpush1.msra.mxu0 0.0
        %2901 = vmatprep.subr.mxu0 0.0
        %2902 = vmatpush1.msra.mxu0 0.0
        %2903 = vmatprep.subr.mxu0 0.0
        %2904 = vmatpush1.msra.mxu0 0.0
        %2905 = vmatprep.subr.mxu0 0.0
        %2906 = vmatpush1.msra.mxu0 0.0
        %2907 = vmatprep.subr.mxu0 0.0
        %2908 = vmatpush1.msra.mxu0 0.0
        %2909 = vmatprep.subr.mxu0 0.0
        %2910 = vmatpush1.msra.mxu0 0.0
        %2911 = vmatprep.subr.mxu0 0.0
        %2912 = vmatpush1.msra.mxu0 0.0
        %2913 = vmatprep.subr.mxu0 0.0
        %2914 = vmatpush1.msra.mxu0 0.0
        %2915 = vmatprep.subr.mxu0 0.0
        %2916 = vmatpush1.msra.mxu0 0.0
        %2917 = vmatprep.subr.mxu0 0.0
        %2918 = vmatpush1.msra.mxu0 0.0
        %2919 = vmatprep.subr.mxu0 0.0
        %2920 = vmatpush1.msra.mxu0 0.0
        %2921 = vmatprep.subr.mxu0 0.0
        %2922 = vmatpush1.msra.mxu0 0.0
        %2923 = vmatprep.subr.mxu0 0.0
        %2924 = vmatpush1.msra.mxu0 0.0
        %2925 = vmatprep.subr.mxu0 0.0
        %2926 = vmatpush1.msra.mxu0 0.0
        %2927 = vmatprep.subr.mxu0 0.0
        %2928 = vmatpush1.msra.mxu0 0.0
        %2929 = vmatprep.subr.mxu0 0.0
        %2930 = vmatpush1.msra.mxu0 0.0
        %2931 = vmatprep.mubr.f32.mxu0 0.0
        %2932 = vmatmul.mubr.f32.gmra.mrb[0].mxu0 %v2856
        %v2933 = vpop.f32.mrb[0].mxu0
        %v2934 = vadd.f32 0.0, %v2933
        %v2935 = vpop.f32.mrb[0].mxu0
        %2936 = vmatprep.mubr.f32.mxu0 0.0
        %2937 = vmatmul.mubr.f32.gmra.mrb[0].mxu0 %v2859
        %v2938 = vpop.f32.mrb[0].mxu0
        %v2939 = vadd.f32 0.0, %v2938
        %v2940 = vpop.f32.mrb[0].mxu0
        %2941 = vmatprep.mubr.f32.mxu0 0.0
        %2942 = vmatmul.mubr.f32.gmra.mrb[0].mxu0 %v2862
        %v2943 = vpop.f32.mrb[0].mxu0
        %v2944 = vadd.f32 0.0, %v2943
        %v2945 = vpop.f32.mrb[0].mxu0
        %2946 = vmatprep.mubr.f32.mxu0 0.0
        %2947 = vmatmul.mubr.f32.gmra.mrb[0].mxu0 %v2865
        %v2948 = vpop.f32.mrb[0].mxu0
        %v2949 = vadd.f32 0.0, %v2948
        %v2950 = vpop.f32.mrb[0].mxu0
        %2951 = vdwg.mxu0
        %v2953 = vlaneseq
        %v2954 = vshrl.u32 %v2953, 7
        %v2955 = vsub.s32 0, %v2954
        %v2956 = vrot.slane %v2850, %v2955
        %v2958 = vadd.f32 %v2956, %v2934
        %v2959 = vadd.f32 %v2956, %v2939
        %v2960 = vadd.f32 %v2956, %v2944
        %v2961 = vadd.f32 %v2956, %v2949
        %s2962 = scalar_lea.vmem %s5, 32
        %v2963 = vld [vmem:[%s2962] sm:$0xff]
        %v2964 = vld [vmem:[%s2962 + $0x8] sm:$0xff]
        %v2965 = vld [vmem:[%s2962 + $0x10] sm:$0xff]
        %v2966 = vld [vmem:[%s2962 + $0x18] sm:$0xff]
        %v2968 = vsel %vm2663, %v2659, 0
        %v2971 = vsel %vm2663, %v2660, 0
        %v2974 = vsel %vm2663, %v2661, 0
        %v2977 = vsel %vm2663, %v2662, 0
        %2979 = vmatprep.subr.mxu0 0.0
        %2980 = vmatpush1.msra.mxu0 %v2963
        %2981 = vmatprep.subr.mxu0 0.0
        %2982 = vmatpush1.msra.mxu0 %v2964
        %2983 = vmatprep.subr.mxu0 0.0
        %2984 = vmatpush1.msra.mxu0 %v2965
        %2985 = vmatprep.subr.mxu0 0.0
        %2986 = vmatpush1.msra.mxu0 %v2966
        %2987 = vmatprep.subr.mxu0 0.0
        %2988 = vmatpush1.msra.mxu0 0.0
        %2989 = vmatprep.subr.mxu0 0.0
        %2990 = vmatpush1.msra.mxu0 0.0
        %2991 = vmatprep.subr.mxu0 0.0
        %2992 = vmatpush1.msra.mxu0 0.0
        %2993 = vmatprep.subr.mxu0 0.0
        %2994 = vmatpush1.msra.mxu0 0.0
        %2995 = vmatprep.subr.mxu0 0.0
        %2996 = vmatpush1.msra.mxu0 0.0
        %2997 = vmatprep.subr.mxu0 0.0
        %2998 = vmatpush1.msra.mxu0 0.0
        %2999 = vmatprep.subr.mxu0 0.0
        %3000 = vmatpush1.msra.mxu0 0.0
        %3001 = vmatprep.subr.mxu0 0.0
        %3002 = vmatpush1.msra.mxu0 0.0
        %3003 = vmatprep.subr.mxu0 0.0
        %3004 = vmatpush1.msra.mxu0 0.0
        %3005 = vmatprep.subr.mxu0 0.0
        %3006 = vmatpush1.msra.mxu0 0.0
        %3007 = vmatprep.subr.mxu0 0.0
        %3008 = vmatpush1.msra.mxu0 0.0
        %3009 = vmatprep.subr.mxu0 0.0
        %3010 = vmatpush1.msra.mxu0 0.0
        %3011 = vmatprep.subr.mxu0 0.0
        %3012 = vmatpush1.msra.mxu0 0.0
        %3013 = vmatprep.subr.mxu0 0.0
        %3014 = vmatpush1.msra.mxu0 0.0
        %3015 = vmatprep.subr.mxu0 0.0
        %3016 = vmatpush1.msra.mxu0 0.0
        %3017 = vmatprep.subr.mxu0 0.0
        %3018 = vmatpush1.msra.mxu0 0.0
        %3019 = vmatprep.subr.mxu0 0.0
        %3020 = vmatpush1.msra.mxu0 0.0
        %3021 = vmatprep.subr.mxu0 0.0
        %3022 = vmatpush1.msra.mxu0 0.0
        %3023 = vmatprep.subr.mxu0 0.0
        %3024 = vmatpush1.msra.mxu0 0.0
        %3025 = vmatprep.subr.mxu0 0.0
        %3026 = vmatpush1.msra.mxu0 0.0
        %3027 = vmatprep.subr.mxu0 0.0
        %3028 = vmatpush1.msra.mxu0 0.0
        %3029 = vmatprep.subr.mxu0 0.0
        %3030 = vmatpush1.msra.mxu0 0.0
        %3031 = vmatprep.subr.mxu0 0.0
        %3032 = vmatpush1.msra.mxu0 0.0
        %3033 = vmatprep.subr.mxu0 0.0
        %3034 = vmatpush1.msra.mxu0 0.0
        %3035 = vmatprep.subr.mxu0 0.0
        %3036 = vmatpush1.msra.mxu0 0.0
        %3037 = vmatprep.subr.mxu0 0.0
        %3038 = vmatpush1.msra.mxu0 0.0
        %3039 = vmatprep.subr.mxu0 0.0
        %3040 = vmatpush1.msra.mxu0 0.0
        %3041 = vmatprep.subr.mxu0 0.0
        %3042 = vmatpush1.msra.mxu0 0.0
        %3043 = vmatprep.mubr.f32.mxu0 0.0
        %3044 = vmatmul.mubr.f32.gmra.mrb[0].mxu0 %v2968
        %v3045 = vpop.f32.mrb[0].mxu0
        %v3046 = vadd.f32 0.0, %v3045
        %v3047 = vpop.f32.mrb[0].mxu0
        %3048 = vmatprep.mubr.f32.mxu0 0.0
        %3049 = vmatmul.mubr.f32.gmra.mrb[0].mxu0 %v2971
        %v3050 = vpop.f32.mrb[0].mxu0
        %v3051 = vadd.f32 0.0, %v3050
        %v3052 = vpop.f32.mrb[0].mxu0
        %3053 = vmatprep.mubr.f32.mxu0 0.0
        %3054 = vmatmul.mubr.f32.gmra.mrb[0].mxu0 %v2974
        %v3055 = vpop.f32.mrb[0].mxu0
        %v3056 = vadd.f32 0.0, %v3055
        %v3057 = vpop.f32.mrb[0].mxu0
        %3058 = vmatprep.mubr.f32.mxu0 0.0
        %3059 = vmatmul.mubr.f32.gmra.mrb[0].mxu0 %v2977
        %v3060 = vpop.f32.mrb[0].mxu0
        %v3061 = vadd.f32 0.0, %v3060
        %v3062 = vpop.f32.mrb[0].mxu0
        %3063 = vdwg.mxu0
        %v3064 = vadd.f32 %v2958, %v3046
        %v3065 = vadd.f32 %v2959, %v3051
        %v3066 = vadd.f32 %v2960, %v3056
        %v3067 = vadd.f32 %v2961, %v3061
        %s3068 = scalar_lea.vmem %s5, 64
        %v3069 = vld [vmem:[%s3068] sm:$0xff]
        %v3070 = vld [vmem:[%s3068 + $0x8] sm:$0xff]
        %v3071 = vld [vmem:[%s3068 + $0x10] sm:$0xff]
        %v3072 = vld [vmem:[%s3068 + $0x18] sm:$0xff]
        %v3074 = vsel %vm2663, %v2832, 0
        %v3077 = vsel %vm2663, %v2837, 0
        %v3080 = vsel %vm2663, %v2842, 0
        %v3083 = vsel %vm2663, %v2847, 0
        %3085 = vmatprep.subr.mxu0 0.0
        %3086 = vmatpush1.msra.mxu0 %v3069
        %3087 = vmatprep.subr.mxu0 0.0
        %3088 = vmatpush1.msra.mxu0 %v3070
        %3089 = vmatprep.subr.mxu0 0.0
        %3090 = vmatpush1.msra.mxu0 %v3071
        %3091 = vmatprep.subr.mxu0 0.0
        %3092 = vmatpush1.msra.mxu0 %v3072
        %3093 = vmatprep.subr.mxu0 0.0
        %3094 = vmatpush1.msra.mxu0 0.0
        %3095 = vmatprep.subr.mxu0 0.0
        %3096 = vmatpush1.msra.mxu0 0.0
        %3097 = vmatprep.subr.mxu0 0.0
        %3098 = vmatpush1.msra.mxu0 0.0
        %3099 = vmatprep.subr.mxu0 0.0
        %3100 = vmatpush1.msra.mxu0 0.0
        %3101 = vmatprep.subr.mxu0 0.0
        %3102 = vmatpush1.msra.mxu0 0.0
        %3103 = vmatprep.subr.mxu0 0.0
        %3104 = vmatpush1.msra.mxu0 0.0
        %3105 = vmatprep.subr.mxu0 0.0
        %3106 = vmatpush1.msra.mxu0 0.0
        %3107 = vmatprep.subr.mxu0 0.0
        %3108 = vmatpush1.msra.mxu0 0.0
        %3109 = vmatprep.subr.mxu0 0.0
        %3110 = vmatpush1.msra.mxu0 0.0
        %3111 = vmatprep.subr.mxu0 0.0
        %3112 = vmatpush1.msra.mxu0 0.0
        %3113 = vmatprep.subr.mxu0 0.0
        %3114 = vmatpush1.msra.mxu0 0.0
        %3115 = vmatprep.subr.mxu0 0.0
        %3116 = vmatpush1.msra.mxu0 0.0
        %3117 = vmatprep.subr.mxu0 0.0
        %3118 = vmatpush1.msra.mxu0 0.0
        %3119 = vmatprep.subr.mxu0 0.0
        %3120 = vmatpush1.msra.mxu0 0.0
        %3121 = vmatprep.subr.mxu0 0.0
        %3122 = vmatpush1.msra.mxu0 0.0
        %3123 = vmatprep.subr.mxu0 0.0
        %3124 = vmatpush1.msra.mxu0 0.0
        %3125 = vmatprep.subr.mxu0 0.0
        %3126 = vmatpush1.msra.mxu0 0.0
        %3127 = vmatprep.subr.mxu0 0.0
        %3128 = vmatpush1.msra.mxu0 0.0
        %3129 = vmatprep.subr.mxu0 0.0
        %3130 = vmatpush1.msra.mxu0 0.0
        %3131 = vmatprep.subr.mxu0 0.0
        %3132 = vmatpush1.msra.mxu0 0.0
        %3133 = vmatprep.subr.mxu0 0.0
        %3134 = vmatpush1.msra.mxu0 0.0
        %3135 = vmatprep.subr.mxu0 0.0
        %3136 = vmatpush1.msra.mxu0 0.0
        %3137 = vmatprep.subr.mxu0 0.0
        %3138 = vmatpush1.msra.mxu0 0.0
        %3139 = vmatprep.subr.mxu0 0.0
        %3140 = vmatpush1.msra.mxu0 0.0
        %3141 = vmatprep.subr.mxu0 0.0
        %3142 = vmatpush1.msra.mxu0 0.0
        %3143 = vmatprep.subr.mxu0 0.0
        %3144 = vmatpush1.msra.mxu0 0.0
        %3145 = vmatprep.subr.mxu0 0.0
        %3146 = vmatpush1.msra.mxu0 0.0
        %3147 = vmatprep.subr.mxu0 0.0
        %3148 = vmatpush1.msra.mxu0 0.0
        %3149 = vmatprep.mubr.f32.mxu0 0.0
        %3150 = vmatmul.mubr.f32.gmra.mrb[0].mxu0 %v3074
        %v3151 = vpop.f32.mrb[0].mxu0
        %v3152 = vadd.f32 0.0, %v3151
        %v3153 = vpop.f32.mrb[0].mxu0
        %3154 = vmatprep.mubr.f32.mxu0 0.0
        %3155 = vmatmul.mubr.f32.gmra.mrb[0].mxu0 %v3077
        %v3156 = vpop.f32.mrb[0].mxu0
        %v3157 = vadd.f32 0.0, %v3156
        %v3158 = vpop.f32.mrb[0].mxu0
        %3159 = vmatprep.mubr.f32.mxu0 0.0
        %3160 = vmatmul.mubr.f32.gmra.mrb[0].mxu0 %v3080
        %v3161 = vpop.f32.mrb[0].mxu0
        %v3162 = vadd.f32 0.0, %v3161
        %v3163 = vpop.f32.mrb[0].mxu0
        %3164 = vmatprep.mubr.f32.mxu0 0.0
        %3165 = vmatmul.mubr.f32.gmra.mrb[0].mxu0 %v3083
        %v3166 = vpop.f32.mrb[0].mxu0
        %v3167 = vadd.f32 0.0, %v3166
        %v3168 = vpop.f32.mrb[0].mxu0
        %3169 = vdwg.mxu0
        %v3170 = vadd.f32 %v3064, %v3152
        %v3171 = vadd.f32 %v3065, %v3157
        %v3172 = vadd.f32 %v3066, %v3162
        %v3173 = vadd.f32 %v3067, %v3167
        %v3174 = vsel %vm2663, %v1446, 0
        %v3176 = vsel %vm2663, %v1447, 0
        %3178 = vmatprep.subr.mxu0 0.0
        %3179 = vmatpush1.msra.mxu0 %v3170
        %3180 = vmatprep.subr.mxu0 0.0
        %3181 = vmatpush1.msra.mxu0 %v3171
        %3182 = vmatprep.subr.mxu0 0.0
        %3183 = vmatpush1.msra.mxu0 %v3172
        %3184 = vmatprep.subr.mxu0 0.0
        %3185 = vmatpush1.msra.mxu0 %v3173
        %3186 = vmatprep.subr.mxu0 0.0
        %3187 = vmatpush1.msra.mxu0 0.0
        %3188 = vmatprep.subr.mxu0 0.0
        %3189 = vmatpush1.msra.mxu0 0.0
        %3190 = vmatprep.subr.mxu0 0.0
        %3191 = vmatpush1.msra.mxu0 0.0
        %3192 = vmatprep.subr.mxu0 0.0
        %3193 = vmatpush1.msra.mxu0 0.0
        %3194 = vmatprep.subr.mxu0 0.0
        %3195 = vmatpush1.msra.mxu0 0.0
        %3196 = vmatprep.subr.mxu0 0.0
        %3197 = vmatpush1.msra.mxu0 0.0
        %3198 = vmatprep.subr.mxu0 0.0
        %3199 = vmatpush1.msra.mxu0 0.0
        %3200 = vmatprep.subr.mxu0 0.0
        %3201 = vmatpush1.msra.mxu0 0.0
        %3202 = vmatprep.subr.mxu0 0.0
        %3203 = vmatpush1.msra.mxu0 0.0
        %3204 = vmatprep.subr.mxu0 0.0
        %3205 = vmatpush1.msra.mxu0 0.0
        %3206 = vmatprep.subr.mxu0 0.0
        %3207 = vmatpush1.msra.mxu0 0.0
        %3208 = vmatprep.subr.mxu0 0.0
        %3209 = vmatpush1.msra.mxu0 0.0
        %3210 = vmatprep.subr.mxu0 0.0
        %3211 = vmatpush1.msra.mxu0 0.0
        %3212 = vmatprep.subr.mxu0 0.0
        %3213 = vmatpush1.msra.mxu0 0.0
        %3214 = vmatprep.subr.mxu0 0.0
        %3215 = vmatpush1.msra.mxu0 0.0
        %3216 = vmatprep.subr.mxu0 0.0
        %3217 = vmatpush1.msra.mxu0 0.0
        %3218 = vmatprep.subr.mxu0 0.0
        %3219 = vmatpush1.msra.mxu0 0.0
        %3220 = vmatprep.subr.mxu0 0.0
        %3221 = vmatpush1.msra.mxu0 0.0
        %3222 = vmatprep.subr.mxu0 0.0
        %3223 = vmatpush1.msra.mxu0 0.0
        %3224 = vmatprep.subr.mxu0 0.0
        %3225 = vmatpush1.msra.mxu0 0.0
        %3226 = vmatprep.subr.mxu0 0.0
        %3227 = vmatpush1.msra.mxu0 0.0
        %3228 = vmatprep.subr.mxu0 0.0
        %3229 = vmatpush1.msra.mxu0 0.0
        %3230 = vmatprep.subr.mxu0 0.0
        %3231 = vmatpush1.msra.mxu0 0.0
        %3232 = vmatprep.subr.mxu0 0.0
        %3233 = vmatpush1.msra.mxu0 0.0
        %3234 = vmatprep.subr.mxu0 0.0
        %3235 = vmatpush1.msra.mxu0 0.0
        %3236 = vmatprep.subr.mxu0 0.0
        %3237 = vmatpush1.msra.mxu0 0.0
        %3238 = vmatprep.subr.mxu0 0.0
        %3239 = vmatpush1.msra.mxu0 0.0
        %3240 = vmatprep.subr.mxu0 0.0
        %3241 = vmatpush1.msra.mxu0 0.0
        %3242 = vmatprep.mubr.f32.mxu0 0.0
        %3243 = vmatmul.mubr.f32.gmra.mrb[0].mxu0 %v3174
        %v3244 = vpop.f32.mrb[0].mxu0
        %v3245 = vadd.f32 0.0, %v3244
        %v3246 = vpop.f32.mrb[0].mxu0
        %3247 = vmatprep.mubr.f32.mxu0 0.0
        %3248 = vmatmul.mubr.f32.gmra.mrb[0].mxu0 %v3176
        %v3249 = vpop.f32.mrb[0].mxu0
        %v3250 = vadd.f32 0.0, %v3249
        %v3251 = vpop.f32.mrb[0].mxu0
        %3252 = vdwg.mxu0
        %v3253 = vsel %vm2663, %v1583, 0
        %v3255 = vsel %vm2663, %v1584, 0
        %3257 = vmatprep.subr.mxu0 0.0
        %3258 = vmatpush1.msra.mxu0 %v3170
        %3259 = vmatprep.subr.mxu0 0.0
        %3260 = vmatpush1.msra.mxu0 %v3171
        %3261 = vmatprep.subr.mxu0 0.0
        %3262 = vmatpush1.msra.mxu0 %v3172
        %3263 = vmatprep.subr.mxu0 0.0
        %3264 = vmatpush1.msra.mxu0 %v3173
        %3265 = vmatprep.subr.mxu0 0.0
        %3266 = vmatpush1.msra.mxu0 0.0
        %3267 = vmatprep.subr.mxu0 0.0
        %3268 = vmatpush1.msra.mxu0 0.0
        %3269 = vmatprep.subr.mxu0 0.0
        %3270 = vmatpush1.msra.mxu0 0.0
        %3271 = vmatprep.subr.mxu0 0.0
        %3272 = vmatpush1.msra.mxu0 0.0
        %3273 = vmatprep.subr.mxu0 0.0
        %3274 = vmatpush1.msra.mxu0 0.0
        %3275 = vmatprep.subr.mxu0 0.0
        %3276 = vmatpush1.msra.mxu0 0.0
        %3277 = vmatprep.subr.mxu0 0.0
        %3278 = vmatpush1.msra.mxu0 0.0
        %3279 = vmatprep.subr.mxu0 0.0
        %3280 = vmatpush1.msra.mxu0 0.0
        %3281 = vmatprep.subr.mxu0 0.0
        %3282 = vmatpush1.msra.mxu0 0.0
        %3283 = vmatprep.subr.mxu0 0.0
        %3284 = vmatpush1.msra.mxu0 0.0
        %3285 = vmatprep.subr.mxu0 0.0
        %3286 = vmatpush1.msra.mxu0 0.0
        %3287 = vmatprep.subr.mxu0 0.0
        %3288 = vmatpush1.msra.mxu0 0.0
        %3289 = vmatprep.subr.mxu0 0.0
        %3290 = vmatpush1.msra.mxu0 0.0
        %3291 = vmatprep.subr.mxu0 0.0
        %3292 = vmatpush1.msra.mxu0 0.0
        %3293 = vmatprep.subr.mxu0 0.0
        %3294 = vmatpush1.msra.mxu0 0.0
        %3295 = vmatprep.subr.mxu0 0.0
        %3296 = vmatpush1.msra.mxu0 0.0
        %3297 = vmatprep.subr.mxu0 0.0
        %3298 = vmatpush1.msra.mxu0 0.0
        %3299 = vmatprep.subr.mxu0 0.0
        %3300 = vmatpush1.msra.mxu0 0.0
        %3301 = vmatprep.subr.mxu0 0.0
        %3302 = vmatpush1.msra.mxu0 0.0
        %3303 = vmatprep.subr.mxu0 0.0
        %3304 = vmatpush1.msra.mxu0 0.0
        %3305 = vmatprep.subr.mxu0 0.0
        %3306 = vmatpush1.msra.mxu0 0.0
        %3307 = vmatprep.subr.mxu0 0.0
        %3308 = vmatpush1.msra.mxu0 0.0
        %3309 = vmatprep.subr.mxu0 0.0
        %3310 = vmatpush1.msra.mxu0 0.0
        %3311 = vmatprep.subr.mxu0 0.0
        %3312 = vmatpush1.msra.mxu0 0.0
        %3313 = vmatprep.subr.mxu0 0.0
        %3314 = vmatpush1.msra.mxu0 0.0
        %3315 = vmatprep.subr.mxu0 0.0
        %3316 = vmatpush1.msra.mxu0 0.0
        %3317 = vmatprep.subr.mxu0 0.0
        %3318 = vmatpush1.msra.mxu0 0.0
        %3319 = vmatprep.subr.mxu0 0.0
        %3320 = vmatpush1.msra.mxu0 0.0
        %3321 = vmatprep.mubr.f32.mxu0 0.0
        %3322 = vmatmul.mubr.f32.gmra.mrb[0].mxu0 %v3253
        %v3323 = vpop.f32.mrb[0].mxu0
        %v3324 = vadd.f32 0.0, %v3323
        %v3325 = vpop.f32.mrb[0].mxu0
        %3326 = vmatprep.mubr.f32.mxu0 0.0
        %3327 = vmatmul.mubr.f32.gmra.mrb[0].mxu0 %v3255
        %v3328 = vpop.f32.mrb[0].mxu0
        %v3329 = vadd.f32 0.0, %v3328
        %v3330 = vpop.f32.mrb[0].mxu0
        %3331 = vdwg.mxu0
        %v3332 = vmax.f32 %v3245, %v3324
        %v3333 = vmax.f32 %v3250, %v3329
        %v3334 = vmax.f32 %v3332, 0.0
        %v3335 = vmax.f32 %v3333, 0.0
        %v3336 = vsel %vm511, %v1736, 0
        %v3338 = vsel %vm511, %v1737, 0
        %3340 = vmatprep.subr.mxu0 0.0
        %3341 = vmatpush1.msra.mxu0 %v3334
        %3342 = vmatprep.subr.mxu0 0.0
        %3343 = vmatpush1.msra.mxu0 %v3335
        %3344 = vmatprep.subr.mxu0 0.0
        %3345 = vmatpush1.msra.mxu0 0.0
        %3346 = vmatprep.subr.mxu0 0.0
        %3347 = vmatpush1.msra.mxu0 0.0
        %3348 = vmatprep.subr.mxu0 0.0
        %3349 = vmatpush1.msra.mxu0 0.0
        %3350 = vmatprep.subr.mxu0 0.0
        %3351 = vmatpush1.msra.mxu0 0.0
        %3352 = vmatprep.subr.mxu0 0.0
        %3353 = vmatpush1.msra.mxu0 0.0
        %3354 = vmatprep.subr.mxu0 0.0
        %3355 = vmatpush1.msra.mxu0 0.0
        %3356 = vmatprep.subr.mxu0 0.0
        %3357 = vmatpush1.msra.mxu0 0.0
        %3358 = vmatprep.subr.mxu0 0.0
        %3359 = vmatpush1.msra.mxu0 0.0
        %3360 = vmatprep.subr.mxu0 0.0
        %3361 = vmatpush1.msra.mxu0 0.0
        %3362 = vmatprep.subr.mxu0 0.0
        %3363 = vmatpush1.msra.mxu0 0.0
        %3364 = vmatprep.subr.mxu0 0.0
        %3365 = vmatpush1.msra.mxu0 0.0
        %3366 = vmatprep.subr.mxu0 0.0
        %3367 = vmatpush1.msra.mxu0 0.0
        %3368 = vmatprep.subr.mxu0 0.0
        %3369 = vmatpush1.msra.mxu0 0.0
        %3370 = vmatprep.subr.mxu0 0.0
        %3371 = vmatpush1.msra.mxu0 0.0
        %3372 = vmatprep.subr.mxu0 0.0
        %3373 = vmatpush1.msra.mxu0 0.0
        %3374 = vmatprep.subr.mxu0 0.0
        %3375 = vmatpush1.msra.mxu0 0.0
        %3376 = vmatprep.subr.mxu0 0.0
        %3377 = vmatpush1.msra.mxu0 0.0
        %3378 = vmatprep.subr.mxu0 0.0
        %3379 = vmatpush1.msra.mxu0 0.0
        %3380 = vmatprep.subr.mxu0 0.0
        %3381 = vmatpush1.msra.mxu0 0.0
        %3382 = vmatprep.subr.mxu0 0.0
        %3383 = vmatpush1.msra.mxu0 0.0
        %3384 = vmatprep.subr.mxu0 0.0
        %3385 = vmatpush1.msra.mxu0 0.0
        %3386 = vmatprep.subr.mxu0 0.0
        %3387 = vmatpush1.msra.mxu0 0.0
        %3388 = vmatprep.subr.mxu0 0.0
        %3389 = vmatpush1.msra.mxu0 0.0
        %3390 = vmatprep.subr.mxu0 0.0
        %3391 = vmatpush1.msra.mxu0 0.0
        %3392 = vmatprep.subr.mxu0 0.0
        %3393 = vmatpush1.msra.mxu0 0.0
        %3394 = vmatprep.subr.mxu0 0.0
        %3395 = vmatpush1.msra.mxu0 0.0
        %3396 = vmatprep.subr.mxu0 0.0
        %3397 = vmatpush1.msra.mxu0 0.0
        %3398 = vmatprep.subr.mxu0 0.0
        %3399 = vmatpush1.msra.mxu0 0.0
        %3400 = vmatprep.subr.mxu0 0.0
        %3401 = vmatpush1.msra.mxu0 0.0
        %3402 = vmatprep.subr.mxu0 0.0
        %3403 = vmatpush1.msra.mxu0 0.0
        %3404 = vmatprep.mubr.f32.mxu0 0.0
        %3405 = vmatmul.mubr.f32.gmra.mrb[0].mxu0 %v3336
        %v3406 = vpop.f32.mrb[0].mxu0
        %v3407 = vadd.f32 0.0, %v3406
        %v3408 = vpop.f32.mrb[0].mxu0
        %3409 = vmatprep.mubr.f32.mxu0 0.0
        %3410 = vmatmul.mubr.f32.gmra.mrb[0].mxu0 %v3338
        %v3411 = vpop.f32.mrb[0].mxu0
        %v3412 = vadd.f32 0.0, %v3411
        %v3413 = vpop.f32.mrb[0].mxu0
        %3414 = vdwg.mxu0
        %v3415 = vsel %vm511, %v1898, 0
        %v3417 = vsel %vm511, %v1899, 0
        %3419 = vmatprep.subr.mxu0 0.0
        %3420 = vmatpush1.msra.mxu0 %v3334
        %3421 = vmatprep.subr.mxu0 0.0
        %3422 = vmatpush1.msra.mxu0 %v3335
        %3423 = vmatprep.subr.mxu0 0.0
        %3424 = vmatpush1.msra.mxu0 0.0
        %3425 = vmatprep.subr.mxu0 0.0
        %3426 = vmatpush1.msra.mxu0 0.0
        %3427 = vmatprep.subr.mxu0 0.0
        %3428 = vmatpush1.msra.mxu0 0.0
        %3429 = vmatprep.subr.mxu0 0.0
        %3430 = vmatpush1.msra.mxu0 0.0
        %3431 = vmatprep.subr.mxu0 0.0
        %3432 = vmatpush1.msra.mxu0 0.0
        %3433 = vmatprep.subr.mxu0 0.0
        %3434 = vmatpush1.msra.mxu0 0.0
        %3435 = vmatprep.subr.mxu0 0.0
        %3436 = vmatpush1.msra.mxu0 0.0
        %3437 = vmatprep.subr.mxu0 0.0
        %3438 = vmatpush1.msra.mxu0 0.0
        %3439 = vmatprep.subr.mxu0 0.0
        %3440 = vmatpush1.msra.mxu0 0.0
        %3441 = vmatprep.subr.mxu0 0.0
        %3442 = vmatpush1.msra.mxu0 0.0
        %3443 = vmatprep.subr.mxu0 0.0
        %3444 = vmatpush1.msra.mxu0 0.0
        %3445 = vmatprep.subr.mxu0 0.0
        %3446 = vmatpush1.msra.mxu0 0.0
        %3447 = vmatprep.subr.mxu0 0.0
        %3448 = vmatpush1.msra.mxu0 0.0
        %3449 = vmatprep.subr.mxu0 0.0
        %3450 = vmatpush1.msra.mxu0 0.0
        %3451 = vmatprep.subr.mxu0 0.0
        %3452 = vmatpush1.msra.mxu0 0.0
        %3453 = vmatprep.subr.mxu0 0.0
        %3454 = vmatpush1.msra.mxu0 0.0
        %3455 = vmatprep.subr.mxu0 0.0
        %3456 = vmatpush1.msra.mxu0 0.0
        %3457 = vmatprep.subr.mxu0 0.0
        %3458 = vmatpush1.msra.mxu0 0.0
        %3459 = vmatprep.subr.mxu0 0.0
        %3460 = vmatpush1.msra.mxu0 0.0
        %3461 = vmatprep.subr.mxu0 0.0
        %3462 = vmatpush1.msra.mxu0 0.0
        %3463 = vmatprep.subr.mxu0 0.0
        %3464 = vmatpush1.msra.mxu0 0.0
        %3465 = vmatprep.subr.mxu0 0.0
        %3466 = vmatpush1.msra.mxu0 0.0
        %3467 = vmatprep.subr.mxu0 0.0
        %3468 = vmatpush1.msra.mxu0 0.0
        %3469 = vmatprep.subr.mxu0 0.0
        %3470 = vmatpush1.msra.mxu0 0.0
        %3471 = vmatprep.subr.mxu0 0.0
        %3472 = vmatpush1.msra.mxu0 0.0
        %3473 = vmatprep.subr.mxu0 0.0
        %3474 = vmatpush1.msra.mxu0 0.0
        %3475 = vmatprep.subr.mxu0 0.0
        %3476 = vmatpush1.msra.mxu0 0.0
        %3477 = vmatprep.subr.mxu0 0.0
        %3478 = vmatpush1.msra.mxu0 0.0
        %3479 = vmatprep.subr.mxu0 0.0
        %3480 = vmatpush1.msra.mxu0 0.0
        %3481 = vmatprep.subr.mxu0 0.0
        %3482 = vmatpush1.msra.mxu0 0.0
        %3483 = vmatprep.mubr.f32.mxu0 0.0
        %3484 = vmatmul.mubr.f32.gmra.mrb[0].mxu0 %v3415
        %v3485 = vpop.f32.mrb[0].mxu0
        %v3486 = vadd.f32 0.0, %v3485
        %v3487 = vpop.f32.mrb[0].mxu0
        %3488 = vmatprep.mubr.f32.mxu0 0.0
        %3489 = vmatmul.mubr.f32.gmra.mrb[0].mxu0 %v3417
        %v3490 = vpop.f32.mrb[0].mxu0
        %v3491 = vadd.f32 0.0, %v3490
        %v3492 = vpop.f32.mrb[0].mxu0
        %3493 = vdwg.mxu0
        %v3494 = vld [vmem:[%s8] sm:$0x1]
        %v3495 = vld [vmem:[%s7] sm:$0xff]
        %v3496 = vld [vmem:[%s7 + $0x8] sm:$0xff]
        %v3497 = vld [vmem:[%s7 + $0x10] sm:$0xff]
        %v3498 = vld [vmem:[%s7 + $0x18] sm:$0xff]
        %v3499 = vld [vmem:[%s7 + $0x20] sm:$0xff]
        %v3500 = vld [vmem:[%s7 + $0x28] sm:$0xff]
        %v3501 = vld [vmem:[%s7 + $0x30] sm:$0xff]
        %v3502 = vld [vmem:[%s7 + $0x38] sm:$0xff]
        %v3504 = vsel %vm1744, %v3407, 0
        %v3507 = vsel %vm1744, %v3412, 0
        %3509 = vmatprep.subr.mxu0 0.0
        %3510 = vmatpush1.msra.mxu0 %v3495
        %3511 = vmatprep.subr.mxu0 0.0
        %3512 = vmatpush1.msra.mxu0 %v3496
        %3513 = vmatprep.subr.mxu0 0.0
        %3514 = vmatpush1.msra.mxu0 %v3497
        %3515 = vmatprep.subr.mxu0 0.0
        %3516 = vmatpush1.msra.mxu0 %v3498
        %3517 = vmatprep.subr.mxu0 0.0
        %3518 = vmatpush1.msra.mxu0 %v3499
        %3519 = vmatprep.subr.mxu0 0.0
        %3520 = vmatpush1.msra.mxu0 %v3500
        %3521 = vmatprep.subr.mxu0 0.0
        %3522 = vmatpush1.msra.mxu0 %v3501
        %3523 = vmatprep.subr.mxu0 0.0
        %3524 = vmatpush1.msra.mxu0 %v3502
        %3525 = vmatprep.subr.mxu0 0.0
        %3526 = vmatpush1.msra.mxu0 0.0
        %3527 = vmatprep.subr.mxu0 0.0
        %3528 = vmatpush1.msra.mxu0 0.0
        %3529 = vmatprep.subr.mxu0 0.0
        %3530 = vmatpush1.msra.mxu0 0.0
        %3531 = vmatprep.subr.mxu0 0.0
        %3532 = vmatpush1.msra.mxu0 0.0
        %3533 = vmatprep.subr.mxu0 0.0
        %3534 = vmatpush1.msra.mxu0 0.0
        %3535 = vmatprep.subr.mxu0 0.0
        %3536 = vmatpush1.msra.mxu0 0.0
        %3537 = vmatprep.subr.mxu0 0.0
        %3538 = vmatpush1.msra.mxu0 0.0
        %3539 = vmatprep.subr.mxu0 0.0
        %3540 = vmatpush1.msra.mxu0 0.0
        %3541 = vmatprep.subr.mxu0 0.0
        %3542 = vmatpush1.msra.mxu0 0.0
        %3543 = vmatprep.subr.mxu0 0.0
        %3544 = vmatpush1.msra.mxu0 0.0
        %3545 = vmatprep.subr.mxu0 0.0
        %3546 = vmatpush1.msra.mxu0 0.0
        %3547 = vmatprep.subr.mxu0 0.0
        %3548 = vmatpush1.msra.mxu0 0.0
        %3549 = vmatprep.subr.mxu0 0.0
        %3550 = vmatpush1.msra.mxu0 0.0
        %3551 = vmatprep.subr.mxu0 0.0
        %3552 = vmatpush1.msra.mxu0 0.0
        %3553 = vmatprep.subr.mxu0 0.0
        %3554 = vmatpush1.msra.mxu0 0.0
        %3555 = vmatprep.subr.mxu0 0.0
        %3556 = vmatpush1.msra.mxu0 0.0
        %3557 = vmatprep.subr.mxu0 0.0
        %3558 = vmatpush1.msra.mxu0 0.0
        %3559 = vmatprep.subr.mxu0 0.0
        %3560 = vmatpush1.msra.mxu0 0.0
        %3561 = vmatprep.subr.mxu0 0.0
        %3562 = vmatpush1.msra.mxu0 0.0
        %3563 = vmatprep.subr.mxu0 0.0
        %3564 = vmatpush1.msra.mxu0 0.0
        %3565 = vmatprep.subr.mxu0 0.0
        %3566 = vmatpush1.msra.mxu0 0.0
        %3567 = vmatprep.subr.mxu0 0.0
        %3568 = vmatpush1.msra.mxu0 0.0
        %3569 = vmatprep.subr.mxu0 0.0
        %3570 = vmatpush1.msra.mxu0 0.0
        %3571 = vmatprep.subr.mxu0 0.0
        %3572 = vmatpush1.msra.mxu0 0.0
        %3573 = vmatprep.mubr.f32.mxu0 0.0
        %3574 = vmatmul.mubr.f32.gmra.mrb[0].mxu0 %v3504
        %v3575 = vpop.f32.mrb[0].mxu0
        %v3576 = vadd.f32 0.0, %v3575
        %v3577 = vpop.f32.mrb[0].mxu0
        %3578 = vmatprep.mubr.f32.mxu0 0.0
        %3579 = vmatmul.mubr.f32.gmra.mrb[0].mxu0 %v3507
        %v3580 = vpop.f32.mrb[0].mxu0
        %v3581 = vadd.f32 0.0, %v3580
        %v3582 = vpop.f32.mrb[0].mxu0
        %3583 = vdwg.mxu0
        %v3585 = vlaneseq
        %v3586 = vshrl.u32 %v3585, 7
        %v3587 = vsub.s32 0, %v3586
        %v3588 = vrot.slane %v3494, %v3587
        %v3590 = vadd.f32 %v3588, %v3576
        %v3591 = vadd.f32 %v3588, %v3581
        %s3592 = scalar_lea.vmem %s7, 64
        %v3593 = vld [vmem:[%s3592] sm:$0xff]
        %v3594 = vld [vmem:[%s3592 + $0x8] sm:$0xff]
        %v3595 = vld [vmem:[%s3592 + $0x10] sm:$0xff]
        %v3596 = vld [vmem:[%s3592 + $0x18] sm:$0xff]
        %v3597 = vld [vmem:[%s3592 + $0x20] sm:$0xff]
        %v3598 = vld [vmem:[%s3592 + $0x28] sm:$0xff]
        %v3599 = vld [vmem:[%s3592 + $0x30] sm:$0xff]
        %v3600 = vld [vmem:[%s3592 + $0x38] sm:$0xff]
        %v3602 = vsel %vm1744, %v3334, 0
        %v3605 = vsel %vm1744, %v3335, 0
        %3607 = vmatprep.subr.mxu0 0.0
        %3608 = vmatpush1.msra.mxu0 %v3593
        %3609 = vmatprep.subr.mxu0 0.0
        %3610 = vmatpush1.msra.mxu0 %v3594
        %3611 = vmatprep.subr.mxu0 0.0
        %3612 = vmatpush1.msra.mxu0 %v3595
        %3613 = vmatprep.subr.mxu0 0.0
        %3614 = vmatpush1.msra.mxu0 %v3596
        %3615 = vmatprep.subr.mxu0 0.0
        %3616 = vmatpush1.msra.mxu0 %v3597
        %3617 = vmatprep.subr.mxu0 0.0
        %3618 = vmatpush1.msra.mxu0 %v3598
        %3619 = vmatprep.subr.mxu0 0.0
        %3620 = vmatpush1.msra.mxu0 %v3599
        %3621 = vmatprep.subr.mxu0 0.0
        %3622 = vmatpush1.msra.mxu0 %v3600
        %3623 = vmatprep.subr.mxu0 0.0
        %3624 = vmatpush1.msra.mxu0 0.0
        %3625 = vmatprep.subr.mxu0 0.0
        %3626 = vmatpush1.msra.mxu0 0.0
        %3627 = vmatprep.subr.mxu0 0.0
        %3628 = vmatpush1.msra.mxu0 0.0
        %3629 = vmatprep.subr.mxu0 0.0
        %3630 = vmatpush1.msra.mxu0 0.0
        %3631 = vmatprep.subr.mxu0 0.0
        %3632 = vmatpush1.msra.mxu0 0.0
        %3633 = vmatprep.subr.mxu0 0.0
        %3634 = vmatpush1.msra.mxu0 0.0
        %3635 = vmatprep.subr.mxu0 0.0
        %3636 = vmatpush1.msra.mxu0 0.0
        %3637 = vmatprep.subr.mxu0 0.0
        %3638 = vmatpush1.msra.mxu0 0.0
        %3639 = vmatprep.subr.mxu0 0.0
        %3640 = vmatpush1.msra.mxu0 0.0
        %3641 = vmatprep.subr.mxu0 0.0
        %3642 = vmatpush1.msra.mxu0 0.0
        %3643 = vmatprep.subr.mxu0 0.0
        %3644 = vmatpush1.msra.mxu0 0.0
        %3645 = vmatprep.subr.mxu0 0.0
        %3646 = vmatpush1.msra.mxu0 0.0
        %3647 = vmatprep.subr.mxu0 0.0
        %3648 = vmatpush1.msra.mxu0 0.0
        %3649 = vmatprep.subr.mxu0 0.0
        %3650 = vmatpush1.msra.mxu0 0.0
        %3651 = vmatprep.subr.mxu0 0.0
        %3652 = vmatpush1.msra.mxu0 0.0
        %3653 = vmatprep.subr.mxu0 0.0
        %3654 = vmatpush1.msra.mxu0 0.0
        %3655 = vmatprep.subr.mxu0 0.0
        %3656 = vmatpush1.msra.mxu0 0.0
        %3657 = vmatprep.subr.mxu0 0.0
        %3658 = vmatpush1.msra.mxu0 0.0
        %3659 = vmatprep.subr.mxu0 0.0
        %3660 = vmatpush1.msra.mxu0 0.0
        %3661 = vmatprep.subr.mxu0 0.0
        %3662 = vmatpush1.msra.mxu0 0.0
        %3663 = vmatprep.subr.mxu0 0.0
        %3664 = vmatpush1.msra.mxu0 0.0
        %3665 = vmatprep.subr.mxu0 0.0
        %3666 = vmatpush1.msra.mxu0 0.0
        %3667 = vmatprep.subr.mxu0 0.0
        %3668 = vmatpush1.msra.mxu0 0.0
        %3669 = vmatprep.subr.mxu0 0.0
        %3670 = vmatpush1.msra.mxu0 0.0
        %3671 = vmatprep.mubr.f32.mxu0 0.0
        %3672 = vmatmul.mubr.f32.gmra.mrb[0].mxu0 %v3602
        %v3673 = vpop.f32.mrb[0].mxu0
        %v3674 = vadd.f32 0.0, %v3673
        %v3675 = vpop.f32.mrb[0].mxu0
        %3676 = vmatprep.mubr.f32.mxu0 0.0
        %3677 = vmatmul.mubr.f32.gmra.mrb[0].mxu0 %v3605
        %v3678 = vpop.f32.mrb[0].mxu0
        %v3679 = vadd.f32 0.0, %v3678
        %v3680 = vpop.f32.mrb[0].mxu0
        %3681 = vdwg.mxu0
        %v3682 = vadd.f32 %v3590, %v3674
        %v3683 = vadd.f32 %v3591, %v3679
        %s3684 = scalar_lea.vmem %s7, 128
        %v3685 = vld [vmem:[%s3684] sm:$0xff]
        %v3686 = vld [vmem:[%s3684 + $0x8] sm:$0xff]
        %v3687 = vld [vmem:[%s3684 + $0x10] sm:$0xff]
        %v3688 = vld [vmem:[%s3684 + $0x18] sm:$0xff]
        %v3689 = vld [vmem:[%s3684 + $0x20] sm:$0xff]
        %v3690 = vld [vmem:[%s3684 + $0x28] sm:$0xff]
        %v3691 = vld [vmem:[%s3684 + $0x30] sm:$0xff]
        %v3692 = vld [vmem:[%s3684 + $0x38] sm:$0xff]
        %v3694 = vsel %vm1744, %v3486, 0
        %v3697 = vsel %vm1744, %v3491, 0
        %3699 = vmatprep.subr.mxu0 0.0
        %3700 = vmatpush1.msra.mxu0 %v3685
        %3701 = vmatprep.subr.mxu0 0.0
        %3702 = vmatpush1.msra.mxu0 %v3686
        %3703 = vmatprep.subr.mxu0 0.0
        %3704 = vmatpush1.msra.mxu0 %v3687
        %3705 = vmatprep.subr.mxu0 0.0
        %3706 = vmatpush1.msra.mxu0 %v3688
        %3707 = vmatprep.subr.mxu0 0.0
        %3708 = vmatpush1.msra.mxu0 %v3689
        %3709 = vmatprep.subr.mxu0 0.0
        %3710 = vmatpush1.msra.mxu0 %v3690
        %3711 = vmatprep.subr.mxu0 0.0
        %3712 = vmatpush1.msra.mxu0 %v3691
        %3713 = vmatprep.subr.mxu0 0.0
        %3714 = vmatpush1.msra.mxu0 %v3692
        %3715 = vmatprep.subr.mxu0 0.0
        %3716 = vmatpush1.msra.mxu0 0.0
        %3717 = vmatprep.subr.mxu0 0.0
        %3718 = vmatpush1.msra.mxu0 0.0
        %3719 = vmatprep.subr.mxu0 0.0
        %3720 = vmatpush1.msra.mxu0 0.0
        %3721 = vmatprep.subr.mxu0 0.0
        %3722 = vmatpush1.msra.mxu0 0.0
        %3723 = vmatprep.subr.mxu0 0.0
        %3724 = vmatpush1.msra.mxu0 0.0
        %3725 = vmatprep.subr.mxu0 0.0
        %3726 = vmatpush1.msra.mxu0 0.0
        %3727 = vmatprep.subr.mxu0 0.0
        %3728 = vmatpush1.msra.mxu0 0.0
        %3729 = vmatprep.subr.mxu0 0.0
        %3730 = vmatpush1.msra.mxu0 0.0
        %3731 = vmatprep.subr.mxu0 0.0
        %3732 = vmatpush1.msra.mxu0 0.0
        %3733 = vmatprep.subr.mxu0 0.0
        %3734 = vmatpush1.msra.mxu0 0.0
        %3735 = vmatprep.subr.mxu0 0.0
        %3736 = vmatpush1.msra.mxu0 0.0
        %3737 = vmatprep.subr.mxu0 0.0
        %3738 = vmatpush1.msra.mxu0 0.0
        %3739 = vmatprep.subr.mxu0 0.0
        %3740 = vmatpush1.msra.mxu0 0.0
        %3741 = vmatprep.subr.mxu0 0.0
        %3742 = vmatpush1.msra.mxu0 0.0
        %3743 = vmatprep.subr.mxu0 0.0
        %3744 = vmatpush1.msra.mxu0 0.0
        %3745 = vmatprep.subr.mxu0 0.0
        %3746 = vmatpush1.msra.mxu0 0.0
        %3747 = vmatprep.subr.mxu0 0.0
        %3748 = vmatpush1.msra.mxu0 0.0
        %3749 = vmatprep.subr.mxu0 0.0
        %3750 = vmatpush1.msra.mxu0 0.0
        %3751 = vmatprep.subr.mxu0 0.0
        %3752 = vmatpush1.msra.mxu0 0.0
        %3753 = vmatprep.subr.mxu0 0.0
        %3754 = vmatpush1.msra.mxu0 0.0
        %3755 = vmatprep.subr.mxu0 0.0
        %3756 = vmatpush1.msra.mxu0 0.0
        %3757 = vmatprep.subr.mxu0 0.0
        %3758 = vmatpush1.msra.mxu0 0.0
        %3759 = vmatprep.subr.mxu0 0.0
        %3760 = vmatpush1.msra.mxu0 0.0
        %3761 = vmatprep.subr.mxu0 0.0
        %3762 = vmatpush1.msra.mxu0 0.0
        %3763 = vmatprep.mubr.f32.mxu0 0.0
        %3764 = vmatmul.mubr.f32.gmra.mrb[0].mxu0 %v3694
        %v3765 = vpop.f32.mrb[0].mxu0
        %v3766 = vadd.f32 0.0, %v3765
        %v3767 = vpop.f32.mrb[0].mxu0
        %3768 = vmatprep.mubr.f32.mxu0 0.0
        %3769 = vmatmul.mubr.f32.gmra.mrb[0].mxu0 %v3697
        %v3770 = vpop.f32.mrb[0].mxu0
        %v3771 = vadd.f32 0.0, %v3770
        %v3772 = vpop.f32.mrb[0].mxu0
        %3773 = vdwg.mxu0
        %v3774 = vadd.f32 %v3682, %v3766
        %v3775 = vadd.f32 %v3683, %v3771
        %v3776 = vsel %vm511, %v1446, 0
        %3778 = vmatprep.subr.mxu0 0.0
        %3779 = vmatpush1.msra.mxu0 %v3774
        %3780 = vmatprep.subr.mxu0 0.0
        %3781 = vmatpush1.msra.mxu0 %v3775
        %3782 = vmatprep.subr.mxu0 0.0
        %3783 = vmatpush1.msra.mxu0 0.0
        %3784 = vmatprep.subr.mxu0 0.0
        %3785 = vmatpush1.msra.mxu0 0.0
        %3786 = vmatprep.subr.mxu0 0.0
        %3787 = vmatpush1.msra.mxu0 0.0
        %3788 = vmatprep.subr.mxu0 0.0
        %3789 = vmatpush1.msra.mxu0 0.0
        %3790 = vmatprep.subr.mxu0 0.0
        %3791 = vmatpush1.msra.mxu0 0.0
        %3792 = vmatprep.subr.mxu0 0.0
        %3793 = vmatpush1.msra.mxu0 0.0
        %3794 = vmatprep.subr.mxu0 0.0
        %3795 = vmatpush1.msra.mxu0 0.0
        %3796 = vmatprep.subr.mxu0 0.0
        %3797 = vmatpush1.msra.mxu0 0.0
        %3798 = vmatprep.subr.mxu0 0.0
        %3799 = vmatpush1.msra.mxu0 0.0
        %3800 = vmatprep.subr.mxu0 0.0
        %3801 = vmatpush1.msra.mxu0 0.0
        %3802 = vmatprep.subr.mxu0 0.0
        %3803 = vmatpush1.msra.mxu0 0.0
        %3804 = vmatprep.subr.mxu0 0.0
        %3805 = vmatpush1.msra.mxu0 0.0
        %3806 = vmatprep.subr.mxu0 0.0
        %3807 = vmatpush1.msra.mxu0 0.0
        %3808 = vmatprep.subr.mxu0 0.0
        %3809 = vmatpush1.msra.mxu0 0.0
        %3810 = vmatprep.subr.mxu0 0.0
        %3811 = vmatpush1.msra.mxu0 0.0
        %3812 = vmatprep.subr.mxu0 0.0
        %3813 = vmatpush1.msra.mxu0 0.0
        %3814 = vmatprep.subr.mxu0 0.0
        %3815 = vmatpush1.msra.mxu0 0.0
        %3816 = vmatprep.subr.mxu0 0.0
        %3817 = vmatpush1.msra.mxu0 0.0
        %3818 = vmatprep.subr.mxu0 0.0
        %3819 = vmatpush1.msra.mxu0 0.0
        %3820 = vmatprep.subr.mxu0 0.0
        %3821 = vmatpush1.msra.mxu0 0.0
        %3822 = vmatprep.subr.mxu0 0.0
        %3823 = vmatpush1.msra.mxu0 0.0
        %3824 = vmatprep.subr.mxu0 0.0
        %3825 = vmatpush1.msra.mxu0 0.0
        %3826 = vmatprep.subr.mxu0 0.0
        %3827 = vmatpush1.msra.mxu0 0.0
        %3828 = vmatprep.subr.mxu0 0.0
        %3829 = vmatpush1.msra.mxu0 0.0
        %3830 = vmatprep.subr.mxu0 0.0
        %3831 = vmatpush1.msra.mxu0 0.0
        %3832 = vmatprep.subr.mxu0 0.0
        %3833 = vmatpush1.msra.mxu0 0.0
        %3834 = vmatprep.subr.mxu0 0.0
        %3835 = vmatpush1.msra.mxu0 0.0
        %3836 = vmatprep.subr.mxu0 0.0
        %3837 = vmatpush1.msra.mxu0 0.0
        %3838 = vmatprep.subr.mxu0 0.0
        %3839 = vmatpush1.msra.mxu0 0.0
        %3840 = vmatprep.subr.mxu0 0.0
        %3841 = vmatpush1.msra.mxu0 0.0
        %3842 = vmatprep.mubr.f32.mxu0 0.0
        %3843 = vmatmul.mubr.f32.gmra.mrb[0].mxu0 %v3776
        %v3844 = vpop.f32.mrb[0].mxu0
        %v3845 = vadd.f32 0.0, %v3844
        %v3846 = vpop.f32.mrb[0].mxu0
        %3847 = vdwg.mxu0
        %v3848 = vsel %vm511, %v1583, 0
        %3850 = vmatprep.subr.mxu0 0.0
        %3851 = vmatpush1.msra.mxu0 %v3774
        %3852 = vmatprep.subr.mxu0 0.0
        %3853 = vmatpush1.msra.mxu0 %v3775
        %3854 = vmatprep.subr.mxu0 0.0
        %3855 = vmatpush1.msra.mxu0 0.0
        %3856 = vmatprep.subr.mxu0 0.0
        %3857 = vmatpush1.msra.mxu0 0.0
        %3858 = vmatprep.subr.mxu0 0.0
        %3859 = vmatpush1.msra.mxu0 0.0
        %3860 = vmatprep.subr.mxu0 0.0
        %3861 = vmatpush1.msra.mxu0 0.0
        %3862 = vmatprep.subr.mxu0 0.0
        %3863 = vmatpush1.msra.mxu0 0.0
        %3864 = vmatprep.subr.mxu0 0.0
        %3865 = vmatpush1.msra.mxu0 0.0
        %3866 = vmatprep.subr.mxu0 0.0
        %3867 = vmatpush1.msra.mxu0 0.0
        %3868 = vmatprep.subr.mxu0 0.0
        %3869 = vmatpush1.msra.mxu0 0.0
        %3870 = vmatprep.subr.mxu0 0.0
        %3871 = vmatpush1.msra.mxu0 0.0
        %3872 = vmatprep.subr.mxu0 0.0
        %3873 = vmatpush1.msra.mxu0 0.0
        %3874 = vmatprep.subr.mxu0 0.0
        %3875 = vmatpush1.msra.mxu0 0.0
        %3876 = vmatprep.subr.mxu0 0.0
        %3877 = vmatpush1.msra.mxu0 0.0
        %3878 = vmatprep.subr.mxu0 0.0
        %3879 = vmatpush1.msra.mxu0 0.0
        %3880 = vmatprep.subr.mxu0 0.0
        %3881 = vmatpush1.msra.mxu0 0.0
        %3882 = vmatprep.subr.mxu0 0.0
        %3883 = vmatpush1.msra.mxu0 0.0
        %3884 = vmatprep.subr.mxu0 0.0
        %3885 = vmatpush1.msra.mxu0 0.0
        %3886 = vmatprep.subr.mxu0 0.0
        %3887 = vmatpush1.msra.mxu0 0.0
        %3888 = vmatprep.subr.mxu0 0.0
        %3889 = vmatpush1.msra.mxu0 0.0
        %3890 = vmatprep.subr.mxu0 0.0
        %3891 = vmatpush1.msra.mxu0 0.0
        %3892 = vmatprep.subr.mxu0 0.0
        %3893 = vmatpush1.msra.mxu0 0.0
        %3894 = vmatprep.subr.mxu0 0.0
        %3895 = vmatpush1.msra.mxu0 0.0
        %3896 = vmatprep.subr.mxu0 0.0
        %3897 = vmatpush1.msra.mxu0 0.0
        %3898 = vmatprep.subr.mxu0 0.0
        %3899 = vmatpush1.msra.mxu0 0.0
        %3900 = vmatprep.subr.mxu0 0.0
        %3901 = vmatpush1.msra.mxu0 0.0
        %3902 = vmatprep.subr.mxu0 0.0
        %3903 = vmatpush1.msra.mxu0 0.0
        %3904 = vmatprep.subr.mxu0 0.0
        %3905 = vmatpush1.msra.mxu0 0.0
        %3906 = vmatprep.subr.mxu0 0.0
        %3907 = vmatpush1.msra.mxu0 0.0
        %3908 = vmatprep.subr.mxu0 0.0
        %3909 = vmatpush1.msra.mxu0 0.0
        %3910 = vmatprep.subr.mxu0 0.0
        %3911 = vmatpush1.msra.mxu0 0.0
        %3912 = vmatprep.subr.mxu0 0.0
        %3913 = vmatpush1.msra.mxu0 0.0
        %3914 = vmatprep.mubr.f32.mxu0 0.0
        %3915 = vmatmul.mubr.f32.gmra.mrb[0].mxu0 %v3848
        %v3916 = vpop.f32.mrb[0].mxu0
        %v3917 = vadd.f32 0.0, %v3916
        %v3918 = vpop.f32.mrb[0].mxu0
        %3919 = vdwg.mxu0
        %v3920 = vmax.f32 %v3845, %v3917
        %v3921 = vmax.f32 %v3920, 0.0
        %vm3922 = vcmask 64512
        %v3923 = vsel %vm3922, %v1898, 0
        %3925 = vmatprep.subr.mxu0 0.0
        %3926 = vmatpush1.msra.mxu0 %v3921
        %3927 = vmatprep.subr.mxu0 0.0
        %3928 = vmatpush1.msra.mxu0 0.0
        %3929 = vmatprep.subr.mxu0 0.0
        %3930 = vmatpush1.msra.mxu0 0.0
        %3931 = vmatprep.subr.mxu0 0.0
        %3932 = vmatpush1.msra.mxu0 0.0
        %3933 = vmatprep.subr.mxu0 0.0
        %3934 = vmatpush1.msra.mxu0 0.0
        %3935 = vmatprep.subr.mxu0 0.0
        %3936 = vmatpush1.msra.mxu0 0.0
        %3937 = vmatprep.subr.mxu0 0.0
        %3938 = vmatpush1.msra.mxu0 0.0
        %3939 = vmatprep.subr.mxu0 0.0
        %3940 = vmatpush1.msra.mxu0 0.0
        %3941 = vmatprep.subr.mxu0 0.0
        %3942 = vmatpush1.msra.mxu0 0.0
        %3943 = vmatprep.subr.mxu0 0.0
        %3944 = vmatpush1.msra.mxu0 0.0
        %3945 = vmatprep.subr.mxu0 0.0
        %3946 = vmatpush1.msra.mxu0 0.0
        %3947 = vmatprep.subr.mxu0 0.0
        %3948 = vmatpush1.msra.mxu0 0.0
        %3949 = vmatprep.subr.mxu0 0.0
        %3950 = vmatpush1.msra.mxu0 0.0
        %3951 = vmatprep.subr.mxu0 0.0
        %3952 = vmatpush1.msra.mxu0 0.0
        %3953 = vmatprep.subr.mxu0 0.0
        %3954 = vmatpush1.msra.mxu0 0.0
        %3955 = vmatprep.subr.mxu0 0.0
        %3956 = vmatpush1.msra.mxu0 0.0
        %3957 = vmatprep.subr.mxu0 0.0
        %3958 = vmatpush1.msra.mxu0 0.0
        %3959 = vmatprep.subr.mxu0 0.0
        %3960 = vmatpush1.msra.mxu0 0.0
        %3961 = vmatprep.subr.mxu0 0.0
        %3962 = vmatpush1.msra.mxu0 0.0
        %3963 = vmatprep.subr.mxu0 0.0
        %3964 = vmatpush1.msra.mxu0 0.0
        %3965 = vmatprep.subr.mxu0 0.0
        %3966 = vmatpush1.msra.mxu0 0.0
        %3967 = vmatprep.subr.mxu0 0.0
        %3968 = vmatpush1.msra.mxu0 0.0
        %3969 = vmatprep.subr.mxu0 0.0
        %3970 = vmatpush1.msra.mxu0 0.0
        %3971 = vmatprep.subr.mxu0 0.0
        %3972 = vmatpush1.msra.mxu0 0.0
        %3973 = vmatprep.subr.mxu0 0.0
        %3974 = vmatpush1.msra.mxu0 0.0
        %3975 = vmatprep.subr.mxu0 0.0
        %3976 = vmatpush1.msra.mxu0 0.0
        %3977 = vmatprep.subr.mxu0 0.0
        %3978 = vmatpush1.msra.mxu0 0.0
        %3979 = vmatprep.subr.mxu0 0.0
        %3980 = vmatpush1.msra.mxu0 0.0
        %3981 = vmatprep.subr.mxu0 0.0
        %3982 = vmatpush1.msra.mxu0 0.0
        %3983 = vmatprep.subr.mxu0 0.0
        %3984 = vmatpush1.msra.mxu0 0.0
        %3985 = vmatprep.subr.mxu0 0.0
        %3986 = vmatpush1.msra.mxu0 0.0
        %3987 = vmatprep.subr.mxu0 0.0
        %3988 = vmatpush1.msra.mxu0 0.0
        %3989 = vmatprep.mubr.f32.mxu0 0.0
        %3990 = vmatmul.mubr.f32.gmra.mrb[0].mxu0 %v3923
        %v3991 = vpop.f32.mrb[0].mxu0
        %v3992 = vadd.f32 0.0, %v3991
        %v3993 = vpop.f32.mrb[0].mxu0
        %3994 = vdwg.mxu0
        %v3995 = vadd.s32 %v1412, 2
        %vm3996 = vcmp.eq.s32.totalorder %v1421, %v3995
        %v3997 = vsel %vm3996, 1, 0
        %v3998 = vcvt.s32.f32 %v3997
        %v4000 = vsel %vm3922, %v3998, 0
        %4002 = vmatprep.subr.mxu0 0.0
        %4003 = vmatpush1.msra.mxu0 %v3921
        %4004 = vmatprep.subr.mxu0 0.0
        %4005 = vmatpush1.msra.mxu0 0.0
        %4006 = vmatprep.subr.mxu0 0.0
        %4007 = vmatpush1.msra.mxu0 0.0
        %4008 = vmatprep.subr.mxu0 0.0
        %4009 = vmatpush1.msra.mxu0 0.0
        %4010 = vmatprep.subr.mxu0 0.0
        %4011 = vmatpush1.msra.mxu0 0.0
        %4012 = vmatprep.subr.mxu0 0.0
        %4013 = vmatpush1.msra.mxu0 0.0
        %4014 = vmatprep.subr.mxu0 0.0
        %4015 = vmatpush1.msra.mxu0 0.0
        %4016 = vmatprep.subr.mxu0 0.0
        %4017 = vmatpush1.msra.mxu0 0.0
        %4018 = vmatprep.subr.mxu0 0.0
        %4019 = vmatpush1.msra.mxu0 0.0
        %4020 = vmatprep.subr.mxu0 0.0
        %4021 = vmatpush1.msra.mxu0 0.0
        %4022 = vmatprep.subr.mxu0 0.0
        %4023 = vmatpush1.msra.mxu0 0.0
        %4024 = vmatprep.subr.mxu0 0.0
        %4025 = vmatpush1.msra.mxu0 0.0
        %4026 = vmatprep.subr.mxu0 0.0
        %4027 = vmatpush1.msra.mxu0 0.0
        %4028 = vmatprep.subr.mxu0 0.0
        %4029 = vmatpush1.msra.mxu0 0.0
        %4030 = vmatprep.subr.mxu0 0.0
        %4031 = vmatpush1.msra.mxu0 0.0
        %4032 = vmatprep.subr.mxu0 0.0
        %4033 = vmatpush1.msra.mxu0 0.0
        %4034 = vmatprep.subr.mxu0 0.0
        %4035 = vmatpush1.msra.mxu0 0.0
        %4036 = vmatprep.subr.mxu0 0.0
        %4037 = vmatpush1.msra.mxu0 0.0
        %4038 = vmatprep.subr.mxu0 0.0
        %4039 = vmatpush1.msra.mxu0 0.0
        %4040 = vmatprep.subr.mxu0 0.0
        %4041 = vmatpush1.msra.mxu0 0.0
        %4042 = vmatprep.subr.mxu0 0.0
        %4043 = vmatpush1.msra.mxu0 0.0
        %4044 = vmatprep.subr.mxu0 0.0
        %4045 = vmatpush1.msra.mxu0 0.0
        %4046 = vmatprep.subr.mxu0 0.0
        %4047 = vmatpush1.msra.mxu0 0.0
        %4048 = vmatprep.subr.mxu0 0.0
        %4049 = vmatpush1.msra.mxu0 0.0
        %4050 = vmatprep.subr.mxu0 0.0
        %4051 = vmatpush1.msra.mxu0 0.0
        %4052 = vmatprep.subr.mxu0 0.0
        %4053 = vmatpush1.msra.mxu0 0.0
        %4054 = vmatprep.subr.mxu0 0.0
        %4055 = vmatpush1.msra.mxu0 0.0
        %4056 = vmatprep.subr.mxu0 0.0
        %4057 = vmatpush1.msra.mxu0 0.0
        %4058 = vmatprep.subr.mxu0 0.0
        %4059 = vmatpush1.msra.mxu0 0.0
        %4060 = vmatprep.subr.mxu0 0.0
        %4061 = vmatpush1.msra.mxu0 0.0
        %4062 = vmatprep.subr.mxu0 0.0
        %4063 = vmatpush1.msra.mxu0 0.0
        %4064 = vmatprep.subr.mxu0 0.0
        %4065 = vmatpush1.msra.mxu0 0.0
        %4066 = vmatprep.mubr.f32.mxu0 0.0
        %4067 = vmatmul.mubr.f32.gmra.mrb[0].mxu0 %v4000
        %v4068 = vpop.f32.mrb[0].mxu0
        %v4069 = vadd.f32 0.0, %v4068
        %v4070 = vpop.f32.mrb[0].mxu0
        %4071 = vdwg.mxu0
        %v4072 = vld [vmem:[%s10] sm:$0x1]
        %v4073 = vld [vmem:[%s9] sm:$0xff]
        %v4074 = vld [vmem:[%s9 + $0x8] sm:$0xff]
        %v4075 = vld [vmem:[%s9 + $0x10] sm:$0xff]
        %v4076 = vld [vmem:[%s9 + $0x18] sm:$0xff]
        %v4077 = vld [vmem:[%s9 + $0x20] sm:$0xff]
        %v4078 = vld [vmem:[%s9 + $0x28] sm:$0xff]
        %v4079 = vld [vmem:[%s9 + $0x30] sm:$0xff]
        %v4080 = vld [vmem:[%s9 + $0x38] sm:$0xff]
        %v4082 = vsel %vm1744, %v3921, 0
        %4084 = vmatprep.subr.mxu0 0.0
        %4085 = vmatpush1.msra.mxu0 %v4073
        %4086 = vmatprep.subr.mxu0 0.0
        %4087 = vmatpush1.msra.mxu0 %v4074
        %4088 = vmatprep.subr.mxu0 0.0
        %4089 = vmatpush1.msra.mxu0 %v4075
        %4090 = vmatprep.subr.mxu0 0.0
        %4091 = vmatpush1.msra.mxu0 %v4076
        %4092 = vmatprep.subr.mxu0 0.0
        %4093 = vmatpush1.msra.mxu0 %v4077
        %4094 = vmatprep.subr.mxu0 0.0
        %4095 = vmatpush1.msra.mxu0 %v4078
        %4096 = vmatprep.subr.mxu0 0.0
        %4097 = vmatpush1.msra.mxu0 %v4079
        %4098 = vmatprep.subr.mxu0 0.0
        %4099 = vmatpush1.msra.mxu0 %v4080
        %4100 = vmatprep.subr.mxu0 0.0
        %4101 = vmatpush1.msra.mxu0 0.0
        %4102 = vmatprep.subr.mxu0 0.0
        %4103 = vmatpush1.msra.mxu0 0.0
        %4104 = vmatprep.subr.mxu0 0.0
        %4105 = vmatpush1.msra.mxu0 0.0
        %4106 = vmatprep.subr.mxu0 0.0
        %4107 = vmatpush1.msra.mxu0 0.0
        %4108 = vmatprep.subr.mxu0 0.0
        %4109 = vmatpush1.msra.mxu0 0.0
        %4110 = vmatprep.subr.mxu0 0.0
        %4111 = vmatpush1.msra.mxu0 0.0
        %4112 = vmatprep.subr.mxu0 0.0
        %4113 = vmatpush1.msra.mxu0 0.0
        %4114 = vmatprep.subr.mxu0 0.0
        %4115 = vmatpush1.msra.mxu0 0.0
        %4116 = vmatprep.subr.mxu0 0.0
        %4117 = vmatpush1.msra.mxu0 0.0
        %4118 = vmatprep.subr.mxu0 0.0
        %4119 = vmatpush1.msra.mxu0 0.0
        %4120 = vmatprep.subr.mxu0 0.0
        %4121 = vmatpush1.msra.mxu0 0.0
        %4122 = vmatprep.subr.mxu0 0.0
        %4123 = vmatpush1.msra.mxu0 0.0
        %4124 = vmatprep.subr.mxu0 0.0
        %4125 = vmatpush1.msra.mxu0 0.0
        %4126 = vmatprep.subr.mxu0 0.0
        %4127 = vmatpush1.msra.mxu0 0.0
        %4128 = vmatprep.subr.mxu0 0.0
        %4129 = vmatpush1.msra.mxu0 0.0
        %4130 = vmatprep.subr.mxu0 0.0
        %4131 = vmatpush1.msra.mxu0 0.0
        %4132 = vmatprep.subr.mxu0 0.0
        %4133 = vmatpush1.msra.mxu0 0.0
        %4134 = vmatprep.subr.mxu0 0.0
        %4135 = vmatpush1.msra.mxu0 0.0
        %4136 = vmatprep.subr.mxu0 0.0
        %4137 = vmatpush1.msra.mxu0 0.0
        %4138 = vmatprep.subr.mxu0 0.0
        %4139 = vmatpush1.msra.mxu0 0.0
        %4140 = vmatprep.subr.mxu0 0.0
        %4141 = vmatpush1.msra.mxu0 0.0
        %4142 = vmatprep.subr.mxu0 0.0
        %4143 = vmatpush1.msra.mxu0 0.0
        %4144 = vmatprep.subr.mxu0 0.0
        %4145 = vmatpush1.msra.mxu0 0.0
        %4146 = vmatprep.subr.mxu0 0.0
        %4147 = vmatpush1.msra.mxu0 0.0
        %4148 = vmatprep.mubr.f32.mxu0 0.0
        %4149 = vmatmul.mubr.f32.gmra.mrb[0].mxu0 %v4082
        %v4150 = vpop.f32.mrb[0].mxu0
        %v4151 = vadd.f32 0.0, %v4150
        %v4152 = vpop.f32.mrb[0].mxu0
        %4153 = vdwg.mxu0
        %v4155 = vlaneseq
        %v4156 = vshrl.u32 %v4155, 7
        %v4157 = vsub.s32 0, %v4156
        %v4158 = vrot.slane %v4072, %v4157
        %v4160 = vadd.f32 %v4158, %v4151
        %s4161 = scalar_lea.vmem %s9, 64
        %v4162 = vld [vmem:[%s4161] sm:$0xff]
        %v4163 = vld [vmem:[%s4161 + $0x8] sm:$0xff]
        %v4164 = vld [vmem:[%s4161 + $0x10] sm:$0xff]
        %v4165 = vld [vmem:[%s4161 + $0x18] sm:$0xff]
        %v4166 = vld [vmem:[%s4161 + $0x20] sm:$0xff]
        %v4167 = vld [vmem:[%s4161 + $0x28] sm:$0xff]
        %v4168 = vld [vmem:[%s4161 + $0x30] sm:$0xff]
        %v4169 = vld [vmem:[%s4161 + $0x38] sm:$0xff]
        %v4171 = vsel %vm1744, %v3992, 0
        %4173 = vmatprep.subr.mxu0 0.0
        %4174 = vmatpush1.msra.mxu0 %v4162
        %4175 = vmatprep.subr.mxu0 0.0
        %4176 = vmatpush1.msra.mxu0 %v4163
        %4177 = vmatprep.subr.mxu0 0.0
        %4178 = vmatpush1.msra.mxu0 %v4164
        %4179 = vmatprep.subr.mxu0 0.0
        %4180 = vmatpush1.msra.mxu0 %v4165
        %4181 = vmatprep.subr.mxu0 0.0
        %4182 = vmatpush1.msra.mxu0 %v4166
        %4183 = vmatprep.subr.mxu0 0.0
        %4184 = vmatpush1.msra.mxu0 %v4167
        %4185 = vmatprep.subr.mxu0 0.0
        %4186 = vmatpush1.msra.mxu0 %v4168
        %4187 = vmatprep.subr.mxu0 0.0
        %4188 = vmatpush1.msra.mxu0 %v4169
        %4189 = vmatprep.subr.mxu0 0.0
        %4190 = vmatpush1.msra.mxu0 0.0
        %4191 = vmatprep.subr.mxu0 0.0
        %4192 = vmatpush1.msra.mxu0 0.0
        %4193 = vmatprep.subr.mxu0 0.0
        %4194 = vmatpush1.msra.mxu0 0.0
        %4195 = vmatprep.subr.mxu0 0.0
        %4196 = vmatpush1.msra.mxu0 0.0
        %4197 = vmatprep.subr.mxu0 0.0
        %4198 = vmatpush1.msra.mxu0 0.0
        %4199 = vmatprep.subr.mxu0 0.0
        %4200 = vmatpush1.msra.mxu0 0.0
        %4201 = vmatprep.subr.mxu0 0.0
        %4202 = vmatpush1.msra.mxu0 0.0
        %4203 = vmatprep.subr.mxu0 0.0
        %4204 = vmatpush1.msra.mxu0 0.0
        %4205 = vmatprep.subr.mxu0 0.0
        %4206 = vmatpush1.msra.mxu0 0.0
        %4207 = vmatprep.subr.mxu0 0.0
        %4208 = vmatpush1.msra.mxu0 0.0
        %4209 = vmatprep.subr.mxu0 0.0
        %4210 = vmatpush1.msra.mxu0 0.0
        %4211 = vmatprep.subr.mxu0 0.0
        %4212 = vmatpush1.msra.mxu0 0.0
        %4213 = vmatprep.subr.mxu0 0.0
        %4214 = vmatpush1.msra.mxu0 0.0
        %4215 = vmatprep.subr.mxu0 0.0
        %4216 = vmatpush1.msra.mxu0 0.0
        %4217 = vmatprep.subr.mxu0 0.0
        %4218 = vmatpush1.msra.mxu0 0.0
        %4219 = vmatprep.subr.mxu0 0.0
        %4220 = vmatpush1.msra.mxu0 0.0
        %4221 = vmatprep.subr.mxu0 0.0
        %4222 = vmatpush1.msra.mxu0 0.0
        %4223 = vmatprep.subr.mxu0 0.0
        %4224 = vmatpush1.msra.mxu0 0.0
        %4225 = vmatprep.subr.mxu0 0.0
        %4226 = vmatpush1.msra.mxu0 0.0
        %4227 = vmatprep.subr.mxu0 0.0
        %4228 = vmatpush1.msra.mxu0 0.0
        %4229 = vmatprep.subr.mxu0 0.0
        %4230 = vmatpush1.msra.mxu0 0.0
        %4231 = vmatprep.subr.mxu0 0.0
        %4232 = vmatpush1.msra.mxu0 0.0
        %4233 = vmatprep.subr.mxu0 0.0
        %4234 = vmatpush1.msra.mxu0 0.0
        %4235 = vmatprep.subr.mxu0 0.0
        %4236 = vmatpush1.msra.mxu0 0.0
        %4237 = vmatprep.mubr.f32.mxu0 0.0
        %4238 = vmatmul.mubr.f32.gmra.mrb[0].mxu0 %v4171
        %v4239 = vpop.f32.mrb[0].mxu0
        %v4240 = vadd.f32 0.0, %v4239
        %v4241 = vpop.f32.mrb[0].mxu0
        %4242 = vdwg.mxu0
        %v4243 = vadd.f32 %v4160, %v4240
        %s4244 = scalar_lea.vmem %s9, 128
        %v4245 = vld [vmem:[%s4244] sm:$0xff]
        %v4246 = vld [vmem:[%s4244 + $0x8] sm:$0xff]
        %v4247 = vld [vmem:[%s4244 + $0x10] sm:$0xff]
        %v4248 = vld [vmem:[%s4244 + $0x18] sm:$0xff]
        %v4249 = vld [vmem:[%s4244 + $0x20] sm:$0xff]
        %v4250 = vld [vmem:[%s4244 + $0x28] sm:$0xff]
        %v4251 = vld [vmem:[%s4244 + $0x30] sm:$0xff]
        %v4252 = vld [vmem:[%s4244 + $0x38] sm:$0xff]
        %v4254 = vsel %vm1744, %v4069, 0
        %4256 = vmatprep.subr.mxu0 0.0
        %4257 = vmatpush1.msra.mxu0 %v4245
        %4258 = vmatprep.subr.mxu0 0.0
        %4259 = vmatpush1.msra.mxu0 %v4246
        %4260 = vmatprep.subr.mxu0 0.0
        %4261 = vmatpush1.msra.mxu0 %v4247
        %4262 = vmatprep.subr.mxu0 0.0
        %4263 = vmatpush1.msra.mxu0 %v4248
        %4264 = vmatprep.subr.mxu0 0.0
        %4265 = vmatpush1.msra.mxu0 %v4249
        %4266 = vmatprep.subr.mxu0 0.0
        %4267 = vmatpush1.msra.mxu0 %v4250
        %4268 = vmatprep.subr.mxu0 0.0
        %4269 = vmatpush1.msra.mxu0 %v4251
        %4270 = vmatprep.subr.mxu0 0.0
        %4271 = vmatpush1.msra.mxu0 %v4252
        %4272 = vmatprep.subr.mxu0 0.0
        %4273 = vmatpush1.msra.mxu0 0.0
        %4274 = vmatprep.subr.mxu0 0.0
        %4275 = vmatpush1.msra.mxu0 0.0
        %4276 = vmatprep.subr.mxu0 0.0
        %4277 = vmatpush1.msra.mxu0 0.0
        %4278 = vmatprep.subr.mxu0 0.0
        %4279 = vmatpush1.msra.mxu0 0.0
        %4280 = vmatprep.subr.mxu0 0.0
        %4281 = vmatpush1.msra.mxu0 0.0
        %4282 = vmatprep.subr.mxu0 0.0
        %4283 = vmatpush1.msra.mxu0 0.0
        %4284 = vmatprep.subr.mxu0 0.0
        %4285 = vmatpush1.msra.mxu0 0.0
        %4286 = vmatprep.subr.mxu0 0.0
        %4287 = vmatpush1.msra.mxu0 0.0
        %4288 = vmatprep.subr.mxu0 0.0
        %4289 = vmatpush1.msra.mxu0 0.0
        %4290 = vmatprep.subr.mxu0 0.0
        %4291 = vmatpush1.msra.mxu0 0.0
        %4292 = vmatprep.subr.mxu0 0.0
        %4293 = vmatpush1.msra.mxu0 0.0
        %4294 = vmatprep.subr.mxu0 0.0
        %4295 = vmatpush1.msra.mxu0 0.0
        %4296 = vmatprep.subr.mxu0 0.0
        %4297 = vmatpush1.msra.mxu0 0.0
        %4298 = vmatprep.subr.mxu0 0.0
        %4299 = vmatpush1.msra.mxu0 0.0
        %4300 = vmatprep.subr.mxu0 0.0
        %4301 = vmatpush1.msra.mxu0 0.0
        %4302 = vmatprep.subr.mxu0 0.0
        %4303 = vmatpush1.msra.mxu0 0.0
        %4304 = vmatprep.subr.mxu0 0.0
        %4305 = vmatpush1.msra.mxu0 0.0
        %4306 = vmatprep.subr.mxu0 0.0
        %4307 = vmatpush1.msra.mxu0 0.0
        %4308 = vmatprep.subr.mxu0 0.0
        %4309 = vmatpush1.msra.mxu0 0.0
        %4310 = vmatprep.subr.mxu0 0.0
        %4311 = vmatpush1.msra.mxu0 0.0
        %4312 = vmatprep.subr.mxu0 0.0
        %4313 = vmatpush1.msra.mxu0 0.0
        %4314 = vmatprep.subr.mxu0 0.0
        %4315 = vmatpush1.msra.mxu0 0.0
        %4316 = vmatprep.subr.mxu0 0.0
        %4317 = vmatpush1.msra.mxu0 0.0
        %4318 = vmatprep.subr.mxu0 0.0
        %4319 = vmatpush1.msra.mxu0 0.0
        %4320 = vmatprep.mubr.f32.mxu0 0.0
        %4321 = vmatmul.mubr.f32.gmra.mrb[0].mxu0 %v4254
        %v4322 = vpop.f32.mrb[0].mxu0
        %v4323 = vadd.f32 0.0, %v4322
        %v4324 = vpop.f32.mrb[0].mxu0
        %4325 = vdwg.mxu0
        %v4326 = vadd.f32 %v4243, %v4323
        %v4327 = vsel %vm3922, %v1446, 0
        %4329 = vmatprep.subr.mxu0 0.0
        %4330 = vmatpush1.msra.mxu0 %v4326
        %4331 = vmatprep.subr.mxu0 0.0
        %4332 = vmatpush1.msra.mxu0 0.0
        %4333 = vmatprep.subr.mxu0 0.0
        %4334 = vmatpush1.msra.mxu0 0.0
        %4335 = vmatprep.subr.mxu0 0.0
        %4336 = vmatpush1.msra.mxu0 0.0
        %4337 = vmatprep.subr.mxu0 0.0
        %4338 = vmatpush1.msra.mxu0 0.0
        %4339 = vmatprep.subr.mxu0 0.0
        %4340 = vmatpush1.msra.mxu0 0.0
        %4341 = vmatprep.subr.mxu0 0.0
        %4342 = vmatpush1.msra.mxu0 0.0
        %4343 = vmatprep.subr.mxu0 0.0
        %4344 = vmatpush1.msra.mxu0 0.0
        %4345 = vmatprep.subr.mxu0 0.0
        %4346 = vmatpush1.msra.mxu0 0.0
        %4347 = vmatprep.subr.mxu0 0.0
        %4348 = vmatpush1.msra.mxu0 0.0
        %4349 = vmatprep.subr.mxu0 0.0
        %4350 = vmatpush1.msra.mxu0 0.0
        %4351 = vmatprep.subr.mxu0 0.0
        %4352 = vmatpush1.msra.mxu0 0.0
        %4353 = vmatprep.subr.mxu0 0.0
        %4354 = vmatpush1.msra.mxu0 0.0
        %4355 = vmatprep.subr.mxu0 0.0
        %4356 = vmatpush1.msra.mxu0 0.0
        %4357 = vmatprep.subr.mxu0 0.0
        %4358 = vmatpush1.msra.mxu0 0.0
        %4359 = vmatprep.subr.mxu0 0.0
        %4360 = vmatpush1.msra.mxu0 0.0
        %4361 = vmatprep.subr.mxu0 0.0
        %4362 = vmatpush1.msra.mxu0 0.0
        %4363 = vmatprep.subr.mxu0 0.0
        %4364 = vmatpush1.msra.mxu0 0.0
        %4365 = vmatprep.subr.mxu0 0.0
        %4366 = vmatpush1.msra.mxu0 0.0
        %4367 = vmatprep.subr.mxu0 0.0
        %4368 = vmatpush1.msra.mxu0 0.0
        %4369 = vmatprep.subr.mxu0 0.0
        %4370 = vmatpush1.msra.mxu0 0.0
        %4371 = vmatprep.subr.mxu0 0.0
        %4372 = vmatpush1.msra.mxu0 0.0
        %4373 = vmatprep.subr.mxu0 0.0
        %4374 = vmatpush1.msra.mxu0 0.0
        %4375 = vmatprep.subr.mxu0 0.0
        %4376 = vmatpush1.msra.mxu0 0.0
        %4377 = vmatprep.subr.mxu0 0.0
        %4378 = vmatpush1.msra.mxu0 0.0
        %4379 = vmatprep.subr.mxu0 0.0
        %4380 = vmatpush1.msra.mxu0 0.0
        %4381 = vmatprep.subr.mxu0 0.0
        %4382 = vmatpush1.msra.mxu0 0.0
        %4383 = vmatprep.subr.mxu0 0.0
        %4384 = vmatpush1.msra.mxu0 0.0
        %4385 = vmatprep.subr.mxu0 0.0
        %4386 = vmatpush1.msra.mxu0 0.0
        %4387 = vmatprep.subr.mxu0 0.0
        %4388 = vmatpush1.msra.mxu0 0.0
        %4389 = vmatprep.subr.mxu0 0.0
        %4390 = vmatpush1.msra.mxu0 0.0
        %4391 = vmatprep.subr.mxu0 0.0
        %4392 = vmatpush1.msra.mxu0 0.0
        %4393 = vmatprep.mubr.f32.mxu0 0.0
        %4394 = vmatmul.mubr.f32.gmra.mrb[0].mxu0 %v4327
        %v4395 = vpop.f32.mrb[0].mxu0
        %v4396 = vadd.f32 0.0, %v4395
        %v4397 = vpop.f32.mrb[0].mxu0
        %4398 = vdwg.mxu0
        %v4399 = vsel %vm3922, %v1583, 0
        %4401 = vmatprep.subr.mxu0 0.0
        %4402 = vmatpush1.msra.mxu0 %v4326
        %4403 = vmatprep.subr.mxu0 0.0
        %4404 = vmatpush1.msra.mxu0 0.0
        %4405 = vmatprep.subr.mxu0 0.0
        %4406 = vmatpush1.msra.mxu0 0.0
        %4407 = vmatprep.subr.mxu0 0.0
        %4408 = vmatpush1.msra.mxu0 0.0
        %4409 = vmatprep.subr.mxu0 0.0
        %4410 = vmatpush1.msra.mxu0 0.0
        %4411 = vmatprep.subr.mxu0 0.0
        %4412 = vmatpush1.msra.mxu0 0.0
        %4413 = vmatprep.subr.mxu0 0.0
        %4414 = vmatpush1.msra.mxu0 0.0
        %4415 = vmatprep.subr.mxu0 0.0
        %4416 = vmatpush1.msra.mxu0 0.0
        %4417 = vmatprep.subr.mxu0 0.0
        %4418 = vmatpush1.msra.mxu0 0.0
        %4419 = vmatprep.subr.mxu0 0.0
        %4420 = vmatpush1.msra.mxu0 0.0
        %4421 = vmatprep.subr.mxu0 0.0
        %4422 = vmatpush1.msra.mxu0 0.0
        %4423 = vmatprep.subr.mxu0 0.0
        %4424 = vmatpush1.msra.mxu0 0.0
        %4425 = vmatprep.subr.mxu0 0.0
        %4426 = vmatpush1.msra.mxu0 0.0
        %4427 = vmatprep.subr.mxu0 0.0
        %4428 = vmatpush1.msra.mxu0 0.0
        %4429 = vmatprep.subr.mxu0 0.0
        %4430 = vmatpush1.msra.mxu0 0.0
        %4431 = vmatprep.subr.mxu0 0.0
        %4432 = vmatpush1.msra.mxu0 0.0
        %4433 = vmatprep.subr.mxu0 0.0
        %4434 = vmatpush1.msra.mxu0 0.0
        %4435 = vmatprep.subr.mxu0 0.0
        %4436 = vmatpush1.msra.mxu0 0.0
        %4437 = vmatprep.subr.mxu0 0.0
        %4438 = vmatpush1.msra.mxu0 0.0
        %4439 = vmatprep.subr.mxu0 0.0
        %4440 = vmatpush1.msra.mxu0 0.0
        %4441 = vmatprep.subr.mxu0 0.0
        %4442 = vmatpush1.msra.mxu0 0.0
        %4443 = vmatprep.subr.mxu0 0.0
        %4444 = vmatpush1.msra.mxu0 0.0
        %4445 = vmatprep.subr.mxu0 0.0
        %4446 = vmatpush1.msra.mxu0 0.0
        %4447 = vmatprep.subr.mxu0 0.0
        %4448 = vmatpush1.msra.mxu0 0.0
        %4449 = vmatprep.subr.mxu0 0.0
        %4450 = vmatpush1.msra.mxu0 0.0
        %4451 = vmatprep.subr.mxu0 0.0
        %4452 = vmatpush1.msra.mxu0 0.0
        %4453 = vmatprep.subr.mxu0 0.0
        %4454 = vmatpush1.msra.mxu0 0.0
        %4455 = vmatprep.subr.mxu0 0.0
        %4456 = vmatpush1.msra.mxu0 0.0
        %4457 = vmatprep.subr.mxu0 0.0
        %4458 = vmatpush1.msra.mxu0 0.0
        %4459 = vmatprep.subr.mxu0 0.0
        %4460 = vmatpush1.msra.mxu0 0.0
        %4461 = vmatprep.subr.mxu0 0.0
        %4462 = vmatpush1.msra.mxu0 0.0
        %4463 = vmatprep.subr.mxu0 0.0
        %4464 = vmatpush1.msra.mxu0 0.0
        %4465 = vmatprep.mubr.f32.mxu0 0.0
        %4466 = vmatmul.mubr.f32.gmra.mrb[0].mxu0 %v4399
        %v4467 = vpop.f32.mrb[0].mxu0
        %v4468 = vadd.f32 0.0, %v4467
        %v4469 = vpop.f32.mrb[0].mxu0
        %4470 = vdwg.mxu0
        %v4471 = vmax.f32 %v4396, %v4468
        %v4472 = vmax.f32 %v4471, 0.0
        %v4473 = vld [vmem:[%s12] sm:$0x1]
        %v4474 = vld [vmem:[%s11] sm:$0xff]
        %v4475 = vld [vmem:[%s11 + $0x8] sm:$0xff]
        %v4476 = vld [vmem:[%s11 + $0x10] sm:$0xff]
        %v4477 = vld [vmem:[%s11 + $0x18] sm:$0xff]
        %v4478 = vld [vmem:[%s11 + $0x20] sm:$0xff]
        %v4479 = vld [vmem:[%s11 + $0x28] sm:$0xff]
        %v4480 = vld [vmem:[%s11 + $0x30] sm:$0xff]
        %v4481 = vld [vmem:[%s11 + $0x38] sm:$0xff]
        %v4483 = vsel %vm1744, %v4472, 0
        %4485 = vmatprep.subr.mxu0 0.0
        %4486 = vmatpush1.msra.mxu0 %v4474
        %4487 = vmatprep.subr.mxu0 0.0
        %4488 = vmatpush1.msra.mxu0 %v4475
        %4489 = vmatprep.subr.mxu0 0.0
        %4490 = vmatpush1.msra.mxu0 %v4476
        %4491 = vmatprep.subr.mxu0 0.0
        %4492 = vmatpush1.msra.mxu0 %v4477
        %4493 = vmatprep.subr.mxu0 0.0
        %4494 = vmatpush1.msra.mxu0 %v4478
        %4495 = vmatprep.subr.mxu0 0.0
        %4496 = vmatpush1.msra.mxu0 %v4479
        %4497 = vmatprep.subr.mxu0 0.0
        %4498 = vmatpush1.msra.mxu0 %v4480
        %4499 = vmatprep.subr.mxu0 0.0
        %4500 = vmatpush1.msra.mxu0 %v4481
        %4501 = vmatprep.subr.mxu0 0.0
        %4502 = vmatpush1.msra.mxu0 0.0
        %4503 = vmatprep.subr.mxu0 0.0
        %4504 = vmatpush1.msra.mxu0 0.0
        %4505 = vmatprep.subr.mxu0 0.0
        %4506 = vmatpush1.msra.mxu0 0.0
        %4507 = vmatprep.subr.mxu0 0.0
        %4508 = vmatpush1.msra.mxu0 0.0
        %4509 = vmatprep.subr.mxu0 0.0
        %4510 = vmatpush1.msra.mxu0 0.0
        %4511 = vmatprep.subr.mxu0 0.0
        %4512 = vmatpush1.msra.mxu0 0.0
        %4513 = vmatprep.subr.mxu0 0.0
        %4514 = vmatpush1.msra.mxu0 0.0
        %4515 = vmatprep.subr.mxu0 0.0
        %4516 = vmatpush1.msra.mxu0 0.0
        %4517 = vmatprep.subr.mxu0 0.0
        %4518 = vmatpush1.msra.mxu0 0.0
        %4519 = vmatprep.subr.mxu0 0.0
        %4520 = vmatpush1.msra.mxu0 0.0
        %4521 = vmatprep.subr.mxu0 0.0
        %4522 = vmatpush1.msra.mxu0 0.0
        %4523 = vmatprep.subr.mxu0 0.0
        %4524 = vmatpush1.msra.mxu0 0.0
        %4525 = vmatprep.subr.mxu0 0.0
        %4526 = vmatpush1.msra.mxu0 0.0
        %4527 = vmatprep.subr.mxu0 0.0
        %4528 = vmatpush1.msra.mxu0 0.0
        %4529 = vmatprep.subr.mxu0 0.0
        %4530 = vmatpush1.msra.mxu0 0.0
        %4531 = vmatprep.subr.mxu0 0.0
        %4532 = vmatpush1.msra.mxu0 0.0
        %4533 = vmatprep.subr.mxu0 0.0
        %4534 = vmatpush1.msra.mxu0 0.0
        %4535 = vmatprep.subr.mxu0 0.0
        %4536 = vmatpush1.msra.mxu0 0.0
        %4537 = vmatprep.subr.mxu0 0.0
        %4538 = vmatpush1.msra.mxu0 0.0
        %4539 = vmatprep.subr.mxu0 0.0
        %4540 = vmatpush1.msra.mxu0 0.0
        %4541 = vmatprep.subr.mxu0 0.0
        %4542 = vmatpush1.msra.mxu0 0.0
        %4543 = vmatprep.subr.mxu0 0.0
        %4544 = vmatpush1.msra.mxu0 0.0
        %4545 = vmatprep.subr.mxu0 0.0
        %4546 = vmatpush1.msra.mxu0 0.0
        %4547 = vmatprep.subr.mxu0 0.0
        %4548 = vmatpush1.msra.mxu0 0.0
        %4549 = vmatprep.mubr.f32.mxu0 0.0
        %4550 = vmatmul.mubr.f32.gmra.mrb[0].mxu0 %v4483
        %v4551 = vpop.f32.mrb[0].mxu0
        %v4552 = vadd.f32 0.0, %v4551
        %v4553 = vpop.f32.mrb[0].mxu0
        %4554 = vdwg.mxu0
        %v4555 = vadd.f32 %v4473, %v4552
        %s4556 = scalar_lea.vmem %s11, 64
        %v4557 = vld [vmem:[%s4556] sm:$0xff]
        %v4558 = vld [vmem:[%s4556 + $0x8] sm:$0xff]
        %v4559 = vld [vmem:[%s4556 + $0x10] sm:$0xff]
        %v4560 = vld [vmem:[%s4556 + $0x18] sm:$0xff]
        %v4561 = vld [vmem:[%s4556 + $0x20] sm:$0xff]
        %v4562 = vld [vmem:[%s4556 + $0x28] sm:$0xff]
        %v4563 = vld [vmem:[%s4556 + $0x30] sm:$0xff]
        %v4564 = vld [vmem:[%s4556 + $0x38] sm:$0xff]
        %v4565 = vrot.slane %v4472, 1
        %v4566 = vsel %vm1744, %v4565, 0
        %4568 = vmatprep.subr.mxu0 0.0
        %4569 = vmatpush1.msra.mxu0 %v4557
        %4570 = vmatprep.subr.mxu0 0.0
        %4571 = vmatpush1.msra.mxu0 %v4558
        %4572 = vmatprep.subr.mxu0 0.0
        %4573 = vmatpush1.msra.mxu0 %v4559
        %4574 = vmatprep.subr.mxu0 0.0
        %4575 = vmatpush1.msra.mxu0 %v4560
        %4576 = vmatprep.subr.mxu0 0.0
        %4577 = vmatpush1.msra.mxu0 %v4561
        %4578 = vmatprep.subr.mxu0 0.0
        %4579 = vmatpush1.msra.mxu0 %v4562
        %4580 = vmatprep.subr.mxu0 0.0
        %4581 = vmatpush1.msra.mxu0 %v4563
        %4582 = vmatprep.subr.mxu0 0.0
        %4583 = vmatpush1.msra.mxu0 %v4564
        %4584 = vmatprep.subr.mxu0 0.0
        %4585 = vmatpush1.msra.mxu0 0.0
        %4586 = vmatprep.subr.mxu0 0.0
        %4587 = vmatpush1.msra.mxu0 0.0
        %4588 = vmatprep.subr.mxu0 0.0
        %4589 = vmatpush1.msra.mxu0 0.0
        %4590 = vmatprep.subr.mxu0 0.0
        %4591 = vmatpush1.msra.mxu0 0.0
        %4592 = vmatprep.subr.mxu0 0.0
        %4593 = vmatpush1.msra.mxu0 0.0
        %4594 = vmatprep.subr.mxu0 0.0
        %4595 = vmatpush1.msra.mxu0 0.0
        %4596 = vmatprep.subr.mxu0 0.0
        %4597 = vmatpush1.msra.mxu0 0.0
        %4598 = vmatprep.subr.mxu0 0.0
        %4599 = vmatpush1.msra.mxu0 0.0
        %4600 = vmatprep.subr.mxu0 0.0
        %4601 = vmatpush1.msra.mxu0 0.0
        %4602 = vmatprep.subr.mxu0 0.0
        %4603 = vmatpush1.msra.mxu0 0.0
        %4604 = vmatprep.subr.mxu0 0.0
        %4605 = vmatpush1.msra.mxu0 0.0
        %4606 = vmatprep.subr.mxu0 0.0
        %4607 = vmatpush1.msra.mxu0 0.0
        %4608 = vmatprep.subr.mxu0 0.0
        %4609 = vmatpush1.msra.mxu0 0.0
        %4610 = vmatprep.subr.mxu0 0.0
        %4611 = vmatpush1.msra.mxu0 0.0
        %4612 = vmatprep.subr.mxu0 0.0
        %4613 = vmatpush1.msra.mxu0 0.0
        %4614 = vmatprep.subr.mxu0 0.0
        %4615 = vmatpush1.msra.mxu0 0.0
        %4616 = vmatprep.subr.mxu0 0.0
        %4617 = vmatpush1.msra.mxu0 0.0
        %4618 = vmatprep.subr.mxu0 0.0
        %4619 = vmatpush1.msra.mxu0 0.0
        %4620 = vmatprep.subr.mxu0 0.0
        %4621 = vmatpush1.msra.mxu0 0.0
        %4622 = vmatprep.subr.mxu0 0.0
        %4623 = vmatpush1.msra.mxu0 0.0
        %4624 = vmatprep.subr.mxu0 0.0
        %4625 = vmatpush1.msra.mxu0 0.0
        %4626 = vmatprep.subr.mxu0 0.0
        %4627 = vmatpush1.msra.mxu0 0.0
        %4628 = vmatprep.subr.mxu0 0.0
        %4629 = vmatpush1.msra.mxu0 0.0
        %4630 = vmatprep.subr.mxu0 0.0
        %4631 = vmatpush1.msra.mxu0 0.0
        %4632 = vmatprep.mubr.f32.mxu0 0.0
        %4633 = vmatmul.mubr.f32.gmra.mrb[0].mxu0 %v4566
        %v4634 = vpop.f32.mrb[0].mxu0
        %v4635 = vadd.f32 0.0, %v4634
        %v4636 = vpop.f32.mrb[0].mxu0
        %4637 = vdwg.mxu0
        %v4638 = vadd.f32 %v4555, %v4635
        %s4639 = scalar_lea.vmem %s11, 128
        %v4640 = vld [vmem:[%s4639] sm:$0xff]
        %v4641 = vld [vmem:[%s4639 + $0x8] sm:$0xff]
        %v4642 = vld [vmem:[%s4639 + $0x10] sm:$0xff]
        %v4643 = vld [vmem:[%s4639 + $0x18] sm:$0xff]
        %v4644 = vld [vmem:[%s4639 + $0x20] sm:$0xff]
        %v4645 = vld [vmem:[%s4639 + $0x28] sm:$0xff]
        %v4646 = vld [vmem:[%s4639 + $0x30] sm:$0xff]
        %v4647 = vld [vmem:[%s4639 + $0x38] sm:$0xff]
        %v4648 = vrot.slane %v4472, 2
        %v4649 = vsel %vm1744, %v4648, 0
        %4651 = vmatprep.subr.mxu0 0.0
        %4652 = vmatpush1.msra.mxu0 %v4640
        %4653 = vmatprep.subr.mxu0 0.0
        %4654 = vmatpush1.msra.mxu0 %v4641
        %4655 = vmatprep.subr.mxu0 0.0
        %4656 = vmatpush1.msra.mxu0 %v4642
        %4657 = vmatprep.subr.mxu0 0.0
        %4658 = vmatpush1.msra.mxu0 %v4643
        %4659 = vmatprep.subr.mxu0 0.0
        %4660 = vmatpush1.msra.mxu0 %v4644
        %4661 = vmatprep.subr.mxu0 0.0
        %4662 = vmatpush1.msra.mxu0 %v4645
        %4663 = vmatprep.subr.mxu0 0.0
        %4664 = vmatpush1.msra.mxu0 %v4646
        %4665 = vmatprep.subr.mxu0 0.0
        %4666 = vmatpush1.msra.mxu0 %v4647
        %4667 = vmatprep.subr.mxu0 0.0
        %4668 = vmatpush1.msra.mxu0 0.0
        %4669 = vmatprep.subr.mxu0 0.0
        %4670 = vmatpush1.msra.mxu0 0.0
        %4671 = vmatprep.subr.mxu0 0.0
        %4672 = vmatpush1.msra.mxu0 0.0
        %4673 = vmatprep.subr.mxu0 0.0
        %4674 = vmatpush1.msra.mxu0 0.0
        %4675 = vmatprep.subr.mxu0 0.0
        %4676 = vmatpush1.msra.mxu0 0.0
        %4677 = vmatprep.subr.mxu0 0.0
        %4678 = vmatpush1.msra.mxu0 0.0
        %4679 = vmatprep.subr.mxu0 0.0
        %4680 = vmatpush1.msra.mxu0 0.0
        %4681 = vmatprep.subr.mxu0 0.0
        %4682 = vmatpush1.msra.mxu0 0.0
        %4683 = vmatprep.subr.mxu0 0.0
        %4684 = vmatpush1.msra.mxu0 0.0
        %4685 = vmatprep.subr.mxu0 0.0
        %4686 = vmatpush1.msra.mxu0 0.0
        %4687 = vmatprep.subr.mxu0 0.0
        %4688 = vmatpush1.msra.mxu0 0.0
        %4689 = vmatprep.subr.mxu0 0.0
        %4690 = vmatpush1.msra.mxu0 0.0
        %4691 = vmatprep.subr.mxu0 0.0
        %4692 = vmatpush1.msra.mxu0 0.0
        %4693 = vmatprep.subr.mxu0 0.0
        %4694 = vmatpush1.msra.mxu0 0.0
        %4695 = vmatprep.subr.mxu0 0.0
        %4696 = vmatpush1.msra.mxu0 0.0
        %4697 = vmatprep.subr.mxu0 0.0
        %4698 = vmatpush1.msra.mxu0 0.0
        %4699 = vmatprep.subr.mxu0 0.0
        %4700 = vmatpush1.msra.mxu0 0.0
        %4701 = vmatprep.subr.mxu0 0.0
        %4702 = vmatpush1.msra.mxu0 0.0
        %4703 = vmatprep.subr.mxu0 0.0
        %4704 = vmatpush1.msra.mxu0 0.0
        %4705 = vmatprep.subr.mxu0 0.0
        %4706 = vmatpush1.msra.mxu0 0.0
        %4707 = vmatprep.subr.mxu0 0.0
        %4708 = vmatpush1.msra.mxu0 0.0
        %4709 = vmatprep.subr.mxu0 0.0
        %4710 = vmatpush1.msra.mxu0 0.0
        %4711 = vmatprep.subr.mxu0 0.0
        %4712 = vmatpush1.msra.mxu0 0.0
        %4713 = vmatprep.subr.mxu0 0.0
        %4714 = vmatpush1.msra.mxu0 0.0
        %4715 = vmatprep.mubr.f32.mxu0 0.0
        %4716 = vmatmul.mubr.f32.gmra.mrb[0].mxu0 %v4649
        %v4717 = vpop.f32.mrb[0].mxu0
        %v4718 = vadd.f32 0.0, %v4717
        %v4719 = vpop.f32.mrb[0].mxu0
        %4720 = vdwg.mxu0
        %v4721 = vadd.f32 %v4638, %v4718
        %v4722 = vmax.f32 %v4721, 0.0
        %v4723 = vld [vmem:[%s13] sm:$0xff]
        %v4724 = vld [vmem:[%s13 + $0x8] sm:$0xff]
        %v4725 = vld [vmem:[%s13 + $0x10] sm:$0x3]
        %v4726 = vld [vmem:[%s14] sm:$0x1]
        %vm4727 = vcmask 146432
        %v4729 = vsel %vm4727, %v4722, 0
        %vm4731 = vcmask 1041408
        %v4733 = vsel %vm4731, %v4725, 0
        %4735 = vmatprep.subr.mxu0 0.0
        %4736 = vmatpush1.msra.mxu0 %v4723
        %4737 = vmatprep.subr.mxu0 0.0
        %4738 = vmatpush1.msra.mxu0 %v4724
        %4739 = vmatprep.subr.mxu0 0.0
        %4740 = vmatpush1.msra.mxu0 %v4733
        %4741 = vmatprep.subr.mxu0 0.0
        %4742 = vmatpush1.msra.mxu0 0.0
        %4743 = vmatprep.subr.mxu0 0.0
        %4744 = vmatpush1.msra.mxu0 0.0
        %4745 = vmatprep.subr.mxu0 0.0
        %4746 = vmatpush1.msra.mxu0 0.0
        %4747 = vmatprep.subr.mxu0 0.0
        %4748 = vmatpush1.msra.mxu0 0.0
        %4749 = vmatprep.subr.mxu0 0.0
        %4750 = vmatpush1.msra.mxu0 0.0
        %4751 = vmatprep.subr.mxu0 0.0
        %4752 = vmatpush1.msra.mxu0 0.0
        %4753 = vmatprep.subr.mxu0 0.0
        %4754 = vmatpush1.msra.mxu0 0.0
        %4755 = vmatprep.subr.mxu0 0.0
        %4756 = vmatpush1.msra.mxu0 0.0
        %4757 = vmatprep.subr.mxu0 0.0
        %4758 = vmatpush1.msra.mxu0 0.0
        %4759 = vmatprep.subr.mxu0 0.0
        %4760 = vmatpush1.msra.mxu0 0.0
        %4761 = vmatprep.subr.mxu0 0.0
        %4762 = vmatpush1.msra.mxu0 0.0
        %4763 = vmatprep.subr.mxu0 0.0
        %4764 = vmatpush1.msra.mxu0 0.0
        %4765 = vmatprep.subr.mxu0 0.0
        %4766 = vmatpush1.msra.mxu0 0.0
        %4767 = vmatprep.subr.mxu0 0.0
        %4768 = vmatpush1.msra.mxu0 0.0
        %4769 = vmatprep.subr.mxu0 0.0
        %4770 = vmatpush1.msra.mxu0 0.0
        %4771 = vmatprep.subr.mxu0 0.0
        %4772 = vmatpush1.msra.mxu0 0.0
        %4773 = vmatprep.subr.mxu0 0.0
        %4774 = vmatpush1.msra.mxu0 0.0
        %4775 = vmatprep.subr.mxu0 0.0
        %4776 = vmatpush1.msra.mxu0 0.0
        %4777 = vmatprep.subr.mxu0 0.0
        %4778 = vmatpush1.msra.mxu0 0.0
        %4779 = vmatprep.subr.mxu0 0.0
        %4780 = vmatpush1.msra.mxu0 0.0
        %4781 = vmatprep.subr.mxu0 0.0
        %4782 = vmatpush1.msra.mxu0 0.0
        %4783 = vmatprep.subr.mxu0 0.0
        %4784 = vmatpush1.msra.mxu0 0.0
        %4785 = vmatprep.subr.mxu0 0.0
        %4786 = vmatpush1.msra.mxu0 0.0
        %4787 = vmatprep.subr.mxu0 0.0
        %4788 = vmatpush1.msra.mxu0 0.0
        %4789 = vmatprep.subr.mxu0 0.0
        %4790 = vmatpush1.msra.mxu0 0.0
        %4791 = vmatprep.subr.mxu0 0.0
        %4792 = vmatpush1.msra.mxu0 0.0
        %4793 = vmatprep.subr.mxu0 0.0
        %4794 = vmatpush1.msra.mxu0 0.0
        %4795 = vmatprep.subr.mxu0 0.0
        %4796 = vmatpush1.msra.mxu0 0.0
        %4797 = vmatprep.subr.mxu0 0.0
        %4798 = vmatpush1.msra.mxu0 0.0
        %4799 = vmatprep.mubr.f32.mxu0 0.0
        %4800 = vmatmul.mubr.f32.gmra.mrb[0].mxu0 %v4729
        %v4801 = vpop.f32.mrb[0].mxu0
        %v4802 = vadd.f32 %v4726, %v4801
        %v4803 = vpop.f32.mrb[0].mxu0
        %4804 = vdwg.mxu0
        %vm4805 = vcmask 73728
        %4806 = vst.msk [vmem:[%s486] sm:$0x1] %vm4805, %v4802
        %s4807 = sand.u32 %s357, 1
        %s4808 = scalar_lea.sflag [#allocation3], %s4807
        %s4809 = sand.u32 %s357, 1
        %s4810 = scalar_lea.vmem [#allocation2], %s4809
        // Predicated region
        $region81: #{wdcnn_deconv_forward.1} parent=79 // pred_check
          %p4811 = pneg %p367
        $region82: #{wdcnn_deconv_forward.1} parent=79 // pred_check_branch
          %4813 = sbr.rel (%p4811) target = $region84
        $region83: #{wdcnn_deconv_forward.1} parent=79 // pred_region
          %s4815 = ssub.s32 16, 16
          %4816 = vsyncadd %s4808, %s4815
          %s4817 = smul.addr %s29, 16
          %s4818 = scalar_lea.hbm %s15, %s4817
          %s4820 = sshll.u32 %s4810, 4
          %s4821 = int_to_ptr.vmem [resolvable:$true] %s4820
          %4823 = dma.vmem_to_hbm [thread:$0]  %s4821, 16, %s4818, %s4808
        $region84: #{wdcnn_deconv_forward.1} parent=79 // pred_fallthru
          _
      $region80: #{wdcnn_deconv_forward.1} parent=5 // pred_fallthru
        _
      %p4824 = scmp.le.s32.totalorder 2, %s24
      // Predicated region
      $region85: #{wdcnn_deconv_forward.1} parent=5 // pred_check
        %p4825 = pneg %p4824
      $region86: #{wdcnn_deconv_forward.1} parent=5 // pred_check_branch
        %4827 = sbr.rel (%p4825) target = $region88
      $region87: #{wdcnn_deconv_forward.1} parent=5 // pred_region
        %s4828 = ssub.s32 %s24, 2
        // Predicated region
        $region89: #{wdcnn_deconv_forward.1} parent=87 // pred_check
          %p4829 = pneg %p373
        $region90: #{wdcnn_deconv_forward.1} parent=87 // pred_check_branch
          %4831 = sbr.rel (%p4829) target = $region92
        $region91: #{wdcnn_deconv_forward.1} parent=87 // pred_region
          %s4832 = sand.u32 %s358, 1
          %s4833 = scalar_lea.sflag [#allocation3], %s4832
          %s4834 = sand.u32 %s358, 1
          %s4835 = scalar_lea.vmem [#allocation2], %s4834
          %4836 = dma.done %s4833, 16
        $region92: #{wdcnn_deconv_forward.1} parent=87 // pred_fallthru
          _
      $region88: #{wdcnn_deconv_forward.1} parent=5 // pred_fallthru
        _
    $region6: #{wdcnn_deconv_forward.1} parent=1 // loop_footer
      %s28 = sadd.s32 1, %s24
    $region7: #{wdcnn_deconv_forward.1} parent=1 // loop_footer_branch
      %23 = sbr.rel target = $region3
    $region8: #{wdcnn_deconv_forward.1} parent=1 // loop_exit
      _
    %4837 = vsyncpa [#allocation3], 1
    %s4838 = scalar_lea.sflag [#allocation3], 1
    %4839 = vsyncpa %s4838, 1

</llo_original>
